<compile_context>
chip_gen: v5e
topology: v5e:2x2
jax: 0.10.0
libtpu: 0.0.40
codegen_flags: <defaults>
</compile_context>

<pallas_src>
import functools
import math

import jax
import jax.numpy as jnp
from jax.experimental import pallas as pl
from jax.experimental.pallas import tpu as pltpu


# ----------------------------- shared math helpers ---------------------------

def _bf16(x):
    return x.astype(jnp.bfloat16)


def _gelu_tanh(x):
    # tanh-approximate GELU: the transcendental runs on the EUP slot.
    c = math.sqrt(2.0 / math.pi)
    return 0.5 * x * (1.0 + jnp.tanh(c * (x + 0.044715 * x * x * x)))


def _layernorm(x, g, b, eps=1e-5):
    mu = jnp.mean(x, axis=-1, keepdims=True)
    var = jnp.mean((x - mu) ** 2, axis=-1, keepdims=True)
    return (x - mu) * jax.lax.rsqrt(var + eps) * g + b


# ------------------------------ fused Pallas kernel ---------------------------

def _attention(xq_flat, xkv, wq, bq, wkv, bkv, wo, bo, *, nhead):
    """nn.MultiheadAttention forward with dense projections.

    xq_flat: (TB*Lq, D) f32 query rows.
    xkv:     (TB, S, D) f32 key/value source.
    wq: (D, D) bf16, wkv: (D, 2D) bf16, wo: (D, D) bf16.
    bq/bo: (1, D) f32, bkv: (1, 2D) f32.
    Returns (TB*Lq, D) f32.
    """
    mq, d = xq_flat.shape
    tb, s_len, _ = xkv.shape
    lq = mq // tb
    h = nhead
    dh = d // h

    # Dense, full-MXU-width projections (N = D and N = 2D).
    q = jnp.dot(_bf16(xq_flat), wq, preferred_element_type=jnp.float32) + bq
    q = q * (1.0 / math.sqrt(dh))           # scale after bias, as torch does
    kv = jnp.dot(_bf16(xkv.reshape(tb * s_len, d)), wkv,
                 preferred_element_type=jnp.float32) + bkv

    q3 = q.reshape(tb, lq, d)
    kv3 = kv.reshape(tb, s_len, 2 * d)

    # Heads are contiguous dh-wide column blocks of the dense projections, so
    # splitting them is a static lane slice; score/PV einsums batch over TB.
    head_outs = []
    for hi in range(h):
        qh = _bf16(q3[:, :, hi * dh:(hi + 1) * dh])
        kh = _bf16(kv3[:, :, hi * dh:(hi + 1) * dh])
        vh = _bf16(kv3[:, :, d + hi * dh:d + (hi + 1) * dh])
        sc = jnp.einsum('bqd,bkd->bqk', qh, kh,
                        preferred_element_type=jnp.float32)
        sc = sc - jnp.max(sc, axis=-1, keepdims=True)
        p = jnp.exp(sc)
        p = p * pl.reciprocal(jnp.sum(p, axis=-1, keepdims=True), approx=True)
        head_outs.append(jnp.einsum('bqk,bkd->bqd', _bf16(p), vh,
                                    preferred_element_type=jnp.float32))

    # concat-heads output projection: one (rows, D) @ (D, D) matmul.
    o = jnp.concatenate(head_outs, axis=-1).reshape(tb * lq, d)
    return jnp.dot(_bf16(o), wo, preferred_element_type=jnp.float32) + bo


def _qformer_fused_kernel(qt_ref, ins_ref, img_ref,
                          wq_s_ref, wkv_s_ref, wo_s_ref, bkv_s_ref,
                          wq_c_ref, wkv_c_ref, wo_c_ref, bkv_c_ref,
                          w1_ref, b1_ref, w2_ref,
                          rows_ref, fcw_ref, fcb_ref,
                          out_ref, xcat_ref, *, nhead, lq, tb):
    layer = pl.program_id(1)
    d = qt_ref.shape[-1]

    # Layer 0: build [query_tokens ; instruction] in the persistent VMEM carry.
    @pl.when(layer == 0)
    def _init():
        xcat_ref[:, 0:lq, :] = jnp.broadcast_to(qt_ref[...], (tb, lq, d))
        xcat_ref[:, lq:, :] = ins_ref[...]

    rows = rows_ref[...]          # (9, D): bq_s, bo_s, bq_c, bo_c, ln1g, ln1b, b2, ln2g, ln2b
    xcat = xcat_ref[...]          # (TB, Lq+Li, D)
    xq = xcat[:, 0:lq, :].reshape(tb * lq, d)

    # Self-attention: queries attend over [query ; instruction].  Only query
    # rows of the torch output are ever used, so only their Q is projected.
    q = _attention(xq, xcat,
                   wq_s_ref[...], rows[0:1, :],
                   wkv_s_ref[...], bkv_s_ref[...],
                   wo_s_ref[...], rows[1:2, :], nhead=nhead)
    # Cross-attention over image embeddings.
    q = _attention(q, img_ref[...],
                   wq_c_ref[...], rows[2:3, :],
                   wkv_c_ref[...], bkv_c_ref[...],
                   wo_c_ref[...], rows[3:4, :], nhead=nhead)

    # FFN: LayerNorm -> Linear(D,4D) -> GELU -> Linear(4D,D) -> LayerNorm.
    hdn = _layernorm(q, rows[4:5, :], rows[5:6, :])
    hdn = jnp.dot(_bf16(hdn), w1_ref[...],
                  preferred_element_type=jnp.float32) + b1_ref[...]
    hdn = _gelu_tanh(hdn)
    hdn = jnp.dot(_bf16(hdn), w2_ref[...],
                  preferred_element_type=jnp.float32) + rows[6:7, :]
    qt_new = _layernorm(hdn, rows[7:8, :], rows[8:9, :])

    # Carry for the next layer (stays in VMEM, no HBM round trip).
    xcat_ref[:, 0:lq, :] = qt_new.reshape(tb, lq, d)

    # Last layer: fuse the final fc projection and emit the output block.
    @pl.when(layer == pl.num_programs(1) - 1)
    def _final():
        y = jnp.dot(_bf16(qt_new), fcw_ref[...],
                    preferred_element_type=jnp.float32) + fcb_ref[...]
        out_ref[...] = y.reshape(tb, lq, d)


# --------------------------- host-side weight packing -------------------------

def _pack_layer_params(layer_params):
    """Split fused QKV weights into dense Wq / Wkv, bf16-cast the big matrices,
    pack all D-wide bias / LN vectors into one (9, D) rows array per layer."""
    wq_s, wkv_s, wo_s, bkv_s = [], [], [], []
    wq_c, wkv_c, wo_c, bkv_c = [], [], [], []
    w1s, b1s, w2s, rows = [], [], [], []
    for (wqkv_s_l, bqkv_s_l, wo_s_l, bo_s_l, wqkv_c_l, bqkv_c_l, wo_c_l, bo_c_l,
         ln1g, ln1b, w1_l, b1_l, w2_l, b2_l, ln2g, ln2b) in layer_params:
        d = wqkv_s_l.shape[0]
        wq_s.append(_bf16(wqkv_s_l[:, :d]))
        wkv_s.append(_bf16(wqkv_s_l[:, d:]))
        wo_s.append(_bf16(wo_s_l))
        bkv_s.append(bqkv_s_l[:, d:])
        wq_c.append(_bf16(wqkv_c_l[:, :d]))
        wkv_c.append(_bf16(wqkv_c_l[:, d:]))
        wo_c.append(_bf16(wo_c_l))
        bkv_c.append(bqkv_c_l[:, d:])
        w1s.append(_bf16(w1_l))
        b1s.append(b1_l)
        w2s.append(_bf16(w2_l))
        rows.append(jnp.concatenate(
            [bqkv_s_l[:, :d], bo_s_l, bqkv_c_l[:, :d], bo_c_l,
             ln1g, ln1b, b2_l, ln2g, ln2b], axis=0))
    stk = lambda xs: jnp.stack(xs, axis=0)
    return (stk(wq_s), stk(wkv_s), stk(wo_s), stk(bkv_s),
            stk(wq_c), stk(wkv_c), stk(wo_c), stk(bkv_c),
            stk(w1s), stk(b1s), stk(w2s), stk(rows))


# --------------------------------- forward -----------------------------------

def qformer_forward(image_embeds, instruction_embeds, query_tokens, layer_params,
                    fc_w, fc_b, nhead, batch_block=8):
    B, Limg, D = image_embeds.shape
    Li = instruction_embeds.shape[1]
    Lq = query_tokens.shape[1]
    num_layers = len(layer_params)

    # Batch block size: largest divisor of B not exceeding batch_block
    # (cap at ~4-8 on v7x at real sizes to stay within 64 MiB VMEM).
    tb = 1
    for cand in range(min(B, batch_block), 0, -1):
        if B % cand == 0:
            tb = cand
            break

    (wq_s, wkv_s, wo_s, bkv_s, wq_c, wkv_c, wo_c, bkv_c,
     w1, b1, w2, rows) = _pack_layer_params(layer_params)

    kernel = functools.partial(_qformer_fused_kernel, nhead=nhead, lq=Lq, tb=tb)

    def layer_spec(*shape):
        # Per-layer stacked weights: block index follows the layer grid axis so
        # layer l+1 DMAs overlap with layer l compute.
        return pl.BlockSpec((None, *shape), lambda nb, l: (l,) + (0,) * len(shape))

    in_specs = [
        pl.BlockSpec((None, Lq, D), lambda nb, l: (0, 0, 0)),     # query tokens (shared)
        pl.BlockSpec((tb, Li, D), lambda nb, l: (nb, 0, 0)),      # instruction embeds
        pl.BlockSpec((tb, Limg, D), lambda nb, l: (nb, 0, 0)),    # image embeds
        layer_spec(D, D),            # self-attn Wq
        layer_spec(D, 2 * D),        # self-attn Wkv
        layer_spec(D, D),            # self-attn Wo
        layer_spec(1, 2 * D),        # self-attn bkv
        layer_spec(D, D),            # cross-attn Wq
        layer_spec(D, 2 * D),        # cross-attn Wkv
        layer_spec(D, D),            # cross-attn Wo
        layer_spec(1, 2 * D),        # cross-attn bkv
        layer_spec(D, 4 * D),        # ffn W1
        layer_spec(1, 4 * D),        # ffn b1
        layer_spec(4 * D, D),        # ffn W2
        layer_spec(9, D),            # packed D-wide bias / LN rows
        pl.BlockSpec((D, D), lambda nb, l: (0, 0)),               # final fc W
        pl.BlockSpec((1, D), lambda nb, l: (0, 0)),               # final fc b
    ]

    # --- advisory cost estimate -------------------------------------------------
    s_self = Lq + Li
    flops_layer_per_b = (
        2 * Lq * D * D + 2 * s_self * D * 2 * D + 4 * Lq * s_self * D + 2 * Lq * D * D
        + 2 * Lq * D * D + 2 * Limg * D * 2 * D + 4 * Lq * Limg * D + 2 * Lq * D * D
        + 4 * Lq * D * 4 * D)
    flops = B * (num_layers * flops_layer_per_b + 2 * Lq * D * D)
    transcendentals = B * num_layers * (Lq * (s_self + Limg) + Lq * 4 * D)
    wbytes_layer = (2 * (wq_s.size + wkv_s.size + wo_s.size + wq_c.size + wkv_c.size
                         + wo_c.size + w1.size + w2.size)
                    + 4 * (bkv_s.size + bkv_c.size + b1.size + rows.size)) // num_layers
    bytes_accessed = ((B // tb) * num_layers * wbytes_layer
                      + 4 * (image_embeds.size + instruction_embeds.size)
                      + 4 * (B * Lq * D + query_tokens.size)
                      + 2 * fc_w.size + 4 * fc_b.size)

    return pl.pallas_call(
        kernel,
        out_shape=jax.ShapeDtypeStruct((B, Lq, D), jnp.float32),
        grid=(B // tb, num_layers),
        in_specs=in_specs,
        out_specs=pl.BlockSpec((tb, Lq, D), lambda nb, l: (nb, 0, 0)),
        scratch_shapes=[pltpu.VMEM((tb, Lq + Li, D), jnp.float32)],   # [qt ; ins] carry
        compiler_params=pltpu.CompilerParams(
            dimension_semantics=("parallel", "arbitrary"),
            # 44 MiB leaves Mosaic internal-scratch headroom on v7x (64 MiB
            # physical); comfortably within v5e/v6e's 128 MiB.
            vmem_limit_bytes=44 * 1024 * 1024),
        cost_estimate=pl.CostEstimate(flops=int(flops),
                                      transcendentals=int(transcendentals),
                                      bytes_accessed=int(bytes_accessed)),
    )(query_tokens, instruction_embeds, image_embeds,
      wq_s, wkv_s, wo_s, bkv_s,
      wq_c, wkv_c, wo_c, bkv_c,
      w1, b1, w2, rows, _bf16(fc_w), fc_b)


# ------------------------- pure-JAX reference (no Pallas) ---------------------

def _ref_mha(xq, xkv, w_qkv, b_qkv, w_o, b_o, nhead):
    d = xq.shape[-1]
    dh = d // nhead

    def proj(x, w, b):
        return jnp.dot(_bf16(x), _bf16(w), preferred_element_type=jnp.float32) + b

    q = proj(xq, w_qkv[:, :d], b_qkv[:, :d])
    k = proj(xkv, w_qkv[:, d:2 * d], b_qkv[:, d:2 * d])
    v = proj(xkv, w_qkv[:, 2 * d:], b_qkv[:, 2 * d:])
    q = q * (1.0 / math.sqrt(dh))
    qh = q.reshape(-1, nhead, dh).transpose(1, 0, 2)
    kh = k.reshape(-1, nhead, dh).transpose(1, 0, 2)
    vh = v.reshape(-1, nhead, dh).transpose(1, 0, 2)
    s = jnp.einsum('hqd,hkd->hqk', _bf16(qh), _bf16(kh),
                   preferred_element_type=jnp.float32)
    p = jax.nn.softmax(s, axis=-1)
    o = jnp.einsum('hqk,hkd->hqd', _bf16(p), _bf16(vh),
                   preferred_element_type=jnp.float32)
    o = o.transpose(1, 0, 2).reshape(-1, d)
    return jnp.dot(_bf16(o), _bf16(w_o), preferred_element_type=jnp.float32) + b_o


def qformer_reference(image_embeds, instruction_embeds, query_tokens, layer_params,
                      fc_w, fc_b, nhead):
    B = image_embeds.shape[0]
    Lq = query_tokens.shape[1]
    qt = jnp.broadcast_to(query_tokens, (B, Lq, query_tokens.shape[2]))

    def layer_one(qt_b, ins_b, img_b, p):
        (wqkv_s, bqkv_s, wo_s, bo_s, wqkv_c, bqkv_c, wo_c, bo_c,
         ln1g, ln1b, w1, b1, w2, b2, ln2g, ln2b) = p
        x = jnp.concatenate([qt_b, ins_b], axis=0)
        x = _ref_mha(x, x, wqkv_s, bqkv_s, wo_s, bo_s, nhead)
        q = x[:Lq, :]
        q = _ref_mha(q, img_b, wqkv_c, bqkv_c, wo_c, bo_c, nhead)
        h = _layernorm(q, ln1g, ln1b)
        h = jnp.dot(_bf16(h), _bf16(w1), preferred_element_type=jnp.float32) + b1
        h = 0.5 * h * (1.0 + jax.lax.erf(h * (1.0 / math.sqrt(2.0))))   # exact GELU
        h = jnp.dot(_bf16(h), _bf16(w2), preferred_element_type=jnp.float32) + b2
        return _layernorm(h, ln2g, ln2b)

    for p in layer_params:
        qt = jax.vmap(lambda a, b, c, p=p: layer_one(a, b, c, p))(
            qt, instruction_embeds, image_embeds)
    return jnp.dot(_bf16(qt), _bf16(fc_w), preferred_element_type=jnp.float32) + fc_b


# --------------------------------- params ------------------------------------

def init_params(key, D, num_query, num_layers):
    def lin_w(k, din, dout, scale=0.02):
        return jax.random.normal(k, (din, dout), jnp.float32) * scale

    def lin_b(k, dout, scale=0.01):
        return jax.random.normal(k, (1, dout), jnp.float32) * scale

    keys = jax.random.split(key, num_layers + 2)
    query_tokens = jax.random.normal(keys[0], (1, num_query, D), jnp.float32)
    kfw, kfb = jax.random.split(keys[1])
    fc_w = lin_w(kfw, D, D)
    fc_b = lin_b(kfb, D)

    layer_params = []
    for li in range(num_layers):
        ks = jax.random.split(keys[2 + li], 16)
        layer_params.append((
            lin_w(ks[0], D, 3 * D), lin_b(ks[1], 3 * D),            # self-attn in_proj
            lin_w(ks[2], D, D), lin_b(ks[3], D),                    # self-attn out_proj
            lin_w(ks[4], D, 3 * D), lin_b(ks[5], 3 * D),            # cross-attn in_proj
            lin_w(ks[6], D, D), lin_b(ks[7], D),                    # cross-attn out_proj
            1.0 + jax.random.normal(ks[8], (1, D), jnp.float32) * 0.01,   # ln1 g
            jax.random.normal(ks[9], (1, D), jnp.float32) * 0.01,         # ln1 b
            lin_w(ks[10], D, 4 * D), lin_b(ks[11], 4 * D),          # ffn W1/b1
            lin_w(ks[12], 4 * D, D), lin_b(ks[13], D),              # ffn W2/b2
            1.0 + jax.random.normal(ks[14], (1, D), jnp.float32) * 0.01,  # ln2 g
            jax.random.normal(ks[15], (1, D), jnp.float32) * 0.01,        # ln2 b
        ))
    return query_tokens, layer_params, fc_w, fc_b


if __name__ == "__main__":
    B = 2
    D = 32            # hidden_dim
    nhead = 4
    num_query = 8     # num_query_tokens
    num_layers = 2
    Li = 8            # instruction sequence length
    Limg = 16         # image token sequence length

    key = jax.random.PRNGKey(0)
    k_data, k_params = jax.random.split(key)
    k_img, k_ins = jax.random.split(k_data)
    image_embeds = jax.random.normal(k_img, (B, Limg, D), jnp.float32)
    instruction_embeds = jax.random.normal(k_ins, (B, Li, D), jnp.float32)

    query_tokens, layer_params, fc_w, fc_b = init_params(k_params, D, num_query, num_layers)

    out = qformer_forward(image_embeds, instruction_embeds, query_tokens,
                          layer_params, fc_w, fc_b, nhead)
    out = jax.block_until_ready(out)
    assert out.shape == (B, num_query, D)

    ref = qformer_reference(image_embeds, instruction_embeds, query_tokens,
                            layer_params, fc_w, fc_b, nhead)
    ref = jax.block_until_ready(ref)
    max_err = float(jnp.max(jnp.abs(out - ref)))
    assert jnp.allclose(out, ref, atol=2e-2, rtol=2e-2), f"max_err={max_err}"

    print("KERNEL_OK")
</pallas_src>

<mosaic_0001>
module attributes {stable_mosaic.version = 11 : i64} {
  func.func @_qformer_fused_kernel(%arg0: i32, %arg1: i32, %arg2: memref<1x8x32xf32, #tpu.memory_space<vmem>>, %arg3: memref<2x8x32xf32, #tpu.memory_space<vmem>>, %arg4: memref<2x16x32xf32, #tpu.memory_space<vmem>>, %arg5: memref<1x32x32xbf16, #tpu.memory_space<vmem>>, %arg6: memref<1x32x64xbf16, #tpu.memory_space<vmem>>, %arg7: memref<1x32x32xbf16, #tpu.memory_space<vmem>>, %arg8: memref<1x1x64xf32, #tpu.memory_space<vmem>>, %arg9: memref<1x32x32xbf16, #tpu.memory_space<vmem>>, %arg10: memref<1x32x64xbf16, #tpu.memory_space<vmem>>, %arg11: memref<1x32x32xbf16, #tpu.memory_space<vmem>>, %arg12: memref<1x1x64xf32, #tpu.memory_space<vmem>>, %arg13: memref<1x32x128xbf16, #tpu.memory_space<vmem>>, %arg14: memref<1x1x128xf32, #tpu.memory_space<vmem>>, %arg15: memref<1x128x32xbf16, #tpu.memory_space<vmem>>, %arg16: memref<1x9x32xf32, #tpu.memory_space<vmem>>, %arg17: memref<32x32xbf16, #tpu.memory_space<vmem>>, %arg18: memref<1x32xf32, #tpu.memory_space<vmem>>, %arg19: memref<2x8x32xf32, #tpu.memory_space<vmem>>, %arg20: memref<2x16x32xf32, #tpu.memory_space<vmem>>) attributes {dimension_semantics = [#tpu.dimension_semantics<parallel>, #tpu.dimension_semantics<arbitrary>], iteration_bounds = array<i64: 1, 2>, scalar_prefetch = 0 : i64, scratch_operands = 1 : i64, tpu.core_type = #tpu.core_type<tc>, window_params = [{pipeline_mode = #tpu.pipeline_mode<synchronous>, transform_indices = @transform_0, window_bounds = array<i64: 1, 8, 32>}, {transform_indices = @transform_1, window_bounds = array<i64: 2, 8, 32>}, {transform_indices = @transform_2, window_bounds = array<i64: 2, 16, 32>}, {transform_indices = @transform_3, window_bounds = array<i64: 1, 32, 32>}, {transform_indices = @transform_4, window_bounds = array<i64: 1, 32, 64>}, {transform_indices = @transform_5, window_bounds = array<i64: 1, 32, 32>}, {transform_indices = @transform_6, window_bounds = array<i64: 1, 1, 64>}, {transform_indices = @transform_7, window_bounds = array<i64: 1, 32, 32>}, {transform_indices = @transform_8, window_bounds = array<i64: 1, 32, 64>}, {transform_indices = @transform_9, window_bounds = array<i64: 1, 32, 32>}, {transform_indices = @transform_10, window_bounds = array<i64: 1, 1, 64>}, {transform_indices = @transform_11, window_bounds = array<i64: 1, 32, 128>}, {transform_indices = @transform_12, window_bounds = array<i64: 1, 1, 128>}, {transform_indices = @transform_13, window_bounds = array<i64: 1, 128, 32>}, {transform_indices = @transform_14, window_bounds = array<i64: 1, 9, 32>}, {pipeline_mode = #tpu.pipeline_mode<synchronous>, transform_indices = @transform_15, window_bounds = array<i64: 32, 32>}, {pipeline_mode = #tpu.pipeline_mode<synchronous>, transform_indices = @transform_16, window_bounds = array<i64: 1, 32>}, {transform_indices = @transform_17, window_bounds = array<i64: 2, 8, 32>}]} {
    %c0_i32 = arith.constant 0 : i32
    %0 = arith.cmpi eq, %arg1, %c0_i32 : i32
    %1 = arith.extui %0 : i1 to i32
    %c0_i32_0 = arith.constant 0 : i32
    %2 = arith.cmpi ne, %1, %c0_i32_0 : i32
    scf.if %2 {
      %c0_101 = arith.constant 0 : index
      %c0_102 = arith.constant 0 : index
      %c0_103 = arith.constant 0 : index
      %300 = vector.load %arg2[%c0_101, %c0_102, %c0_103] : memref<1x8x32xf32, #tpu.memory_space<vmem>>, vector<1x8x32xf32>
      %301 = vector.shape_cast %300 : vector<1x8x32xf32> to vector<8x32xf32>
      %302 = vector.shape_cast %301 : vector<8x32xf32> to vector<1x8x32xf32>
      %303 = vector.broadcast %302 : vector<1x8x32xf32> to vector<2x8x32xf32>
      %c0_104 = arith.constant 0 : index
      %c0_105 = arith.constant 0 : index
      %c0_106 = arith.constant 0 : index
      %304 = vector.load %arg20[%c0_104, %c0_105, %c0_106] : memref<2x16x32xf32, #tpu.memory_space<vmem>>, vector<2x8x32xf32>
      tpu.vector_store %arg20[%c0_104, %c0_105, %c0_106], %303 {strides = array<i32>} : memref<2x16x32xf32, #tpu.memory_space<vmem>>, vector<2x8x32xf32>,
      %c0_107 = arith.constant 0 : index
      %c0_108 = arith.constant 0 : index
      %c0_109 = arith.constant 0 : index
      %305 = vector.load %arg3[%c0_107, %c0_108, %c0_109] : memref<2x8x32xf32, #tpu.memory_space<vmem>>, vector<2x8x32xf32>
      %c0_110 = arith.constant 0 : index
      %c8 = arith.constant 8 : index
      %c0_111 = arith.constant 0 : index
      %306 = vector.load %arg20[%c0_110, %c8, %c0_111] : memref<2x16x32xf32, #tpu.memory_space<vmem>>, vector<2x8x32xf32>
      tpu.vector_store %arg20[%c0_110, %c8, %c0_111], %305 {strides = array<i32>} : memref<2x16x32xf32, #tpu.memory_space<vmem>>, vector<2x8x32xf32>,
    } else {
    }
    %c0 = arith.constant 0 : index
    %c0_1 = arith.constant 0 : index
    %c0_2 = arith.constant 0 : index
    %3 = vector.load %arg16[%c0, %c0_1, %c0_2] : memref<1x9x32xf32, #tpu.memory_space<vmem>>, vector<1x9x32xf32>
    %4 = vector.shape_cast %3 : vector<1x9x32xf32> to vector<9x32xf32>
    %c0_3 = arith.constant 0 : index
    %c0_4 = arith.constant 0 : index
    %c0_5 = arith.constant 0 : index
    %5 = vector.load %arg20[%c0_3, %c0_4, %c0_5] : memref<2x16x32xf32, #tpu.memory_space<vmem>>, vector<2x16x32xf32>
    %6 = vector.extract_strided_slice %5 {offsets = [0, 0, 0], sizes = [2, 8, 32], strides = [1, 1, 1]} : vector<2x16x32xf32> to vector<2x8x32xf32>
    %7 = vector.shape_cast %6 : vector<2x8x32xf32> to vector<16x32xf32>
    %c0_6 = arith.constant 0 : index
    %c0_7 = arith.constant 0 : index
    %c0_8 = arith.constant 0 : index
    %8 = vector.load %arg5[%c0_6, %c0_7, %c0_8] : memref<1x32x32xbf16, #tpu.memory_space<vmem>>, vector<1x32x32xbf16>
    %9 = vector.shape_cast %8 : vector<1x32x32xbf16> to vector<32x32xbf16>
    %10 = vector.extract_strided_slice %4 {offsets = [0, 0], sizes = [1, 32], strides = [1, 1]} : vector<9x32xf32> to vector<1x32xf32>
    %c0_9 = arith.constant 0 : index
    %c0_10 = arith.constant 0 : index
    %c0_11 = arith.constant 0 : index
    %11 = vector.load %arg6[%c0_9, %c0_10, %c0_11] : memref<1x32x64xbf16, #tpu.memory_space<vmem>>, vector<1x32x64xbf16>
    %12 = vector.shape_cast %11 : vector<1x32x64xbf16> to vector<32x64xbf16>
    %c0_12 = arith.constant 0 : index
    %c0_13 = arith.constant 0 : index
    %c0_14 = arith.constant 0 : index
    %13 = vector.load %arg8[%c0_12, %c0_13, %c0_14] : memref<1x1x64xf32, #tpu.memory_space<vmem>>, vector<1x1x64xf32>
    %14 = vector.shape_cast %13 : vector<1x1x64xf32> to vector<1x64xf32>
    %c0_15 = arith.constant 0 : index
    %c0_16 = arith.constant 0 : index
    %c0_17 = arith.constant 0 : index
    %15 = vector.load %arg7[%c0_15, %c0_16, %c0_17] : memref<1x32x32xbf16, #tpu.memory_space<vmem>>, vector<1x32x32xbf16>
    %16 = vector.shape_cast %15 : vector<1x32x32xbf16> to vector<32x32xbf16>
    %17 = vector.extract_strided_slice %4 {offsets = [1, 0], sizes = [1, 32], strides = [1, 1]} : vector<9x32xf32> to vector<1x32xf32>
    %18 = arith.truncf %7 : vector<16x32xf32> to vector<16x32xbf16>
    %cst = arith.constant dense<0.000000e+00> : vector<16x32xf32>
    %19 = tpu.matmul %18, %9, %cst {dimension_numbers = #tpu.dot_dimension_numbers<[1], [0], [0], [1], [0, 0, 1, 1], [], []>} : vector<16x32xbf16>, vector<32x32xbf16>, vector<16x32xf32> -> vector<16x32xf32>
    %20 = vector.broadcast %10 : vector<1x32xf32> to vector<16x32xf32>
    %21 = arith.addf %19, %20 : vector<16x32xf32>
    %cst_18 = arith.constant 0.353553385 : f32
    %22 = vector.broadcast %cst_18 : f32 to vector<16x32xf32>
    %23 = arith.mulf %21, %22 : vector<16x32xf32>
    %24 = vector.shape_cast %5 : vector<2x16x32xf32> to vector<32x32xf32>
    %25 = arith.truncf %24 : vector<32x32xf32> to vector<32x32xbf16>
    %cst_19 = arith.constant dense<0.000000e+00> : vector<32x64xf32>
    %26 = tpu.matmul %25, %12, %cst_19 {dimension_numbers = #tpu.dot_dimension_numbers<[1], [0], [0], [1], [0, 0, 1, 1], [], []>} : vector<32x32xbf16>, vector<32x64xbf16>, vector<32x64xf32> -> vector<32x64xf32>
    %27 = vector.broadcast %14 : vector<1x64xf32> to vector<32x64xf32>
    %28 = arith.addf %26, %27 : vector<32x64xf32>
    %29 = vector.shape_cast %23 : vector<16x32xf32> to vector<2x8x32xf32>
    %30 = vector.shape_cast %28 : vector<32x64xf32> to vector<2x16x64xf32>
    %31 = vector.extract_strided_slice %29 {offsets = [0, 0, 0], sizes = [2, 8, 8], strides = [1, 1, 1]} : vector<2x8x32xf32> to vector<2x8x8xf32>
    %32 = arith.truncf %31 : vector<2x8x8xf32> to vector<2x8x8xbf16>
    %33 = vector.extract_strided_slice %30 {offsets = [0, 0, 0], sizes = [2, 16, 8], strides = [1, 1, 1]} : vector<2x16x64xf32> to vector<2x16x8xf32>
    %34 = arith.truncf %33 : vector<2x16x8xf32> to vector<2x16x8xbf16>
    %35 = vector.extract_strided_slice %30 {offsets = [0, 0, 32], sizes = [2, 16, 8], strides = [1, 1, 1]} : vector<2x16x64xf32> to vector<2x16x8xf32>
    %36 = arith.truncf %35 : vector<2x16x8xf32> to vector<2x16x8xbf16>
    "tpu.trace_start"() <{level = 10 : i32, message = "bqd,bkd->bqk"}> : () -> ()
    %cst_20 = arith.constant dense<0.000000e+00> : vector<2x8x16xf32>
    %37 = tpu.matmul %32, %34, %cst_20 {dimension_numbers = #tpu.dot_dimension_numbers<[2], [2], [1], [1], [0, 0, 0, 1, 1, 1], [0], [0]>} : vector<2x8x8xbf16>, vector<2x16x8xbf16>, vector<2x8x16xf32> -> vector<2x8x16xf32>
    "tpu.trace_stop"() : () -> ()
    %cst_21 = arith.constant dense<0xFF800000> : vector<2x8xf32>
    %38 = vector.multi_reduction <maximumf>, %37, %cst_21 [2] : vector<2x8x16xf32> to vector<2x8xf32>
    %39 = vector.shape_cast %38 : vector<2x8xf32> to vector<2x8x1xf32>
    %40 = vector.broadcast %39 : vector<2x8x1xf32> to vector<2x8x16xf32>
    %41 = arith.subf %37, %40 : vector<2x8x16xf32>
    %42 = math.exp %41 : vector<2x8x16xf32>
    %cst_22 = arith.constant dense<0.000000e+00> : vector<2x8xf32>
    %43 = vector.multi_reduction <add>, %42, %cst_22 [2] : vector<2x8x16xf32> to vector<2x8xf32>
    %44 = vector.shape_cast %43 : vector<2x8xf32> to vector<2x8x1xf32>
    %45 = tpu.reciprocal %44 {approx = true} : vector<2x8x1xf32> -> vector<2x8x1xf32>
    %46 = vector.broadcast %45 : vector<2x8x1xf32> to vector<2x8x16xf32>
    %47 = arith.mulf %42, %46 : vector<2x8x16xf32>
    %48 = arith.truncf %47 : vector<2x8x16xf32> to vector<2x8x16xbf16>
    "tpu.trace_start"() <{level = 10 : i32, message = "bqk,bkd->bqd"}> : () -> ()
    %cst_23 = arith.constant dense<0.000000e+00> : vector<2x8x8xf32>
    %49 = tpu.matmul %48, %36, %cst_23 {dimension_numbers = #tpu.dot_dimension_numbers<[2], [1], [1], [2], [0, 0, 0, 1, 1, 2], [0], [0]>} : vector<2x8x16xbf16>, vector<2x16x8xbf16>, vector<2x8x8xf32> -> vector<2x8x8xf32>
    "tpu.trace_stop"() : () -> ()
    %50 = vector.extract_strided_slice %29 {offsets = [0, 0, 8], sizes = [2, 8, 8], strides = [1, 1, 1]} : vector<2x8x32xf32> to vector<2x8x8xf32>
    %51 = arith.truncf %50 : vector<2x8x8xf32> to vector<2x8x8xbf16>
    %52 = vector.extract_strided_slice %30 {offsets = [0, 0, 8], sizes = [2, 16, 8], strides = [1, 1, 1]} : vector<2x16x64xf32> to vector<2x16x8xf32>
    %53 = arith.truncf %52 : vector<2x16x8xf32> to vector<2x16x8xbf16>
    %54 = vector.extract_strided_slice %30 {offsets = [0, 0, 40], sizes = [2, 16, 8], strides = [1, 1, 1]} : vector<2x16x64xf32> to vector<2x16x8xf32>
    %55 = arith.truncf %54 : vector<2x16x8xf32> to vector<2x16x8xbf16>
    "tpu.trace_start"() <{level = 10 : i32, message = "bqd,bkd->bqk"}> : () -> ()
    %cst_24 = arith.constant dense<0.000000e+00> : vector<2x8x16xf32>
    %56 = tpu.matmul %51, %53, %cst_24 {dimension_numbers = #tpu.dot_dimension_numbers<[2], [2], [1], [1], [0, 0, 0, 1, 1, 1], [0], [0]>} : vector<2x8x8xbf16>, vector<2x16x8xbf16>, vector<2x8x16xf32> -> vector<2x8x16xf32>
    "tpu.trace_stop"() : () -> ()
    %cst_25 = arith.constant dense<0xFF800000> : vector<2x8xf32>
    %57 = vector.multi_reduction <maximumf>, %56, %cst_25 [2] : vector<2x8x16xf32> to vector<2x8xf32>
    %58 = vector.shape_cast %57 : vector<2x8xf32> to vector<2x8x1xf32>
    %59 = vector.broadcast %58 : vector<2x8x1xf32> to vector<2x8x16xf32>
    %60 = arith.subf %56, %59 : vector<2x8x16xf32>
    %61 = math.exp %60 : vector<2x8x16xf32>
    %cst_26 = arith.constant dense<0.000000e+00> : vector<2x8xf32>
    %62 = vector.multi_reduction <add>, %61, %cst_26 [2] : vector<2x8x16xf32> to vector<2x8xf32>
    %63 = vector.shape_cast %62 : vector<2x8xf32> to vector<2x8x1xf32>
    %64 = tpu.reciprocal %63 {approx = true} : vector<2x8x1xf32> -> vector<2x8x1xf32>
    %65 = vector.broadcast %64 : vector<2x8x1xf32> to vector<2x8x16xf32>
    %66 = arith.mulf %61, %65 : vector<2x8x16xf32>
    %67 = arith.truncf %66 : vector<2x8x16xf32> to vector<2x8x16xbf16>
    "tpu.trace_start"() <{level = 10 : i32, message = "bqk,bkd->bqd"}> : () -> ()
    %cst_27 = arith.constant dense<0.000000e+00> : vector<2x8x8xf32>
    %68 = tpu.matmul %67, %55, %cst_27 {dimension_numbers = #tpu.dot_dimension_numbers<[2], [1], [1], [2], [0, 0, 0, 1, 1, 2], [0], [0]>} : vector<2x8x16xbf16>, vector<2x16x8xbf16>, vector<2x8x8xf32> -> vector<2x8x8xf32>
    "tpu.trace_stop"() : () -> ()
    %69 = vector.extract_strided_slice %29 {offsets = [0, 0, 16], sizes = [2, 8, 8], strides = [1, 1, 1]} : vector<2x8x32xf32> to vector<2x8x8xf32>
    %70 = arith.truncf %69 : vector<2x8x8xf32> to vector<2x8x8xbf16>
    %71 = vector.extract_strided_slice %30 {offsets = [0, 0, 16], sizes = [2, 16, 8], strides = [1, 1, 1]} : vector<2x16x64xf32> to vector<2x16x8xf32>
    %72 = arith.truncf %71 : vector<2x16x8xf32> to vector<2x16x8xbf16>
    %73 = vector.extract_strided_slice %30 {offsets = [0, 0, 48], sizes = [2, 16, 8], strides = [1, 1, 1]} : vector<2x16x64xf32> to vector<2x16x8xf32>
    %74 = arith.truncf %73 : vector<2x16x8xf32> to vector<2x16x8xbf16>
    "tpu.trace_start"() <{level = 10 : i32, message = "bqd,bkd->bqk"}> : () -> ()
    %cst_28 = arith.constant dense<0.000000e+00> : vector<2x8x16xf32>
    %75 = tpu.matmul %70, %72, %cst_28 {dimension_numbers = #tpu.dot_dimension_numbers<[2], [2], [1], [1], [0, 0, 0, 1, 1, 1], [0], [0]>} : vector<2x8x8xbf16>, vector<2x16x8xbf16>, vector<2x8x16xf32> -> vector<2x8x16xf32>
    "tpu.trace_stop"() : () -> ()
    %cst_29 = arith.constant dense<0xFF800000> : vector<2x8xf32>
    %76 = vector.multi_reduction <maximumf>, %75, %cst_29 [2] : vector<2x8x16xf32> to vector<2x8xf32>
    %77 = vector.shape_cast %76 : vector<2x8xf32> to vector<2x8x1xf32>
    %78 = vector.broadcast %77 : vector<2x8x1xf32> to vector<2x8x16xf32>
    %79 = arith.subf %75, %78 : vector<2x8x16xf32>
    %80 = math.exp %79 : vector<2x8x16xf32>
    %cst_30 = arith.constant dense<0.000000e+00> : vector<2x8xf32>
    %81 = vector.multi_reduction <add>, %80, %cst_30 [2] : vector<2x8x16xf32> to vector<2x8xf32>
    %82 = vector.shape_cast %81 : vector<2x8xf32> to vector<2x8x1xf32>
    %83 = tpu.reciprocal %82 {approx = true} : vector<2x8x1xf32> -> vector<2x8x1xf32>
    %84 = vector.broadcast %83 : vector<2x8x1xf32> to vector<2x8x16xf32>
    %85 = arith.mulf %80, %84 : vector<2x8x16xf32>
    %86 = arith.truncf %85 : vector<2x8x16xf32> to vector<2x8x16xbf16>
    "tpu.trace_start"() <{level = 10 : i32, message = "bqk,bkd->bqd"}> : () -> ()
    %cst_31 = arith.constant dense<0.000000e+00> : vector<2x8x8xf32>
    %87 = tpu.matmul %86, %74, %cst_31 {dimension_numbers = #tpu.dot_dimension_numbers<[2], [1], [1], [2], [0, 0, 0, 1, 1, 2], [0], [0]>} : vector<2x8x16xbf16>, vector<2x16x8xbf16>, vector<2x8x8xf32> -> vector<2x8x8xf32>
    "tpu.trace_stop"() : () -> ()
    %88 = vector.extract_strided_slice %29 {offsets = [0, 0, 24], sizes = [2, 8, 8], strides = [1, 1, 1]} : vector<2x8x32xf32> to vector<2x8x8xf32>
    %89 = arith.truncf %88 : vector<2x8x8xf32> to vector<2x8x8xbf16>
    %90 = vector.extract_strided_slice %30 {offsets = [0, 0, 24], sizes = [2, 16, 8], strides = [1, 1, 1]} : vector<2x16x64xf32> to vector<2x16x8xf32>
    %91 = arith.truncf %90 : vector<2x16x8xf32> to vector<2x16x8xbf16>
    %92 = vector.extract_strided_slice %30 {offsets = [0, 0, 56], sizes = [2, 16, 8], strides = [1, 1, 1]} : vector<2x16x64xf32> to vector<2x16x8xf32>
    %93 = arith.truncf %92 : vector<2x16x8xf32> to vector<2x16x8xbf16>
    "tpu.trace_start"() <{level = 10 : i32, message = "bqd,bkd->bqk"}> : () -> ()
    %cst_32 = arith.constant dense<0.000000e+00> : vector<2x8x16xf32>
    %94 = tpu.matmul %89, %91, %cst_32 {dimension_numbers = #tpu.dot_dimension_numbers<[2], [2], [1], [1], [0, 0, 0, 1, 1, 1], [0], [0]>} : vector<2x8x8xbf16>, vector<2x16x8xbf16>, vector<2x8x16xf32> -> vector<2x8x16xf32>
    "tpu.trace_stop"() : () -> ()
    %cst_33 = arith.constant dense<0xFF800000> : vector<2x8xf32>
    %95 = vector.multi_reduction <maximumf>, %94, %cst_33 [2] : vector<2x8x16xf32> to vector<2x8xf32>
    %96 = vector.shape_cast %95 : vector<2x8xf32> to vector<2x8x1xf32>
    %97 = vector.broadcast %96 : vector<2x8x1xf32> to vector<2x8x16xf32>
    %98 = arith.subf %94, %97 : vector<2x8x16xf32>
    %99 = math.exp %98 : vector<2x8x16xf32>
    %cst_34 = arith.constant dense<0.000000e+00> : vector<2x8xf32>
    %100 = vector.multi_reduction <add>, %99, %cst_34 [2] : vector<2x8x16xf32> to vector<2x8xf32>
    %101 = vector.shape_cast %100 : vector<2x8xf32> to vector<2x8x1xf32>
    %102 = tpu.reciprocal %101 {approx = true} : vector<2x8x1xf32> -> vector<2x8x1xf32>
    %103 = vector.broadcast %102 : vector<2x8x1xf32> to vector<2x8x16xf32>
    %104 = arith.mulf %99, %103 : vector<2x8x16xf32>
    %105 = arith.truncf %104 : vector<2x8x16xf32> to vector<2x8x16xbf16>
    "tpu.trace_start"() <{level = 10 : i32, message = "bqk,bkd->bqd"}> : () -> ()
    %cst_35 = arith.constant dense<0.000000e+00> : vector<2x8x8xf32>
    %106 = tpu.matmul %105, %93, %cst_35 {dimension_numbers = #tpu.dot_dimension_numbers<[2], [1], [1], [2], [0, 0, 0, 1, 1, 2], [0], [0]>} : vector<2x8x16xbf16>, vector<2x16x8xbf16>, vector<2x8x8xf32> -> vector<2x8x8xf32>
    "tpu.trace_stop"() : () -> ()
    %107 = tpu.concatenate %49, %68, %87, %106 in 2 : vector<2x8x8xf32>, vector<2x8x8xf32>, vector<2x8x8xf32>, vector<2x8x8xf32> -> vector<2x8x32xf32>
    %108 = vector.shape_cast %107 : vector<2x8x32xf32> to vector<16x32xf32>
    %109 = arith.truncf %108 : vector<16x32xf32> to vector<16x32xbf16>
    %cst_36 = arith.constant dense<0.000000e+00> : vector<16x32xf32>
    %110 = tpu.matmul %109, %16, %cst_36 {dimension_numbers = #tpu.dot_dimension_numbers<[1], [0], [0], [1], [0, 0, 1, 1], [], []>} : vector<16x32xbf16>, vector<32x32xbf16>, vector<16x32xf32> -> vector<16x32xf32>
    %111 = vector.broadcast %17 : vector<1x32xf32> to vector<16x32xf32>
    %112 = arith.addf %110, %111 : vector<16x32xf32>
    %c0_37 = arith.constant 0 : index
    %c0_38 = arith.constant 0 : index
    %c0_39 = arith.constant 0 : index
    %113 = vector.load %arg4[%c0_37, %c0_38, %c0_39] : memref<2x16x32xf32, #tpu.memory_space<vmem>>, vector<2x16x32xf32>
    %c0_40 = arith.constant 0 : index
    %c0_41 = arith.constant 0 : index
    %c0_42 = arith.constant 0 : index
    %114 = vector.load %arg9[%c0_40, %c0_41, %c0_42] : memref<1x32x32xbf16, #tpu.memory_space<vmem>>, vector<1x32x32xbf16>
    %115 = vector.shape_cast %114 : vector<1x32x32xbf16> to vector<32x32xbf16>
    %116 = vector.extract_strided_slice %4 {offsets = [2, 0], sizes = [1, 32], strides = [1, 1]} : vector<9x32xf32> to vector<1x32xf32>
    %c0_43 = arith.constant 0 : index
    %c0_44 = arith.constant 0 : index
    %c0_45 = arith.constant 0 : index
    %117 = vector.load %arg10[%c0_43, %c0_44, %c0_45] : memref<1x32x64xbf16, #tpu.memory_space<vmem>>, vector<1x32x64xbf16>
    %118 = vector.shape_cast %117 : vector<1x32x64xbf16> to vector<32x64xbf16>
    %c0_46 = arith.constant 0 : index
    %c0_47 = arith.constant 0 : index
    %c0_48 = arith.constant 0 : index
    %119 = vector.load %arg12[%c0_46, %c0_47, %c0_48] : memref<1x1x64xf32, #tpu.memory_space<vmem>>, vector<1x1x64xf32>
    %120 = vector.shape_cast %119 : vector<1x1x64xf32> to vector<1x64xf32>
    %c0_49 = arith.constant 0 : index
    %c0_50 = arith.constant 0 : index
    %c0_51 = arith.constant 0 : index
    %121 = vector.load %arg11[%c0_49, %c0_50, %c0_51] : memref<1x32x32xbf16, #tpu.memory_space<vmem>>, vector<1x32x32xbf16>
    %122 = vector.shape_cast %121 : vector<1x32x32xbf16> to vector<32x32xbf16>
    %123 = vector.extract_strided_slice %4 {offsets = [3, 0], sizes = [1, 32], strides = [1, 1]} : vector<9x32xf32> to vector<1x32xf32>
    %124 = arith.truncf %112 : vector<16x32xf32> to vector<16x32xbf16>
    %cst_52 = arith.constant dense<0.000000e+00> : vector<16x32xf32>
    %125 = tpu.matmul %124, %115, %cst_52 {dimension_numbers = #tpu.dot_dimension_numbers<[1], [0], [0], [1], [0, 0, 1, 1], [], []>} : vector<16x32xbf16>, vector<32x32xbf16>, vector<16x32xf32> -> vector<16x32xf32>
    %126 = vector.broadcast %116 : vector<1x32xf32> to vector<16x32xf32>
    %127 = arith.addf %125, %126 : vector<16x32xf32>
    %cst_53 = arith.constant 0.353553385 : f32
    %128 = vector.broadcast %cst_53 : f32 to vector<16x32xf32>
    %129 = arith.mulf %127, %128 : vector<16x32xf32>
    %130 = vector.shape_cast %113 : vector<2x16x32xf32> to vector<32x32xf32>
    %131 = arith.truncf %130 : vector<32x32xf32> to vector<32x32xbf16>
    %cst_54 = arith.constant dense<0.000000e+00> : vector<32x64xf32>
    %132 = tpu.matmul %131, %118, %cst_54 {dimension_numbers = #tpu.dot_dimension_numbers<[1], [0], [0], [1], [0, 0, 1, 1], [], []>} : vector<32x32xbf16>, vector<32x64xbf16>, vector<32x64xf32> -> vector<32x64xf32>
    %133 = vector.broadcast %120 : vector<1x64xf32> to vector<32x64xf32>
    %134 = arith.addf %132, %133 : vector<32x64xf32>
    %135 = vector.shape_cast %129 : vector<16x32xf32> to vector<2x8x32xf32>
    %136 = vector.shape_cast %134 : vector<32x64xf32> to vector<2x16x64xf32>
    %137 = vector.extract_strided_slice %135 {offsets = [0, 0, 0], sizes = [2, 8, 8], strides = [1, 1, 1]} : vector<2x8x32xf32> to vector<2x8x8xf32>
    %138 = arith.truncf %137 : vector<2x8x8xf32> to vector<2x8x8xbf16>
    %139 = vector.extract_strided_slice %136 {offsets = [0, 0, 0], sizes = [2, 16, 8], strides = [1, 1, 1]} : vector<2x16x64xf32> to vector<2x16x8xf32>
    %140 = arith.truncf %139 : vector<2x16x8xf32> to vector<2x16x8xbf16>
    %141 = vector.extract_strided_slice %136 {offsets = [0, 0, 32], sizes = [2, 16, 8], strides = [1, 1, 1]} : vector<2x16x64xf32> to vector<2x16x8xf32>
    %142 = arith.truncf %141 : vector<2x16x8xf32> to vector<2x16x8xbf16>
    "tpu.trace_start"() <{level = 10 : i32, message = "bqd,bkd->bqk"}> : () -> ()
    %cst_55 = arith.constant dense<0.000000e+00> : vector<2x8x16xf32>
    %143 = tpu.matmul %138, %140, %cst_55 {dimension_numbers = #tpu.dot_dimension_numbers<[2], [2], [1], [1], [0, 0, 0, 1, 1, 1], [0], [0]>} : vector<2x8x8xbf16>, vector<2x16x8xbf16>, vector<2x8x16xf32> -> vector<2x8x16xf32>
    "tpu.trace_stop"() : () -> ()
    %cst_56 = arith.constant dense<0xFF800000> : vector<2x8xf32>
    %144 = vector.multi_reduction <maximumf>, %143, %cst_56 [2] : vector<2x8x16xf32> to vector<2x8xf32>
    %145 = vector.shape_cast %144 : vector<2x8xf32> to vector<2x8x1xf32>
    %146 = vector.broadcast %145 : vector<2x8x1xf32> to vector<2x8x16xf32>
    %147 = arith.subf %143, %146 : vector<2x8x16xf32>
    %148 = math.exp %147 : vector<2x8x16xf32>
    %cst_57 = arith.constant dense<0.000000e+00> : vector<2x8xf32>
    %149 = vector.multi_reduction <add>, %148, %cst_57 [2] : vector<2x8x16xf32> to vector<2x8xf32>
    %150 = vector.shape_cast %149 : vector<2x8xf32> to vector<2x8x1xf32>
    %151 = tpu.reciprocal %150 {approx = true} : vector<2x8x1xf32> -> vector<2x8x1xf32>
    %152 = vector.broadcast %151 : vector<2x8x1xf32> to vector<2x8x16xf32>
    %153 = arith.mulf %148, %152 : vector<2x8x16xf32>
    %154 = arith.truncf %153 : vector<2x8x16xf32> to vector<2x8x16xbf16>
    "tpu.trace_start"() <{level = 10 : i32, message = "bqk,bkd->bqd"}> : () -> ()
    %cst_58 = arith.constant dense<0.000000e+00> : vector<2x8x8xf32>
    %155 = tpu.matmul %154, %142, %cst_58 {dimension_numbers = #tpu.dot_dimension_numbers<[2], [1], [1], [2], [0, 0, 0, 1, 1, 2], [0], [0]>} : vector<2x8x16xbf16>, vector<2x16x8xbf16>, vector<2x8x8xf32> -> vector<2x8x8xf32>
    "tpu.trace_stop"() : () -> ()
    %156 = vector.extract_strided_slice %135 {offsets = [0, 0, 8], sizes = [2, 8, 8], strides = [1, 1, 1]} : vector<2x8x32xf32> to vector<2x8x8xf32>
    %157 = arith.truncf %156 : vector<2x8x8xf32> to vector<2x8x8xbf16>
    %158 = vector.extract_strided_slice %136 {offsets = [0, 0, 8], sizes = [2, 16, 8], strides = [1, 1, 1]} : vector<2x16x64xf32> to vector<2x16x8xf32>
    %159 = arith.truncf %158 : vector<2x16x8xf32> to vector<2x16x8xbf16>
    %160 = vector.extract_strided_slice %136 {offsets = [0, 0, 40], sizes = [2, 16, 8], strides = [1, 1, 1]} : vector<2x16x64xf32> to vector<2x16x8xf32>
    %161 = arith.truncf %160 : vector<2x16x8xf32> to vector<2x16x8xbf16>
    "tpu.trace_start"() <{level = 10 : i32, message = "bqd,bkd->bqk"}> : () -> ()
    %cst_59 = arith.constant dense<0.000000e+00> : vector<2x8x16xf32>
    %162 = tpu.matmul %157, %159, %cst_59 {dimension_numbers = #tpu.dot_dimension_numbers<[2], [2], [1], [1], [0, 0, 0, 1, 1, 1], [0], [0]>} : vector<2x8x8xbf16>, vector<2x16x8xbf16>, vector<2x8x16xf32> -> vector<2x8x16xf32>
    "tpu.trace_stop"() : () -> ()
    %cst_60 = arith.constant dense<0xFF800000> : vector<2x8xf32>
    %163 = vector.multi_reduction <maximumf>, %162, %cst_60 [2] : vector<2x8x16xf32> to vector<2x8xf32>
    %164 = vector.shape_cast %163 : vector<2x8xf32> to vector<2x8x1xf32>
    %165 = vector.broadcast %164 : vector<2x8x1xf32> to vector<2x8x16xf32>
    %166 = arith.subf %162, %165 : vector<2x8x16xf32>
    %167 = math.exp %166 : vector<2x8x16xf32>
    %cst_61 = arith.constant dense<0.000000e+00> : vector<2x8xf32>
    %168 = vector.multi_reduction <add>, %167, %cst_61 [2] : vector<2x8x16xf32> to vector<2x8xf32>
    %169 = vector.shape_cast %168 : vector<2x8xf32> to vector<2x8x1xf32>
    %170 = tpu.reciprocal %169 {approx = true} : vector<2x8x1xf32> -> vector<2x8x1xf32>
    %171 = vector.broadcast %170 : vector<2x8x1xf32> to vector<2x8x16xf32>
    %172 = arith.mulf %167, %171 : vector<2x8x16xf32>
    %173 = arith.truncf %172 : vector<2x8x16xf32> to vector<2x8x16xbf16>
    "tpu.trace_start"() <{level = 10 : i32, message = "bqk,bkd->bqd"}> : () -> ()
    %cst_62 = arith.constant dense<0.000000e+00> : vector<2x8x8xf32>
    %174 = tpu.matmul %173, %161, %cst_62 {dimension_numbers = #tpu.dot_dimension_numbers<[2], [1], [1], [2], [0, 0, 0, 1, 1, 2], [0], [0]>} : vector<2x8x16xbf16>, vector<2x16x8xbf16>, vector<2x8x8xf32> -> vector<2x8x8xf32>
    "tpu.trace_stop"() : () -> ()
    %175 = vector.extract_strided_slice %135 {offsets = [0, 0, 16], sizes = [2, 8, 8], strides = [1, 1, 1]} : vector<2x8x32xf32> to vector<2x8x8xf32>
    %176 = arith.truncf %175 : vector<2x8x8xf32> to vector<2x8x8xbf16>
    %177 = vector.extract_strided_slice %136 {offsets = [0, 0, 16], sizes = [2, 16, 8], strides = [1, 1, 1]} : vector<2x16x64xf32> to vector<2x16x8xf32>
    %178 = arith.truncf %177 : vector<2x16x8xf32> to vector<2x16x8xbf16>
    %179 = vector.extract_strided_slice %136 {offsets = [0, 0, 48], sizes = [2, 16, 8], strides = [1, 1, 1]} : vector<2x16x64xf32> to vector<2x16x8xf32>
    %180 = arith.truncf %179 : vector<2x16x8xf32> to vector<2x16x8xbf16>
    "tpu.trace_start"() <{level = 10 : i32, message = "bqd,bkd->bqk"}> : () -> ()
    %cst_63 = arith.constant dense<0.000000e+00> : vector<2x8x16xf32>
    %181 = tpu.matmul %176, %178, %cst_63 {dimension_numbers = #tpu.dot_dimension_numbers<[2], [2], [1], [1], [0, 0, 0, 1, 1, 1], [0], [0]>} : vector<2x8x8xbf16>, vector<2x16x8xbf16>, vector<2x8x16xf32> -> vector<2x8x16xf32>
    "tpu.trace_stop"() : () -> ()
    %cst_64 = arith.constant dense<0xFF800000> : vector<2x8xf32>
    %182 = vector.multi_reduction <maximumf>, %181, %cst_64 [2] : vector<2x8x16xf32> to vector<2x8xf32>
    %183 = vector.shape_cast %182 : vector<2x8xf32> to vector<2x8x1xf32>
    %184 = vector.broadcast %183 : vector<2x8x1xf32> to vector<2x8x16xf32>
    %185 = arith.subf %181, %184 : vector<2x8x16xf32>
    %186 = math.exp %185 : vector<2x8x16xf32>
    %cst_65 = arith.constant dense<0.000000e+00> : vector<2x8xf32>
    %187 = vector.multi_reduction <add>, %186, %cst_65 [2] : vector<2x8x16xf32> to vector<2x8xf32>
    %188 = vector.shape_cast %187 : vector<2x8xf32> to vector<2x8x1xf32>
    %189 = tpu.reciprocal %188 {approx = true} : vector<2x8x1xf32> -> vector<2x8x1xf32>
    %190 = vector.broadcast %189 : vector<2x8x1xf32> to vector<2x8x16xf32>
    %191 = arith.mulf %186, %190 : vector<2x8x16xf32>
    %192 = arith.truncf %191 : vector<2x8x16xf32> to vector<2x8x16xbf16>
    "tpu.trace_start"() <{level = 10 : i32, message = "bqk,bkd->bqd"}> : () -> ()
    %cst_66 = arith.constant dense<0.000000e+00> : vector<2x8x8xf32>
    %193 = tpu.matmul %192, %180, %cst_66 {dimension_numbers = #tpu.dot_dimension_numbers<[2], [1], [1], [2], [0, 0, 0, 1, 1, 2], [0], [0]>} : vector<2x8x16xbf16>, vector<2x16x8xbf16>, vector<2x8x8xf32> -> vector<2x8x8xf32>
    "tpu.trace_stop"() : () -> ()
    %194 = vector.extract_strided_slice %135 {offsets = [0, 0, 24], sizes = [2, 8, 8], strides = [1, 1, 1]} : vector<2x8x32xf32> to vector<2x8x8xf32>
    %195 = arith.truncf %194 : vector<2x8x8xf32> to vector<2x8x8xbf16>
    %196 = vector.extract_strided_slice %136 {offsets = [0, 0, 24], sizes = [2, 16, 8], strides = [1, 1, 1]} : vector<2x16x64xf32> to vector<2x16x8xf32>
    %197 = arith.truncf %196 : vector<2x16x8xf32> to vector<2x16x8xbf16>
    %198 = vector.extract_strided_slice %136 {offsets = [0, 0, 56], sizes = [2, 16, 8], strides = [1, 1, 1]} : vector<2x16x64xf32> to vector<2x16x8xf32>
    %199 = arith.truncf %198 : vector<2x16x8xf32> to vector<2x16x8xbf16>
    "tpu.trace_start"() <{level = 10 : i32, message = "bqd,bkd->bqk"}> : () -> ()
    %cst_67 = arith.constant dense<0.000000e+00> : vector<2x8x16xf32>
    %200 = tpu.matmul %195, %197, %cst_67 {dimension_numbers = #tpu.dot_dimension_numbers<[2], [2], [1], [1], [0, 0, 0, 1, 1, 1], [0], [0]>} : vector<2x8x8xbf16>, vector<2x16x8xbf16>, vector<2x8x16xf32> -> vector<2x8x16xf32>
    "tpu.trace_stop"() : () -> ()
    %cst_68 = arith.constant dense<0xFF800000> : vector<2x8xf32>
    %201 = vector.multi_reduction <maximumf>, %200, %cst_68 [2] : vector<2x8x16xf32> to vector<2x8xf32>
    %202 = vector.shape_cast %201 : vector<2x8xf32> to vector<2x8x1xf32>
    %203 = vector.broadcast %202 : vector<2x8x1xf32> to vector<2x8x16xf32>
    %204 = arith.subf %200, %203 : vector<2x8x16xf32>
    %205 = math.exp %204 : vector<2x8x16xf32>
    %cst_69 = arith.constant dense<0.000000e+00> : vector<2x8xf32>
    %206 = vector.multi_reduction <add>, %205, %cst_69 [2] : vector<2x8x16xf32> to vector<2x8xf32>
    %207 = vector.shape_cast %206 : vector<2x8xf32> to vector<2x8x1xf32>
    %208 = tpu.reciprocal %207 {approx = true} : vector<2x8x1xf32> -> vector<2x8x1xf32>
    %209 = vector.broadcast %208 : vector<2x8x1xf32> to vector<2x8x16xf32>
    %210 = arith.mulf %205, %209 : vector<2x8x16xf32>
    %211 = arith.truncf %210 : vector<2x8x16xf32> to vector<2x8x16xbf16>
    "tpu.trace_start"() <{level = 10 : i32, message = "bqk,bkd->bqd"}> : () -> ()
    %cst_70 = arith.constant dense<0.000000e+00> : vector<2x8x8xf32>
    %212 = tpu.matmul %211, %199, %cst_70 {dimension_numbers = #tpu.dot_dimension_numbers<[2], [1], [1], [2], [0, 0, 0, 1, 1, 2], [0], [0]>} : vector<2x8x16xbf16>, vector<2x16x8xbf16>, vector<2x8x8xf32> -> vector<2x8x8xf32>
    "tpu.trace_stop"() : () -> ()
    %213 = tpu.concatenate %155, %174, %193, %212 in 2 : vector<2x8x8xf32>, vector<2x8x8xf32>, vector<2x8x8xf32>, vector<2x8x8xf32> -> vector<2x8x32xf32>
    %214 = vector.shape_cast %213 : vector<2x8x32xf32> to vector<16x32xf32>
    %215 = arith.truncf %214 : vector<16x32xf32> to vector<16x32xbf16>
    %cst_71 = arith.constant dense<0.000000e+00> : vector<16x32xf32>
    %216 = tpu.matmul %215, %122, %cst_71 {dimension_numbers = #tpu.dot_dimension_numbers<[1], [0], [0], [1], [0, 0, 1, 1], [], []>} : vector<16x32xbf16>, vector<32x32xbf16>, vector<16x32xf32> -> vector<16x32xf32>
    %217 = vector.broadcast %123 : vector<1x32xf32> to vector<16x32xf32>
    %218 = arith.addf %216, %217 : vector<16x32xf32>
    %219 = vector.extract_strided_slice %4 {offsets = [4, 0], sizes = [1, 32], strides = [1, 1]} : vector<9x32xf32> to vector<1x32xf32>
    %220 = vector.extract_strided_slice %4 {offsets = [5, 0], sizes = [1, 32], strides = [1, 1]} : vector<9x32xf32> to vector<1x32xf32>
    %cst_72 = arith.constant dense<0.000000e+00> : vector<16xf32>
    %221 = vector.multi_reduction <add>, %218, %cst_72 [1] : vector<16x32xf32> to vector<16xf32>
    %222 = vector.shape_cast %221 : vector<16xf32> to vector<16x1xf32>
    %cst_73 = arith.constant 3.200000e+01 : f32
    %223 = vector.broadcast %cst_73 : f32 to vector<16x1xf32>
    %224 = arith.divf %222, %223 : vector<16x1xf32>
    %225 = vector.broadcast %224 : vector<16x1xf32> to vector<16x32xf32>
    %226 = arith.subf %218, %225 : vector<16x32xf32>
    %227 = arith.mulf %226, %226 : vector<16x32xf32>
    %cst_74 = arith.constant dense<0.000000e+00> : vector<16xf32>
    %228 = vector.multi_reduction <add>, %227, %cst_74 [1] : vector<16x32xf32> to vector<16xf32>
    %229 = vector.shape_cast %228 : vector<16xf32> to vector<16x1xf32>
    %cst_75 = arith.constant 3.200000e+01 : f32
    %230 = vector.broadcast %cst_75 : f32 to vector<16x1xf32>
    %231 = arith.divf %229, %230 : vector<16x1xf32>
    %232 = vector.broadcast %224 : vector<16x1xf32> to vector<16x32xf32>
    %233 = arith.subf %218, %232 : vector<16x32xf32>
    %cst_76 = arith.constant 9.99999974E-6 : f32
    %234 = vector.broadcast %cst_76 : f32 to vector<16x1xf32>
    %235 = arith.addf %231, %234 : vector<16x1xf32>
    %236 = math.rsqrt %235 : vector<16x1xf32>
    %237 = vector.broadcast %236 : vector<16x1xf32> to vector<16x32xf32>
    %238 = arith.mulf %233, %237 : vector<16x32xf32>
    %239 = vector.broadcast %219 : vector<1x32xf32> to vector<16x32xf32>
    %240 = arith.mulf %238, %239 : vector<16x32xf32>
    %241 = vector.broadcast %220 : vector<1x32xf32> to vector<16x32xf32>
    %242 = arith.addf %240, %241 : vector<16x32xf32>
    %243 = arith.truncf %242 : vector<16x32xf32> to vector<16x32xbf16>
    %c0_77 = arith.constant 0 : index
    %c0_78 = arith.constant 0 : index
    %c0_79 = arith.constant 0 : index
    %244 = vector.load %arg13[%c0_77, %c0_78, %c0_79] : memref<1x32x128xbf16, #tpu.memory_space<vmem>>, vector<1x32x128xbf16>
    %245 = vector.shape_cast %244 : vector<1x32x128xbf16> to vector<32x128xbf16>
    %cst_80 = arith.constant dense<0.000000e+00> : vector<16x128xf32>
    %246 = tpu.matmul %243, %245, %cst_80 {dimension_numbers = #tpu.dot_dimension_numbers<[1], [0], [0], [1], [0, 0, 1, 1], [], []>} : vector<16x32xbf16>, vector<32x128xbf16>, vector<16x128xf32> -> vector<16x128xf32>
    %c0_81 = arith.constant 0 : index
    %c0_82 = arith.constant 0 : index
    %c0_83 = arith.constant 0 : index
    %247 = vector.load %arg14[%c0_81, %c0_82, %c0_83] : memref<1x1x128xf32, #tpu.memory_space<vmem>>, vector<1x1x128xf32>
    %248 = vector.shape_cast %247 : vector<1x1x128xf32> to vector<1x128xf32>
    %249 = vector.broadcast %248 : vector<1x128xf32> to vector<16x128xf32>
    %250 = arith.addf %246, %249 : vector<16x128xf32>
    %cst_84 = arith.constant 5.000000e-01 : f32
    %251 = vector.broadcast %cst_84 : f32 to vector<16x128xf32>
    %252 = arith.mulf %251, %250 : vector<16x128xf32>
    %cst_85 = arith.constant 4.471500e-02 : f32
    %253 = vector.broadcast %cst_85 : f32 to vector<16x128xf32>
    %254 = arith.mulf %253, %250 : vector<16x128xf32>
    %255 = arith.mulf %254, %250 : vector<16x128xf32>
    %256 = arith.mulf %255, %250 : vector<16x128xf32>
    %257 = arith.addf %250, %256 : vector<16x128xf32>
    %cst_86 = arith.constant 0.797884583 : f32
    %258 = vector.broadcast %cst_86 : f32 to vector<16x128xf32>
    %259 = arith.mulf %258, %257 : vector<16x128xf32>
    %260 = math.tanh %259 : vector<16x128xf32>
    %cst_87 = arith.constant 1.000000e+00 : f32
    %261 = vector.broadcast %cst_87 : f32 to vector<16x128xf32>
    %262 = arith.addf %261, %260 : vector<16x128xf32>
    %263 = arith.mulf %252, %262 : vector<16x128xf32>
    %264 = arith.truncf %263 : vector<16x128xf32> to vector<16x128xbf16>
    %c0_88 = arith.constant 0 : index
    %c0_89 = arith.constant 0 : index
    %c0_90 = arith.constant 0 : index
    %265 = vector.load %arg15[%c0_88, %c0_89, %c0_90] : memref<1x128x32xbf16, #tpu.memory_space<vmem>>, vector<1x128x32xbf16>
    %266 = vector.shape_cast %265 : vector<1x128x32xbf16> to vector<128x32xbf16>
    %cst_91 = arith.constant dense<0.000000e+00> : vector<16x32xf32>
    %267 = tpu.matmul %264, %266, %cst_91 {dimension_numbers = #tpu.dot_dimension_numbers<[1], [0], [0], [1], [0, 0, 1, 1], [], []>} : vector<16x128xbf16>, vector<128x32xbf16>, vector<16x32xf32> -> vector<16x32xf32>
    %268 = vector.extract_strided_slice %4 {offsets = [6, 0], sizes = [1, 32], strides = [1, 1]} : vector<9x32xf32> to vector<1x32xf32>
    %269 = vector.broadcast %268 : vector<1x32xf32> to vector<16x32xf32>
    %270 = arith.addf %267, %269 : vector<16x32xf32>
    %271 = vector.extract_strided_slice %4 {offsets = [7, 0], sizes = [1, 32], strides = [1, 1]} : vector<9x32xf32> to vector<1x32xf32>
    %272 = vector.extract_strided_slice %4 {offsets = [8, 0], sizes = [1, 32], strides = [1, 1]} : vector<9x32xf32> to vector<1x32xf32>
    %cst_92 = arith.constant dense<0.000000e+00> : vector<16xf32>
    %273 = vector.multi_reduction <add>, %270, %cst_92 [1] : vector<16x32xf32> to vector<16xf32>
    %274 = vector.shape_cast %273 : vector<16xf32> to vector<16x1xf32>
    %cst_93 = arith.constant 3.200000e+01 : f32
    %275 = vector.broadcast %cst_93 : f32 to vector<16x1xf32>
    %276 = arith.divf %274, %275 : vector<16x1xf32>
    %277 = vector.broadcast %276 : vector<16x1xf32> to vector<16x32xf32>
    %278 = arith.subf %270, %277 : vector<16x32xf32>
    %279 = arith.mulf %278, %278 : vector<16x32xf32>
    %cst_94 = arith.constant dense<0.000000e+00> : vector<16xf32>
    %280 = vector.multi_reduction <add>, %279, %cst_94 [1] : vector<16x32xf32> to vector<16xf32>
    %281 = vector.shape_cast %280 : vector<16xf32> to vector<16x1xf32>
    %cst_95 = arith.constant 3.200000e+01 : f32
    %282 = vector.broadcast %cst_95 : f32 to vector<16x1xf32>
    %283 = arith.divf %281, %282 : vector<16x1xf32>
    %284 = vector.broadcast %276 : vector<16x1xf32> to vector<16x32xf32>
    %285 = arith.subf %270, %284 : vector<16x32xf32>
    %cst_96 = arith.constant 9.99999974E-6 : f32
    %286 = vector.broadcast %cst_96 : f32 to vector<16x1xf32>
    %287 = arith.addf %283, %286 : vector<16x1xf32>
    %288 = math.rsqrt %287 : vector<16x1xf32>
    %289 = vector.broadcast %288 : vector<16x1xf32> to vector<16x32xf32>
    %290 = arith.mulf %285, %289 : vector<16x32xf32>
    %291 = vector.broadcast %271 : vector<1x32xf32> to vector<16x32xf32>
    %292 = arith.mulf %290, %291 : vector<16x32xf32>
    %293 = vector.broadcast %272 : vector<1x32xf32> to vector<16x32xf32>
    %294 = arith.addf %292, %293 : vector<16x32xf32>
    %295 = vector.shape_cast %294 : vector<16x32xf32> to vector<2x8x32xf32>
    %c0_97 = arith.constant 0 : index
    %c0_98 = arith.constant 0 : index
    %c0_99 = arith.constant 0 : index
    %296 = vector.load %arg20[%c0_97, %c0_98, %c0_99] : memref<2x16x32xf32, #tpu.memory_space<vmem>>, vector<2x8x32xf32>
    tpu.vector_store %arg20[%c0_97, %c0_98, %c0_99], %295 {strides = array<i32>} : memref<2x16x32xf32, #tpu.memory_space<vmem>>, vector<2x8x32xf32>,
    %c1_i32 = arith.constant 1 : i32
    %297 = arith.cmpi eq, %arg1, %c1_i32 : i32
    %298 = arith.extui %297 : i1 to i32
    %c0_i32_100 = arith.constant 0 : i32
    %299 = arith.cmpi ne, %298, %c0_i32_100 : i32
    scf.if %299 {
      %300 = arith.truncf %294 : vector<16x32xf32> to vector<16x32xbf16>
      %c0_101 = arith.constant 0 : index
      %c0_102 = arith.constant 0 : index
      %301 = vector.load %arg17[%c0_101, %c0_102] : memref<32x32xbf16, #tpu.memory_space<vmem>>, vector<32x32xbf16>
      %cst_103 = arith.constant dense<0.000000e+00> : vector<16x32xf32>
      %302 = tpu.matmul %300, %301, %cst_103 {dimension_numbers = #tpu.dot_dimension_numbers<[1], [0], [0], [1], [0, 0, 1, 1], [], []>} : vector<16x32xbf16>, vector<32x32xbf16>, vector<16x32xf32> -> vector<16x32xf32>
      %c0_104 = arith.constant 0 : index
      %c0_105 = arith.constant 0 : index
      %303 = vector.load %arg18[%c0_104, %c0_105] : memref<1x32xf32, #tpu.memory_space<vmem>>, vector<1x32xf32>
      %304 = vector.broadcast %303 : vector<1x32xf32> to vector<16x32xf32>
      %305 = arith.addf %302, %304 : vector<16x32xf32>
      %306 = vector.shape_cast %305 : vector<16x32xf32> to vector<2x8x32xf32>
      %c0_106 = arith.constant 0 : index
      %c0_107 = arith.constant 0 : index
      %c0_108 = arith.constant 0 : index
      %307 = vector.load %arg19[%c0_106, %c0_107, %c0_108] : memref<2x8x32xf32, #tpu.memory_space<vmem>>, vector<2x8x32xf32>
      tpu.vector_store %arg19[%c0_106, %c0_107, %c0_108], %306 {strides = array<i32>} : memref<2x8x32xf32, #tpu.memory_space<vmem>>, vector<2x8x32xf32>,
    } else {
    }
    return
  }
  func.func @transform_0(%arg0: i32, %arg1: i32) -> (i32, i32, i32) {
    %c0_i32 = arith.constant 0 : i32
    %c0_i32_0 = arith.constant 0 : i32
    %c0_i32_1 = arith.constant 0 : i32
    %c0_i32_2 = arith.constant 0 : i32
    return %c0_i32, %c0_i32_0, %c0_i32_1 : i32, i32, i32
  }
  func.func @transform_1(%arg0: i32, %arg1: i32) -> (i32, i32, i32) {
    %c0_i32 = arith.constant 0 : i32
    %c0_i32_0 = arith.constant 0 : i32
    %c0_i32_1 = arith.constant 0 : i32
    return %arg0, %c0_i32, %c0_i32_0 : i32, i32, i32
  }
  func.func @transform_2(%arg0: i32, %arg1: i32) -> (i32, i32, i32) {
    %c0_i32 = arith.constant 0 : i32
    %c0_i32_0 = arith.constant 0 : i32
    %c0_i32_1 = arith.constant 0 : i32
    return %arg0, %c0_i32, %c0_i32_0 : i32, i32, i32
  }
  func.func @transform_3(%arg0: i32, %arg1: i32) -> (i32, i32, i32) {
    %c0_i32 = arith.constant 0 : i32
    %c0_i32_0 = arith.constant 0 : i32
    %c0_i32_1 = arith.constant 0 : i32
    return %arg1, %c0_i32, %c0_i32_0 : i32, i32, i32
  }
  func.func @transform_4(%arg0: i32, %arg1: i32) -> (i32, i32, i32) {
    %c0_i32 = arith.constant 0 : i32
    %c0_i32_0 = arith.constant 0 : i32
    %c0_i32_1 = arith.constant 0 : i32
    return %arg1, %c0_i32, %c0_i32_0 : i32, i32, i32
  }
  func.func @transform_5(%arg0: i32, %arg1: i32) -> (i32, i32, i32) {
    %c0_i32 = arith.constant 0 : i32
    %c0_i32_0 = arith.constant 0 : i32
    %c0_i32_1 = arith.constant 0 : i32
    return %arg1, %c0_i32, %c0_i32_0 : i32, i32, i32
  }
  func.func @transform_6(%arg0: i32, %arg1: i32) -> (i32, i32, i32) {
    %c0_i32 = arith.constant 0 : i32
    %c0_i32_0 = arith.constant 0 : i32
    %c0_i32_1 = arith.constant 0 : i32
    return %arg1, %c0_i32, %c0_i32_0 : i32, i32, i32
  }
  func.func @transform_7(%arg0: i32, %arg1: i32) -> (i32, i32, i32) {
    %c0_i32 = arith.constant 0 : i32
    %c0_i32_0 = arith.constant 0 : i32
    %c0_i32_1 = arith.constant 0 : i32
    return %arg1, %c0_i32, %c0_i32_0 : i32, i32, i32
  }
  func.func @transform_8(%arg0: i32, %arg1: i32) -> (i32, i32, i32) {
    %c0_i32 = arith.constant 0 : i32
    %c0_i32_0 = arith.constant 0 : i32
    %c0_i32_1 = arith.constant 0 : i32
    return %arg1, %c0_i32, %c0_i32_0 : i32, i32, i32
  }
  func.func @transform_9(%arg0: i32, %arg1: i32) -> (i32, i32, i32) {
    %c0_i32 = arith.constant 0 : i32
    %c0_i32_0 = arith.constant 0 : i32
    %c0_i32_1 = arith.constant 0 : i32
    return %arg1, %c0_i32, %c0_i32_0 : i32, i32, i32
  }
  func.func @transform_10(%arg0: i32, %arg1: i32) -> (i32, i32, i32) {
    %c0_i32 = arith.constant 0 : i32
    %c0_i32_0 = arith.constant 0 : i32
    %c0_i32_1 = arith.constant 0 : i32
    return %arg1, %c0_i32, %c0_i32_0 : i32, i32, i32
  }
  func.func @transform_11(%arg0: i32, %arg1: i32) -> (i32, i32, i32) {
    %c0_i32 = arith.constant 0 : i32
    %c0_i32_0 = arith.constant 0 : i32
    %c0_i32_1 = arith.constant 0 : i32
    return %arg1, %c0_i32, %c0_i32_0 : i32, i32, i32
  }
  func.func @transform_12(%arg0: i32, %arg1: i32) -> (i32, i32, i32) {
    %c0_i32 = arith.constant 0 : i32
    %c0_i32_0 = arith.constant 0 : i32
    %c0_i32_1 = arith.constant 0 : i32
    return %arg1, %c0_i32, %c0_i32_0 : i32, i32, i32
  }
  func.func @transform_13(%arg0: i32, %arg1: i32) -> (i32, i32, i32) {
    %c0_i32 = arith.constant 0 : i32
    %c0_i32_0 = arith.constant 0 : i32
    %c0_i32_1 = arith.constant 0 : i32
    return %arg1, %c0_i32, %c0_i32_0 : i32, i32, i32
  }
  func.func @transform_14(%arg0: i32, %arg1: i32) -> (i32, i32, i32) {
    %c0_i32 = arith.constant 0 : i32
    %c0_i32_0 = arith.constant 0 : i32
    %c0_i32_1 = arith.constant 0 : i32
    return %arg1, %c0_i32, %c0_i32_0 : i32, i32, i32
  }
  func.func @transform_15(%arg0: i32, %arg1: i32) -> (i32, i32) {
    %c0_i32 = arith.constant 0 : i32
    %c0_i32_0 = arith.constant 0 : i32
    %c0_i32_1 = arith.constant 0 : i32
    return %c0_i32, %c0_i32_0 : i32, i32
  }
  func.func @transform_16(%arg0: i32, %arg1: i32) -> (i32, i32) {
    %c0_i32 = arith.constant 0 : i32
    %c0_i32_0 = arith.constant 0 : i32
    %c0_i32_1 = arith.constant 0 : i32
    return %c0_i32, %c0_i32_0 : i32, i32
  }
  func.func @transform_17(%arg0: i32, %arg1: i32) -> (i32, i32, i32) {
    %c0_i32 = arith.constant 0 : i32
    %c0_i32_0 = arith.constant 0 : i32
    %c0_i32_1 = arith.constant 0 : i32
    return %arg0, %c0_i32, %c0_i32_0 : i32, i32, i32
  }
}

</mosaic_0001>

<llo_original>
// kernel: tpu_custom_call.1
$region0: #{tpu_custom_call.1}
  #allocation0 [shape = 'u32[]', space=smem, size = 0x4, offset = 0x4, fixed_abs, tag = 'smem constant byte address 0x4 - core index']
  #allocation1 [shape = 'u32[72,128]{1,0:T(1,128)}', space=vmem, size = 0x9000, scoped, tag = 'internal scratch']
  #allocation2 [shape = 'f32[2,16,32]{2,1,0:T(8,128)}', space=vmem, size = 0x4000, scoped, tag = 'scratch operand']
  %s0 = inlined_call_operand.hbm [shape: f32[1,8,32], index: 0, kind: input, shape index: {}]
  %s1 = inlined_call_operand.vmem [shape: f32[2,8,32], index: 1, kind: input, shape index: {}]
  %s2 = inlined_call_operand.vmem [shape: f32[2,16,32], index: 2, kind: input, shape index: {}]
  %s3 = inlined_call_operand.vmem [shape: bf16[2,32,32], index: 3, kind: input, shape index: {}]
  %s4 = inlined_call_operand.vmem [shape: bf16[2,32,64], index: 4, kind: input, shape index: {}]
  %s5 = inlined_call_operand.vmem [shape: bf16[2,32,32], index: 5, kind: input, shape index: {}]
  %s6 = inlined_call_operand.hbm [shape: f32[2,1,64], index: 6, kind: input, shape index: {}]
  %s7 = inlined_call_operand.vmem [shape: bf16[2,32,32], index: 7, kind: input, shape index: {}]
  %s8 = inlined_call_operand.hbm [shape: bf16[2,32,64], index: 8, kind: input, shape index: {}]
  %s9 = inlined_call_operand.hbm [shape: bf16[2,32,32], index: 9, kind: input, shape index: {}]
  %s10 = inlined_call_operand.hbm [shape: f32[2,1,64], index: 10, kind: input, shape index: {}]
  %s11 = inlined_call_operand.hbm [shape: bf16[2,32,128], index: 11, kind: input, shape index: {}]
  %s12 = inlined_call_operand.hbm [shape: f32[2,1,128], index: 12, kind: input, shape index: {}]
  %s13 = inlined_call_operand.vmem [shape: bf16[2,128,32], index: 13, kind: input, shape index: {}]
  %s14 = inlined_call_operand.vmem [shape: f32[2,9,32], index: 14, kind: input, shape index: {}]
  %s15 = inlined_call_operand.vmem [shape: bf16[32,32], index: 15, kind: input, shape index: {}]
  %s16 = inlined_call_operand.hbm [shape: f32[1,32], index: 16, kind: input, shape index: {}]
  %s17 = inlined_call_operand.hbm [shape: f32[2,8,32], index: 17, kind: output, shape index: {}]
  %s18 = sld [smem:[#allocation0]]
  $region141: #{tpu_custom_call.1} parent=0
    _
  %s20 = ssub.s32 1, %s18
  %s21 = scalar_select 0, %s20, %s18
  $region1: #{tpu_custom_call.1} parent=0
    #allocation3 [shape = 'u8[4096]{0}', space=vmem, size = 0x1000, scoped, tag = 'input window, operand 0, single buffered']
    #allocation4 [shape = 's32[2]{0}', space=sflag, size = 0x8, scoped, tag = 'scoped memory for tpu_custom_call.1']
    #allocation5 [shape = 's32[2]{0}', space=sflag, size = 0x8, scoped, tag = 'scoped memory for tpu_custom_call.1']
    #allocation6 [shape = 'u8[1024]{0}', space=vmem, size = 0x400, scoped, tag = 'input window, operand 6']
    #allocation7 [shape = 's32[2]{0}', space=sflag, size = 0x8, scoped, tag = 'scoped memory for tpu_custom_call.1']
    #allocation8 [shape = 'u8[16384]{0}', space=vmem, size = 0x4000, scoped, tag = 'input window, operand 8']
    #allocation9 [shape = 'u8[16384]{0}', space=vmem, size = 0x4000, scoped, tag = 'input window, operand 9']
    #allocation10 [shape = 's32[2]{0}', space=sflag, size = 0x8, scoped, tag = 'scoped memory for tpu_custom_call.1']
    #allocation11 [shape = 'u8[1024]{0}', space=vmem, size = 0x400, scoped, tag = 'input window, operand 10']
    #allocation12 [shape = 'u8[16384]{0}', space=vmem, size = 0x4000, scoped, tag = 'input window, operand 11']
    #allocation13 [shape = 's32[2]{0}', space=sflag, size = 0x8, scoped, tag = 'scoped memory for tpu_custom_call.1']
    #allocation14 [shape = 'u8[1024]{0}', space=vmem, size = 0x400, scoped, tag = 'input window, operand 12']
    #allocation15 [shape = 'u8[512]{0}', space=vmem, size = 0x400, scoped, tag = 'input window, operand 16, single buffered']
    #allocation16 [shape = 's32[1]{0}', space=sflag, size = 0x4, scoped, tag = 'scoped memory for tpu_custom_call.1']
    #allocation17 [shape = 'u8[8192]{0}', space=vmem, size = 0x2000, scoped, tag = 'output window, operand 0, single buffered']
    %22 = vsyncpa [#allocation4], 0
    %23 = vsyncpa [#allocation7], 0
    %s24 = scalar_lea.sflag [#allocation7], 1
    %25 = vsyncpa %s24, 0
    %26 = vsyncpa [#allocation10], 0
    %s27 = scalar_lea.sflag [#allocation10], 1
    %28 = vsyncpa %s27, 0
    %29 = vsyncpa [#allocation13], 0
    %s30 = scalar_lea.sflag [#allocation13], 1
    %31 = vsyncpa %s30, 0
    %32 = vsyncpa [#allocation16], 0
    %33 = vsyncpa [#allocation5], 0
    loop: start=0, step=1, limit=4
    $region2: #{tpu_custom_call.1} parent=1 // loop_pre_header
      _
    $region3: #{tpu_custom_call.1} parent=1 // loop_header
      %s35 = sphi 0, %s39
      %p36 = scmp.ge.s32.totalorder %s35, 4
      %s42 = sphi 0, %s54
      %s43 = sphi 0, %s50
      %s44 = sphi 0, %s42
      %s45 = sphi 0, %s43
      %s46 = sphi 0, %s44
      %s47 = sphi 0, %s45
      %s55 = sphi 0, %s55
      %s57 = sphi 0, %s55
      %s58 = sphi 0, %s57
      %s72 = sphi 0, %s58
      %s78 = sphi 0, %s80
      %s81 = sphi 0, %s78
      %s82 = sphi 0, %s81
      %s98 = sphi 0, %s82
      %s104 = sphi 0, %s106
      %s107 = sphi 0, %s104
      %s108 = sphi 0, %s107
      %s124 = sphi 0, %s108
      %s130 = sphi 0, %s132
      %s133 = sphi 0, %s130
      %s134 = sphi 0, %s133
      %s150 = sphi 0, %s134
      %s156 = sphi 0, %s158
      %s159 = sphi 0, %s156
      %s160 = sphi 0, %s159
      %s176 = sphi 0, %s160
      %s182 = sphi 0, %s184
      %s185 = sphi 0, %s182
      %s186 = sphi 0, %s185
      %s202 = sphi 0, %s186
      %s208 = sphi 0, %s210
      %s211 = sphi 0, %s208
      %s212 = sphi 0, %s211
      %s228 = sphi 0, %s212
      %s234 = sphi 0, %s236
      %s237 = sphi 0, %s234
      %s238 = sphi 0, %s237
      %s254 = sphi 0, %s238
      %s260 = sphi 0, %s262
      %s263 = sphi 0, %s260
      %s264 = sphi 0, %s263
      %s280 = sphi 0, %s264
      %s286 = sphi 0, %s288
      %s289 = sphi 0, %s286
      %s290 = sphi 0, %s289
      %s306 = sphi 0, %s290
      %s312 = sphi 0, %s314
      %s315 = sphi 0, %s312
      %s316 = sphi 0, %s315
      %s332 = sphi 0, %s316
      %s338 = sphi 0, %s340
      %s341 = sphi 0, %s338
      %s342 = sphi 0, %s341
      %s358 = sphi 0, %s342
      %s364 = sphi 0, %s366
      %s367 = sphi 0, %s364
      %s368 = sphi 0, %s367
      %s384 = sphi 0, %s368
      %s390 = sphi 0, %s392
      %s393 = sphi 0, %s390
      %s394 = sphi 0, %s393
      %s410 = sphi 0, %s394
      %s416 = sphi 0, %s418
      %s419 = sphi 0, %s416
      %s420 = sphi 0, %s419
      %s436 = sphi 0, %s420
      %s440 = sphi 0, %s440
      %s442 = sphi 0, %s440
      %s443 = sphi 0, %s442
      %s457 = sphi 0, %s443
      %s461 = sphi 0, %s461
      %s463 = sphi 0, %s461
      %s464 = sphi 0, %s463
      %s478 = sphi 0, %s464
      %s484 = sphi 0, %s486
      %s487 = sphi 0, %s484
      %s488 = sphi 0, %s487
      %s504 = sphi 0, %s488
    $region4: #{tpu_custom_call.1} parent=1 // loop_header_branch
      %38 = sbr.rel (%p36) target = $region8
    $region5: #{tpu_custom_call.1} parent=1 // loop_body
      %s40 = ssub.s32 %s35, 1
      %s41 = ssub.s32 %s35, 2
      %s48 = sadd.s32 1, %s43
      %p49 = scmp.ge.s32.totalorder %s48, 2
      %s50 = scalar_select %p49, 0, %s48
      %s51 = sadd.s32 1, %s42
      %s52 = scalar_select %p49, %s51, %s42
      %p53 = scmp.ge.s32.totalorder %s52, 1
      %s54 = scalar_select %p53, 0, %s52
      %s56 = sadd.s32 %s55, 1
      %p59 = scmp.eq.s32.totalorder %s35, 1
      %p60 = scmp.ne.s32.totalorder %s55, %s57
      %p61 = scmp.eq.s32.totalorder %s35, 0
      %p62 = por %p60, %p61
      %p63 = scmp.ne.s32.totalorder %s55, %s57
      %p64 = scmp.eq.s32.totalorder %s40, 1
      %p65 = por %p63, %p64
      %p66 = scmp.ne.s32.totalorder %s57, %s58
      %p67 = scmp.eq.s32.totalorder %s40, 0
      %p68 = por %p66, %p67
      %p69 = scmp.ne.s32.totalorder %s57, %s58
      %p70 = scmp.eq.s32.totalorder %s41, 1
      %p71 = por %p69, %p70
      %p73 = scmp.ne.s32.totalorder %s58, %s72
      %p74 = scmp.eq.s32.totalorder %s41, 0
      %p75 = por %p73, %p74
      %s76 = ssub.s32 %s42, %s54
      %p77 = scmp.eq.s32.totalorder %s76, 0
      %s79 = sadd.s32 %s78, 1
      %s80 = scalar_select %p77, %s78, %s79
      %p83 = pneg %p77
      %p84 = scmp.eq.s32.totalorder %s35, 1
      %p85 = por %p83, %p84
      %p86 = scmp.ne.s32.totalorder %s78, %s81
      %p87 = scmp.eq.s32.totalorder %s35, 0
      %p88 = por %p86, %p87
      %p89 = scmp.ne.s32.totalorder %s78, %s81
      %p90 = scmp.eq.s32.totalorder %s40, 1
      %p91 = por %p89, %p90
      %p92 = scmp.ne.s32.totalorder %s81, %s82
      %p93 = scmp.eq.s32.totalorder %s40, 0
      %p94 = por %p92, %p93
      %p95 = scmp.ne.s32.totalorder %s81, %s82
      %p96 = scmp.eq.s32.totalorder %s41, 1
      %p97 = por %p95, %p96
      %p99 = scmp.ne.s32.totalorder %s82, %s98
      %p100 = scmp.eq.s32.totalorder %s41, 0
      %p101 = por %p99, %p100
      %s102 = ssub.s32 %s42, %s54
      %p103 = scmp.eq.s32.totalorder %s102, 0
      %s105 = sadd.s32 %s104, 1
      %s106 = scalar_select %p103, %s104, %s105
      %p109 = pneg %p103
      %p110 = scmp.eq.s32.totalorder %s35, 1
      %p111 = por %p109, %p110
      %p112 = scmp.ne.s32.totalorder %s104, %s107
      %p113 = scmp.eq.s32.totalorder %s35, 0
      %p114 = por %p112, %p113
      %p115 = scmp.ne.s32.totalorder %s104, %s107
      %p116 = scmp.eq.s32.totalorder %s40, 1
      %p117 = por %p115, %p116
      %p118 = scmp.ne.s32.totalorder %s107, %s108
      %p119 = scmp.eq.s32.totalorder %s40, 0
      %p120 = por %p118, %p119
      %p121 = scmp.ne.s32.totalorder %s107, %s108
      %p122 = scmp.eq.s32.totalorder %s41, 1
      %p123 = por %p121, %p122
      %p125 = scmp.ne.s32.totalorder %s108, %s124
      %p126 = scmp.eq.s32.totalorder %s41, 0
      %p127 = por %p125, %p126
      %s128 = ssub.s32 %s43, %s50
      %p129 = scmp.eq.s32.totalorder %s128, 0
      %s131 = sadd.s32 %s130, 1
      %s132 = scalar_select %p129, %s130, %s131
      %p135 = pneg %p129
      %p136 = scmp.eq.s32.totalorder %s35, 1
      %p137 = por %p135, %p136
      %p138 = scmp.ne.s32.totalorder %s130, %s133
      %p139 = scmp.eq.s32.totalorder %s35, 0
      %p140 = por %p138, %p139
      %p141 = scmp.ne.s32.totalorder %s130, %s133
      %p142 = scmp.eq.s32.totalorder %s40, 1
      %p143 = por %p141, %p142
      %p144 = scmp.ne.s32.totalorder %s133, %s134
      %p145 = scmp.eq.s32.totalorder %s40, 0
      %p146 = por %p144, %p145
      %p147 = scmp.ne.s32.totalorder %s133, %s134
      %p148 = scmp.eq.s32.totalorder %s41, 1
      %p149 = por %p147, %p148
      %p151 = scmp.ne.s32.totalorder %s134, %s150
      %p152 = scmp.eq.s32.totalorder %s41, 0
      %p153 = por %p151, %p152
      %s154 = ssub.s32 %s43, %s50
      %p155 = scmp.eq.s32.totalorder %s154, 0
      %s157 = sadd.s32 %s156, 1
      %s158 = scalar_select %p155, %s156, %s157
      %p161 = pneg %p155
      %p162 = scmp.eq.s32.totalorder %s35, 1
      %p163 = por %p161, %p162
      %p164 = scmp.ne.s32.totalorder %s156, %s159
      %p165 = scmp.eq.s32.totalorder %s35, 0
      %p166 = por %p164, %p165
      %p167 = scmp.ne.s32.totalorder %s156, %s159
      %p168 = scmp.eq.s32.totalorder %s40, 1
      %p169 = por %p167, %p168
      %p170 = scmp.ne.s32.totalorder %s159, %s160
      %p171 = scmp.eq.s32.totalorder %s40, 0
      %p172 = por %p170, %p171
      %p173 = scmp.ne.s32.totalorder %s159, %s160
      %p174 = scmp.eq.s32.totalorder %s41, 1
      %p175 = por %p173, %p174
      %p177 = scmp.ne.s32.totalorder %s160, %s176
      %p178 = scmp.eq.s32.totalorder %s41, 0
      %p179 = por %p177, %p178
      %s180 = ssub.s32 %s43, %s50
      %p181 = scmp.eq.s32.totalorder %s180, 0
      %s183 = sadd.s32 %s182, 1
      %s184 = scalar_select %p181, %s182, %s183
      %p187 = pneg %p181
      %p188 = scmp.eq.s32.totalorder %s35, 1
      %p189 = por %p187, %p188
      %p190 = scmp.ne.s32.totalorder %s182, %s185
      %p191 = scmp.eq.s32.totalorder %s35, 0
      %p192 = por %p190, %p191
      %p193 = scmp.ne.s32.totalorder %s182, %s185
      %p194 = scmp.eq.s32.totalorder %s40, 1
      %p195 = por %p193, %p194
      %p196 = scmp.ne.s32.totalorder %s185, %s186
      %p197 = scmp.eq.s32.totalorder %s40, 0
      %p198 = por %p196, %p197
      %p199 = scmp.ne.s32.totalorder %s185, %s186
      %p200 = scmp.eq.s32.totalorder %s41, 1
      %p201 = por %p199, %p200
      %p203 = scmp.ne.s32.totalorder %s186, %s202
      %p204 = scmp.eq.s32.totalorder %s41, 0
      %p205 = por %p203, %p204
      %s206 = ssub.s32 %s43, %s50
      %p207 = scmp.eq.s32.totalorder %s206, 0
      %s209 = sadd.s32 %s208, 1
      %s210 = scalar_select %p207, %s208, %s209
      %p213 = pneg %p207
      %p214 = scmp.eq.s32.totalorder %s35, 1
      %p215 = por %p213, %p214
      %p216 = scmp.ne.s32.totalorder %s208, %s211
      %p217 = scmp.eq.s32.totalorder %s35, 0
      %p218 = por %p216, %p217
      %p219 = scmp.ne.s32.totalorder %s208, %s211
      %p220 = scmp.eq.s32.totalorder %s40, 1
      %p221 = por %p219, %p220
      %p222 = scmp.ne.s32.totalorder %s211, %s212
      %p223 = scmp.eq.s32.totalorder %s40, 0
      %p224 = por %p222, %p223
      %p225 = scmp.ne.s32.totalorder %s211, %s212
      %p226 = scmp.eq.s32.totalorder %s41, 1
      %p227 = por %p225, %p226
      %p229 = scmp.ne.s32.totalorder %s212, %s228
      %p230 = scmp.eq.s32.totalorder %s41, 0
      %p231 = por %p229, %p230
      %s232 = ssub.s32 %s43, %s50
      %p233 = scmp.eq.s32.totalorder %s232, 0
      %s235 = sadd.s32 %s234, 1
      %s236 = scalar_select %p233, %s234, %s235
      %p239 = pneg %p233
      %p240 = scmp.eq.s32.totalorder %s35, 1
      %p241 = por %p239, %p240
      %p242 = scmp.ne.s32.totalorder %s234, %s237
      %p243 = scmp.eq.s32.totalorder %s35, 0
      %p244 = por %p242, %p243
      %p245 = scmp.ne.s32.totalorder %s234, %s237
      %p246 = scmp.eq.s32.totalorder %s40, 1
      %p247 = por %p245, %p246
      %p248 = scmp.ne.s32.totalorder %s237, %s238
      %p249 = scmp.eq.s32.totalorder %s40, 0
      %p250 = por %p248, %p249
      %p251 = scmp.ne.s32.totalorder %s237, %s238
      %p252 = scmp.eq.s32.totalorder %s41, 1
      %p253 = por %p251, %p252
      %p255 = scmp.ne.s32.totalorder %s238, %s254
      %p256 = scmp.eq.s32.totalorder %s41, 0
      %p257 = por %p255, %p256
      %s258 = ssub.s32 %s43, %s50
      %p259 = scmp.eq.s32.totalorder %s258, 0
      %s261 = sadd.s32 %s260, 1
      %s262 = scalar_select %p259, %s260, %s261
      %p265 = pneg %p259
      %p266 = scmp.eq.s32.totalorder %s35, 1
      %p267 = por %p265, %p266
      %p268 = scmp.ne.s32.totalorder %s260, %s263
      %p269 = scmp.eq.s32.totalorder %s35, 0
      %p270 = por %p268, %p269
      %p271 = scmp.ne.s32.totalorder %s260, %s263
      %p272 = scmp.eq.s32.totalorder %s40, 1
      %p273 = por %p271, %p272
      %p274 = scmp.ne.s32.totalorder %s263, %s264
      %p275 = scmp.eq.s32.totalorder %s40, 0
      %p276 = por %p274, %p275
      %p277 = scmp.ne.s32.totalorder %s263, %s264
      %p278 = scmp.eq.s32.totalorder %s41, 1
      %p279 = por %p277, %p278
      %p281 = scmp.ne.s32.totalorder %s264, %s280
      %p282 = scmp.eq.s32.totalorder %s41, 0
      %p283 = por %p281, %p282
      %s284 = ssub.s32 %s43, %s50
      %p285 = scmp.eq.s32.totalorder %s284, 0
      %s287 = sadd.s32 %s286, 1
      %s288 = scalar_select %p285, %s286, %s287
      %p291 = pneg %p285
      %p292 = scmp.eq.s32.totalorder %s35, 1
      %p293 = por %p291, %p292
      %p294 = scmp.ne.s32.totalorder %s286, %s289
      %p295 = scmp.eq.s32.totalorder %s35, 0
      %p296 = por %p294, %p295
      %p297 = scmp.ne.s32.totalorder %s286, %s289
      %p298 = scmp.eq.s32.totalorder %s40, 1
      %p299 = por %p297, %p298
      %p300 = scmp.ne.s32.totalorder %s289, %s290
      %p301 = scmp.eq.s32.totalorder %s40, 0
      %p302 = por %p300, %p301
      %p303 = scmp.ne.s32.totalorder %s289, %s290
      %p304 = scmp.eq.s32.totalorder %s41, 1
      %p305 = por %p303, %p304
      %p307 = scmp.ne.s32.totalorder %s290, %s306
      %p308 = scmp.eq.s32.totalorder %s41, 0
      %p309 = por %p307, %p308
      %s310 = ssub.s32 %s43, %s50
      %p311 = scmp.eq.s32.totalorder %s310, 0
      %s313 = sadd.s32 %s312, 1
      %s314 = scalar_select %p311, %s312, %s313
      %p317 = pneg %p311
      %p318 = scmp.eq.s32.totalorder %s35, 1
      %p319 = por %p317, %p318
      %p320 = scmp.ne.s32.totalorder %s312, %s315
      %p321 = scmp.eq.s32.totalorder %s35, 0
      %p322 = por %p320, %p321
      %p323 = scmp.ne.s32.totalorder %s312, %s315
      %p324 = scmp.eq.s32.totalorder %s40, 1
      %p325 = por %p323, %p324
      %p326 = scmp.ne.s32.totalorder %s315, %s316
      %p327 = scmp.eq.s32.totalorder %s40, 0
      %p328 = por %p326, %p327
      %p329 = scmp.ne.s32.totalorder %s315, %s316
      %p330 = scmp.eq.s32.totalorder %s41, 1
      %p331 = por %p329, %p330
      %p333 = scmp.ne.s32.totalorder %s316, %s332
      %p334 = scmp.eq.s32.totalorder %s41, 0
      %p335 = por %p333, %p334
      %s336 = ssub.s32 %s43, %s50
      %p337 = scmp.eq.s32.totalorder %s336, 0
      %s339 = sadd.s32 %s338, 1
      %s340 = scalar_select %p337, %s338, %s339
      %p343 = pneg %p337
      %p344 = scmp.eq.s32.totalorder %s35, 1
      %p345 = por %p343, %p344
      %p346 = scmp.ne.s32.totalorder %s338, %s341
      %p347 = scmp.eq.s32.totalorder %s35, 0
      %p348 = por %p346, %p347
      %p349 = scmp.ne.s32.totalorder %s338, %s341
      %p350 = scmp.eq.s32.totalorder %s40, 1
      %p351 = por %p349, %p350
      %p352 = scmp.ne.s32.totalorder %s341, %s342
      %p353 = scmp.eq.s32.totalorder %s40, 0
      %p354 = por %p352, %p353
      %p355 = scmp.ne.s32.totalorder %s341, %s342
      %p356 = scmp.eq.s32.totalorder %s41, 1
      %p357 = por %p355, %p356
      %p359 = scmp.ne.s32.totalorder %s342, %s358
      %p360 = scmp.eq.s32.totalorder %s41, 0
      %p361 = por %p359, %p360
      %s362 = ssub.s32 %s43, %s50
      %p363 = scmp.eq.s32.totalorder %s362, 0
      %s365 = sadd.s32 %s364, 1
      %s366 = scalar_select %p363, %s364, %s365
      %p369 = pneg %p363
      %p370 = scmp.eq.s32.totalorder %s35, 1
      %p371 = por %p369, %p370
      %p372 = scmp.ne.s32.totalorder %s364, %s367
      %p373 = scmp.eq.s32.totalorder %s35, 0
      %p374 = por %p372, %p373
      %p375 = scmp.ne.s32.totalorder %s364, %s367
      %p376 = scmp.eq.s32.totalorder %s40, 1
      %p377 = por %p375, %p376
      %p378 = scmp.ne.s32.totalorder %s367, %s368
      %p379 = scmp.eq.s32.totalorder %s40, 0
      %p380 = por %p378, %p379
      %p381 = scmp.ne.s32.totalorder %s367, %s368
      %p382 = scmp.eq.s32.totalorder %s41, 1
      %p383 = por %p381, %p382
      %p385 = scmp.ne.s32.totalorder %s368, %s384
      %p386 = scmp.eq.s32.totalorder %s41, 0
      %p387 = por %p385, %p386
      %s388 = ssub.s32 %s43, %s50
      %p389 = scmp.eq.s32.totalorder %s388, 0
      %s391 = sadd.s32 %s390, 1
      %s392 = scalar_select %p389, %s390, %s391
      %p395 = pneg %p389
      %p396 = scmp.eq.s32.totalorder %s35, 1
      %p397 = por %p395, %p396
      %p398 = scmp.ne.s32.totalorder %s390, %s393
      %p399 = scmp.eq.s32.totalorder %s35, 0
      %p400 = por %p398, %p399
      %p401 = scmp.ne.s32.totalorder %s390, %s393
      %p402 = scmp.eq.s32.totalorder %s40, 1
      %p403 = por %p401, %p402
      %p404 = scmp.ne.s32.totalorder %s393, %s394
      %p405 = scmp.eq.s32.totalorder %s40, 0
      %p406 = por %p404, %p405
      %p407 = scmp.ne.s32.totalorder %s393, %s394
      %p408 = scmp.eq.s32.totalorder %s41, 1
      %p409 = por %p407, %p408
      %p411 = scmp.ne.s32.totalorder %s394, %s410
      %p412 = scmp.eq.s32.totalorder %s41, 0
      %p413 = por %p411, %p412
      %s414 = ssub.s32 %s43, %s50
      %p415 = scmp.eq.s32.totalorder %s414, 0
      %s417 = sadd.s32 %s416, 1
      %s418 = scalar_select %p415, %s416, %s417
      %p421 = pneg %p415
      %p422 = scmp.eq.s32.totalorder %s35, 1
      %p423 = por %p421, %p422
      %p424 = scmp.ne.s32.totalorder %s416, %s419
      %p425 = scmp.eq.s32.totalorder %s35, 0
      %p426 = por %p424, %p425
      %p427 = scmp.ne.s32.totalorder %s416, %s419
      %p428 = scmp.eq.s32.totalorder %s40, 1
      %p429 = por %p427, %p428
      %p430 = scmp.ne.s32.totalorder %s419, %s420
      %p431 = scmp.eq.s32.totalorder %s40, 0
      %p432 = por %p430, %p431
      %p433 = scmp.ne.s32.totalorder %s419, %s420
      %p434 = scmp.eq.s32.totalorder %s41, 1
      %p435 = por %p433, %p434
      %p437 = scmp.ne.s32.totalorder %s420, %s436
      %p438 = scmp.eq.s32.totalorder %s41, 0
      %p439 = por %p437, %p438
      %s441 = sadd.s32 %s440, 1
      %p444 = scmp.eq.s32.totalorder %s35, 1
      %p445 = scmp.ne.s32.totalorder %s440, %s442
      %p446 = scmp.eq.s32.totalorder %s35, 0
      %p447 = por %p445, %p446
      %p448 = scmp.ne.s32.totalorder %s440, %s442
      %p449 = scmp.eq.s32.totalorder %s40, 1
      %p450 = por %p448, %p449
      %p451 = scmp.ne.s32.totalorder %s442, %s443
      %p452 = scmp.eq.s32.totalorder %s40, 0
      %p453 = por %p451, %p452
      %p454 = scmp.ne.s32.totalorder %s442, %s443
      %p455 = scmp.eq.s32.totalorder %s41, 1
      %p456 = por %p454, %p455
      %p458 = scmp.ne.s32.totalorder %s443, %s457
      %p459 = scmp.eq.s32.totalorder %s41, 0
      %p460 = por %p458, %p459
      %s462 = sadd.s32 %s461, 1
      %p465 = scmp.eq.s32.totalorder %s35, 1
      %p466 = scmp.ne.s32.totalorder %s461, %s463
      %p467 = scmp.eq.s32.totalorder %s35, 0
      %p468 = por %p466, %p467
      %p469 = scmp.ne.s32.totalorder %s461, %s463
      %p470 = scmp.eq.s32.totalorder %s40, 1
      %p471 = por %p469, %p470
      %p472 = scmp.ne.s32.totalorder %s463, %s464
      %p473 = scmp.eq.s32.totalorder %s40, 0
      %p474 = por %p472, %p473
      %p475 = scmp.ne.s32.totalorder %s463, %s464
      %p476 = scmp.eq.s32.totalorder %s41, 1
      %p477 = por %p475, %p476
      %p479 = scmp.ne.s32.totalorder %s464, %s478
      %p480 = scmp.eq.s32.totalorder %s41, 0
      %p481 = por %p479, %p480
      %s482 = ssub.s32 %s42, %s54
      %p483 = scmp.eq.s32.totalorder %s482, 0
      %s485 = sadd.s32 %s484, 1
      %s486 = scalar_select %p483, %s484, %s485
      %p489 = pneg %p483
      %p490 = scmp.eq.s32.totalorder %s35, 1
      %p491 = por %p489, %p490
      %p492 = scmp.ne.s32.totalorder %s484, %s487
      %p493 = scmp.eq.s32.totalorder %s35, 0
      %p494 = por %p492, %p493
      %p495 = scmp.ne.s32.totalorder %s484, %s487
      %p496 = scmp.eq.s32.totalorder %s40, 1
      %p497 = por %p495, %p496
      %p498 = scmp.ne.s32.totalorder %s487, %s488
      %p499 = scmp.eq.s32.totalorder %s40, 0
      %p500 = por %p498, %p499
      %p501 = scmp.ne.s32.totalorder %s487, %s488
      %p502 = scmp.eq.s32.totalorder %s41, 1
      %p503 = por %p501, %p502
      %p505 = scmp.ne.s32.totalorder %s488, %s504
      %p506 = scmp.eq.s32.totalorder %s41, 0
      %p507 = por %p505, %p506
      %p508 = scmp.le.s32.totalorder 1, %s35
      %p509 = scmp.lt.s32.totalorder %s35, 3
      %p510 = pnand %p508, %p509
      %p511 = pneg %p510
      // Predicated region
      $region9: #{tpu_custom_call.1} parent=5 // pred_check
        _
      $region10: #{tpu_custom_call.1} parent=5 // pred_check_branch
        %513 = sbr.rel (%p510) target = $region12
      $region11: #{tpu_custom_call.1} parent=5 // pred_region
        %s514 = ssub.s32 %s35, 1
        // Predicated region
        $region13: #{tpu_custom_call.1} parent=11 // pred_check
          %p515 = pneg %p68
        $region14: #{tpu_custom_call.1} parent=11 // pred_check_branch
          %517 = sbr.rel (%p515) target = $region16
        $region15: #{tpu_custom_call.1} parent=11 // pred_region
          %519 = vsyncadd [#allocation4], 0
          %s521 = sshll.u32 %s0, 4
          %s522 = int_to_ptr.hbm [resolvable:$true] %s521
          %s523 = sshll.u32 [#allocation3], 4
          %s524 = int_to_ptr.vmem [resolvable:$true] %s523
          %526 = dma.hbm_to_vmem [thread:$0]  %s522, 128, %s524, [#allocation4]
        $region16: #{tpu_custom_call.1} parent=11 // pred_fallthru
          _
        // Predicated region
        $region17: #{tpu_custom_call.1} parent=11 // pred_check
          %p527 = pneg %p94
        $region18: #{tpu_custom_call.1} parent=11 // pred_check_branch
          %529 = sbr.rel (%p527) target = $region20
        $region19: #{tpu_custom_call.1} parent=11 // pred_region
          %s530 = smul.u32 2, %s44
          %p531 = scmp.lt.s32.totalorder %s530, 1
          %s532 = scalar_select %p531, %s530, 1
          %s533 = smul.addr %s532, 8
          %s534 = scalar_lea.vmem %s1, %s533
          %s535 = smul.u32 2, %s44
        $region20: #{tpu_custom_call.1} parent=11 // pred_fallthru
          _
        // Predicated region
        $region21: #{tpu_custom_call.1} parent=11 // pred_check
          %p536 = pneg %p120
        $region22: #{tpu_custom_call.1} parent=11 // pred_check_branch
          %538 = sbr.rel (%p536) target = $region24
        $region23: #{tpu_custom_call.1} parent=11 // pred_region
          %s539 = smul.u32 2, %s44
          %p540 = scmp.lt.s32.totalorder %s539, 1
          %s541 = scalar_select %p540, %s539, 1
          %s542 = smul.addr %s541, 2
          %s543 = smul.addr %s542, 8
          %s544 = scalar_lea.vmem %s2, %s543
          %s545 = smul.u32 2, %s44
        $region24: #{tpu_custom_call.1} parent=11 // pred_fallthru
          _
        // Predicated region
        $region25: #{tpu_custom_call.1} parent=11 // pred_check
          %p546 = pneg %p453
        $region26: #{tpu_custom_call.1} parent=11 // pred_check_branch
          %548 = sbr.rel (%p546) target = $region28
        $region27: #{tpu_custom_call.1} parent=11 // pred_region
          _
        $region28: #{tpu_custom_call.1} parent=11 // pred_fallthru
          _
        // Predicated region
        $region29: #{tpu_custom_call.1} parent=11 // pred_check
          %p549 = pneg %p474
        $region30: #{tpu_custom_call.1} parent=11 // pred_check_branch
          %551 = sbr.rel (%p549) target = $region32
        $region31: #{tpu_custom_call.1} parent=11 // pred_region
          %553 = vsyncadd [#allocation16], 0
          %s555 = sshll.u32 %s16, 4
          %s556 = int_to_ptr.hbm [resolvable:$true] %s555
          %s557 = sshll.u32 [#allocation15], 4
          %s558 = int_to_ptr.vmem [resolvable:$true] %s557
          %560 = dma.hbm_to_vmem [thread:$0]  %s556, 16, %s558, [#allocation16]
        $region32: #{tpu_custom_call.1} parent=11 // pred_fallthru
          _
      $region12: #{tpu_custom_call.1} parent=5 // pred_fallthru
        _
      %p561 = scmp.lt.s32.totalorder %s35, 2
      // Predicated region
      $region33: #{tpu_custom_call.1} parent=5 // pred_check
        %p562 = pneg %p561
      $region34: #{tpu_custom_call.1} parent=5 // pred_check_branch
        %564 = sbr.rel (%p562) target = $region36
      $region35: #{tpu_custom_call.1} parent=5 // pred_region
        // Predicated region
        $region37: #{tpu_custom_call.1} parent=35 // pred_check
          %p565 = pneg %p140
        $region38: #{tpu_custom_call.1} parent=35 // pred_check_branch
          %567 = sbr.rel (%p565) target = $region40
        $region39: #{tpu_custom_call.1} parent=35 // pred_region
          %p568 = scmp.lt.s32.totalorder %s43, 1
          %s569 = scalar_select %p568, %s43, 1
          %s570 = smul.addr %s569, 4
          %s571 = smul.addr %s570, 4
          %s572 = scalar_lea.vmem %s3, %s571
        $region40: #{tpu_custom_call.1} parent=35 // pred_fallthru
          _
        // Predicated region
        $region41: #{tpu_custom_call.1} parent=35 // pred_check
          %p573 = pneg %p166
        $region42: #{tpu_custom_call.1} parent=35 // pred_check_branch
          %575 = sbr.rel (%p573) target = $region44
        $region43: #{tpu_custom_call.1} parent=35 // pred_region
          %p576 = scmp.lt.s32.totalorder %s43, 1
          %s577 = scalar_select %p576, %s43, 1
          %s578 = smul.addr %s577, 4
          %s579 = smul.addr %s578, 4
          %s580 = scalar_lea.vmem %s4, %s579
        $region44: #{tpu_custom_call.1} parent=35 // pred_fallthru
          _
        // Predicated region
        $region45: #{tpu_custom_call.1} parent=35 // pred_check
          %p581 = pneg %p192
        $region46: #{tpu_custom_call.1} parent=35 // pred_check_branch
          %583 = sbr.rel (%p581) target = $region48
        $region47: #{tpu_custom_call.1} parent=35 // pred_region
          %p584 = scmp.lt.s32.totalorder %s43, 1
          %s585 = scalar_select %p584, %s43, 1
          %s586 = smul.addr %s585, 4
          %s587 = smul.addr %s586, 4
          %s588 = scalar_lea.vmem %s5, %s587
        $region48: #{tpu_custom_call.1} parent=35 // pred_fallthru
          _
        // Predicated region
        $region49: #{tpu_custom_call.1} parent=35 // pred_check
          %p589 = pneg %p218
        $region50: #{tpu_custom_call.1} parent=35 // pred_check_branch
          %591 = sbr.rel (%p589) target = $region52
        $region51: #{tpu_custom_call.1} parent=35 // pred_region
          %s592 = sand.u32 %s35, 1
          %s593 = scalar_lea.sflag [#allocation7], %s592
          %s594 = sand.u32 %s208, 1
          %s595 = scalar_lea.vmem [#allocation6], %s594
          %597 = vsyncadd %s593, 0
          %s598 = scalar_lea.hbm %s6, %s43
          %s600 = sshll.u32 %s598, 4
          %s601 = int_to_ptr.hbm [resolvable:$true] %s600
          %s602 = sshll.u32 %s595, 4
          %s603 = int_to_ptr.vmem [resolvable:$true] %s602
          %605 = dma.hbm_to_vmem [thread:$0]  %s601, 16, %s603, %s593
        $region52: #{tpu_custom_call.1} parent=35 // pred_fallthru
          _
        // Predicated region
        $region53: #{tpu_custom_call.1} parent=35 // pred_check
          %p606 = pneg %p244
        $region54: #{tpu_custom_call.1} parent=35 // pred_check_branch
          %608 = sbr.rel (%p606) target = $region56
        $region55: #{tpu_custom_call.1} parent=35 // pred_region
          %p609 = scmp.lt.s32.totalorder %s43, 1
          %s610 = scalar_select %p609, %s43, 1
          %s611 = smul.addr %s610, 4
          %s612 = smul.addr %s611, 4
          %s613 = scalar_lea.vmem %s7, %s612
        $region56: #{tpu_custom_call.1} parent=35 // pred_fallthru
          _
        // Predicated region
        $region57: #{tpu_custom_call.1} parent=35 // pred_check
          %p614 = pneg %p270
        $region58: #{tpu_custom_call.1} parent=35 // pred_check_branch
          %616 = sbr.rel (%p614) target = $region60
        $region59: #{tpu_custom_call.1} parent=35 // pred_region
          %s617 = sand.u32 %s35, 1
          %s618 = scalar_lea.sflag [#allocation7], %s617
          %s619 = sand.u32 %s260, 1
          %s620 = smul.addr %s619, 16
          %s621 = scalar_lea.vmem [#allocation8], %s620
          %623 = vsyncadd %s618, 0
          %s624 = smul.addr %s43, 4
          %s625 = smul.addr %s624, 4
          %s626 = scalar_lea.hbm %s8, %s625
          %s627 = sshll.u32 %s626, 4
          %s628 = int_to_ptr.hbm [resolvable:$true] %s627
          %s629 = sshll.u32 %s621, 4
          %s630 = int_to_ptr.vmem [resolvable:$true] %s629
          %635 = dma.hbm_to_vmem [thread:$0]  %s628, 256, %s630, %s618, 64, 64, 4
        $region60: #{tpu_custom_call.1} parent=35 // pred_fallthru
          _
        // Predicated region
        $region61: #{tpu_custom_call.1} parent=35 // pred_check
          %p636 = pneg %p296
        $region62: #{tpu_custom_call.1} parent=35 // pred_check_branch
          %638 = sbr.rel (%p636) target = $region64
        $region63: #{tpu_custom_call.1} parent=35 // pred_region
          %s639 = sand.u32 %s35, 1
          %s640 = scalar_lea.sflag [#allocation10], %s639
          %s641 = sand.u32 %s286, 1
          %s642 = smul.addr %s641, 16
          %s643 = scalar_lea.vmem [#allocation9], %s642
          %645 = vsyncadd %s640, 0
          %s646 = smul.addr %s43, 4
          %s647 = smul.addr %s646, 4
          %s648 = scalar_lea.hbm %s9, %s647
          %s649 = sshll.u32 %s648, 4
          %s650 = int_to_ptr.hbm [resolvable:$true] %s649
          %s651 = sshll.u32 %s643, 4
          %s652 = int_to_ptr.vmem [resolvable:$true] %s651
          %657 = dma.hbm_to_vmem [thread:$0]  %s650, 256, %s652, %s640, 64, 64, 4
        $region64: #{tpu_custom_call.1} parent=35 // pred_fallthru
          _
        // Predicated region
        $region65: #{tpu_custom_call.1} parent=35 // pred_check
          %p658 = pneg %p322
        $region66: #{tpu_custom_call.1} parent=35 // pred_check_branch
          %660 = sbr.rel (%p658) target = $region68
        $region67: #{tpu_custom_call.1} parent=35 // pred_region
          %s661 = sand.u32 %s35, 1
          %s662 = scalar_lea.sflag [#allocation10], %s661
          %s663 = sand.u32 %s312, 1
          %s664 = scalar_lea.vmem [#allocation11], %s663
          %666 = vsyncadd %s662, 0
          %s667 = scalar_lea.hbm %s10, %s43
          %s669 = sshll.u32 %s667, 4
          %s670 = int_to_ptr.hbm [resolvable:$true] %s669
          %s671 = sshll.u32 %s664, 4
          %s672 = int_to_ptr.vmem [resolvable:$true] %s671
          %674 = dma.hbm_to_vmem [thread:$0]  %s670, 16, %s672, %s662
        $region68: #{tpu_custom_call.1} parent=35 // pred_fallthru
          _
        // Predicated region
        $region69: #{tpu_custom_call.1} parent=35 // pred_check
          %p675 = pneg %p348
        $region70: #{tpu_custom_call.1} parent=35 // pred_check_branch
          %677 = sbr.rel (%p675) target = $region72
        $region71: #{tpu_custom_call.1} parent=35 // pred_region
          %s678 = sand.u32 %s35, 1
          %s679 = scalar_lea.sflag [#allocation13], %s678
          %s680 = sand.u32 %s338, 1
          %s681 = smul.addr %s680, 16
          %s682 = scalar_lea.vmem [#allocation12], %s681
          %684 = vsyncadd %s679, 0
          %s685 = smul.addr %s43, 4
          %s686 = smul.addr %s685, 4
          %s687 = scalar_lea.hbm %s11, %s686
          %s688 = sshll.u32 %s687, 4
          %s689 = int_to_ptr.hbm [resolvable:$true] %s688
          %s690 = sshll.u32 %s682, 4
          %s691 = int_to_ptr.vmem [resolvable:$true] %s690
          %696 = dma.hbm_to_vmem [thread:$0]  %s689, 256, %s691, %s679, 64, 64, 4
        $region72: #{tpu_custom_call.1} parent=35 // pred_fallthru
          _
        // Predicated region
        $region73: #{tpu_custom_call.1} parent=35 // pred_check
          %p697 = pneg %p374
        $region74: #{tpu_custom_call.1} parent=35 // pred_check_branch
          %699 = sbr.rel (%p697) target = $region76
        $region75: #{tpu_custom_call.1} parent=35 // pred_region
          %s700 = sand.u32 %s35, 1
          %s701 = scalar_lea.sflag [#allocation13], %s700
          %s702 = sand.u32 %s364, 1
          %s703 = scalar_lea.vmem [#allocation14], %s702
          %705 = vsyncadd %s701, 0
          %s706 = scalar_lea.hbm %s12, %s43
          %s708 = sshll.u32 %s706, 4
          %s709 = int_to_ptr.hbm [resolvable:$true] %s708
          %s710 = sshll.u32 %s703, 4
          %s711 = int_to_ptr.vmem [resolvable:$true] %s710
          %713 = dma.hbm_to_vmem [thread:$0]  %s709, 16, %s711, %s701
        $region76: #{tpu_custom_call.1} parent=35 // pred_fallthru
          _
        // Predicated region
        $region77: #{tpu_custom_call.1} parent=35 // pred_check
          %p714 = pneg %p400
        $region78: #{tpu_custom_call.1} parent=35 // pred_check_branch
          %716 = sbr.rel (%p714) target = $region80
        $region79: #{tpu_custom_call.1} parent=35 // pred_region
          %p717 = scmp.lt.s32.totalorder %s43, 1
          %s718 = scalar_select %p717, %s43, 1
          %s719 = smul.addr %s718, 16
          %s720 = smul.addr %s719, 4
          %s721 = scalar_lea.vmem %s13, %s720
        $region80: #{tpu_custom_call.1} parent=35 // pred_fallthru
          _
        // Predicated region
        $region81: #{tpu_custom_call.1} parent=35 // pred_check
          %p722 = pneg %p426
        $region82: #{tpu_custom_call.1} parent=35 // pred_check_branch
          %724 = sbr.rel (%p722) target = $region84
        $region83: #{tpu_custom_call.1} parent=35 // pred_region
          %p725 = scmp.lt.s32.totalorder %s43, 1
          %s726 = scalar_select %p725, %s43, 1
          %s727 = smul.addr %s726, 2
          %s728 = smul.addr %s727, 8
          %s729 = scalar_lea.vmem %s14, %s728
        $region84: #{tpu_custom_call.1} parent=35 // pred_fallthru
          _
      $region36: #{tpu_custom_call.1} parent=5 // pred_fallthru
        _
      %p730 = scmp.le.s32.totalorder 1, %s35
      %p731 = scmp.lt.s32.totalorder %s35, 3
      %p732 = pnand %p730, %p731
      %p733 = pneg %p732
      // Predicated region
      $region85: #{tpu_custom_call.1} parent=5 // pred_check
        _
      $region86: #{tpu_custom_call.1} parent=5 // pred_check_branch
        %735 = sbr.rel (%p732) target = $region88
      $region87: #{tpu_custom_call.1} parent=5 // pred_region
        %s736 = ssub.s32 %s35, 1
        // Predicated region
        $region89: #{tpu_custom_call.1} parent=87 // pred_check
          %p737 = pneg %p68
        $region90: #{tpu_custom_call.1} parent=87 // pred_check_branch
          %739 = sbr.rel (%p737) target = $region92
        $region91: #{tpu_custom_call.1} parent=87 // pred_region
          %741 = dma.done [#allocation4], 128
        $region92: #{tpu_custom_call.1} parent=87 // pred_fallthru
          _
        %s742 = sand.u32 %s40, 1
        %s743 = scalar_lea.sflag [#allocation7], %s742
        %s744 = sand.u32 %s211, 1
        %s745 = scalar_lea.vmem [#allocation6], %s744
        // Predicated region
        $region93: #{tpu_custom_call.1} parent=87 // pred_check
          %p746 = pneg %p224
        $region94: #{tpu_custom_call.1} parent=87 // pred_check_branch
          %748 = sbr.rel (%p746) target = $region96
        $region95: #{tpu_custom_call.1} parent=87 // pred_region
          %750 = dma.done %s743, 16
        $region96: #{tpu_custom_call.1} parent=87 // pred_fallthru
          _
        %s751 = sand.u32 %s40, 1
        %s752 = scalar_lea.sflag [#allocation7], %s751
        %s753 = sand.u32 %s263, 1
        %s754 = smul.addr %s753, 16
        %s755 = scalar_lea.vmem [#allocation8], %s754
        // Predicated region
        $region97: #{tpu_custom_call.1} parent=87 // pred_check
          %p756 = pneg %p276
        $region98: #{tpu_custom_call.1} parent=87 // pred_check_branch
          %758 = sbr.rel (%p756) target = $region100
        $region99: #{tpu_custom_call.1} parent=87 // pred_region
          %760 = dma.done %s752, 256
        $region100: #{tpu_custom_call.1} parent=87 // pred_fallthru
          _
        %s761 = sand.u32 %s40, 1
        %s762 = scalar_lea.sflag [#allocation10], %s761
        %s763 = sand.u32 %s289, 1
        %s764 = smul.addr %s763, 16
        %s765 = scalar_lea.vmem [#allocation9], %s764
        // Predicated region
        $region101: #{tpu_custom_call.1} parent=87 // pred_check
          %p766 = pneg %p302
        $region102: #{tpu_custom_call.1} parent=87 // pred_check_branch
          %768 = sbr.rel (%p766) target = $region104
        $region103: #{tpu_custom_call.1} parent=87 // pred_region
          %770 = dma.done %s762, 256
        $region104: #{tpu_custom_call.1} parent=87 // pred_fallthru
          _
        %s771 = sand.u32 %s40, 1
        %s772 = scalar_lea.sflag [#allocation10], %s771
        %s773 = sand.u32 %s315, 1
        %s774 = scalar_lea.vmem [#allocation11], %s773
        // Predicated region
        $region105: #{tpu_custom_call.1} parent=87 // pred_check
          %p775 = pneg %p328
        $region106: #{tpu_custom_call.1} parent=87 // pred_check_branch
          %777 = sbr.rel (%p775) target = $region108
        $region107: #{tpu_custom_call.1} parent=87 // pred_region
          %779 = dma.done %s772, 16
        $region108: #{tpu_custom_call.1} parent=87 // pred_fallthru
          _
        %s780 = sand.u32 %s40, 1
        %s781 = scalar_lea.sflag [#allocation13], %s780
        %s782 = sand.u32 %s341, 1
        %s783 = smul.addr %s782, 16
        %s784 = scalar_lea.vmem [#allocation12], %s783
        // Predicated region
        $region109: #{tpu_custom_call.1} parent=87 // pred_check
          %p785 = pneg %p354
        $region110: #{tpu_custom_call.1} parent=87 // pred_check_branch
          %787 = sbr.rel (%p785) target = $region112
        $region111: #{tpu_custom_call.1} parent=87 // pred_region
          %789 = dma.done %s781, 256
        $region112: #{tpu_custom_call.1} parent=87 // pred_fallthru
          _
        %s790 = sand.u32 %s40, 1
        %s791 = scalar_lea.sflag [#allocation13], %s790
        %s792 = sand.u32 %s367, 1
        %s793 = scalar_lea.vmem [#allocation14], %s792
        // Predicated region
        $region113: #{tpu_custom_call.1} parent=87 // pred_check
          %p794 = pneg %p380
        $region114: #{tpu_custom_call.1} parent=87 // pred_check_branch
          %796 = sbr.rel (%p794) target = $region116
        $region115: #{tpu_custom_call.1} parent=87 // pred_region
          %798 = dma.done %s791, 16
        $region116: #{tpu_custom_call.1} parent=87 // pred_fallthru
          _
        // Predicated region
        $region117: #{tpu_custom_call.1} parent=87 // pred_check
          %p799 = pneg %p474
        $region118: #{tpu_custom_call.1} parent=87 // pred_check_branch
          %801 = sbr.rel (%p799) target = $region120
        $region119: #{tpu_custom_call.1} parent=87 // pred_region
          %803 = dma.done [#allocation16], 16
        $region120: #{tpu_custom_call.1} parent=87 // pred_fallthru
          _
        %p804 = pneg %p68
        %p805 = pneg %p65
        %s806 = smul.u32 2, %s44
        %p807 = scmp.lt.s32.totalorder %s806, 1
        %s808 = scalar_select %p807, %s806, 1
        %s809 = smul.addr %s808, 8
        %s810 = scalar_lea.vmem %s1, %s809
        %p811 = pneg %p94
        %p812 = pneg %p91
        %s813 = smul.u32 2, %s44
        %p814 = scmp.lt.s32.totalorder %s813, 1
        %s815 = scalar_select %p814, %s813, 1
        %s816 = smul.addr %s815, 2
        %s817 = smul.addr %s816, 8
        %s818 = scalar_lea.vmem %s2, %s817
        %p819 = pneg %p120
        %p820 = pneg %p117
        %p821 = scmp.lt.s32.totalorder %s45, 1
        %s822 = scalar_select %p821, %s45, 1
        %s823 = smul.addr %s822, 4
        %s824 = smul.addr %s823, 4
        %s825 = scalar_lea.vmem %s3, %s824
        %p826 = pneg %p146
        %p827 = pneg %p143
        %p828 = scmp.lt.s32.totalorder %s45, 1
        %s829 = scalar_select %p828, %s45, 1
        %s830 = smul.addr %s829, 4
        %s831 = smul.addr %s830, 4
        %s832 = scalar_lea.vmem %s4, %s831
        %p833 = pneg %p172
        %p834 = pneg %p169
        %p835 = scmp.lt.s32.totalorder %s45, 1
        %s836 = scalar_select %p835, %s45, 1
        %s837 = smul.addr %s836, 4
        %s838 = smul.addr %s837, 4
        %s839 = scalar_lea.vmem %s5, %s838
        %p840 = pneg %p198
        %p841 = pneg %p195
        %s842 = sand.u32 %s40, 1
        %s843 = scalar_lea.sflag [#allocation7], %s842
        %s844 = sand.u32 %s211, 1
        %s845 = scalar_lea.vmem [#allocation6], %s844
        %p846 = pneg %p224
        %p847 = pneg %p221
        %p848 = scmp.lt.s32.totalorder %s45, 1
        %s849 = scalar_select %p848, %s45, 1
        %s850 = smul.addr %s849, 4
        %s851 = smul.addr %s850, 4
        %s852 = scalar_lea.vmem %s7, %s851
        %p853 = pneg %p250
        %p854 = pneg %p247
        %s855 = sand.u32 %s40, 1
        %s856 = scalar_lea.sflag [#allocation7], %s855
        %s857 = sand.u32 %s263, 1
        %s858 = smul.addr %s857, 16
        %s859 = scalar_lea.vmem [#allocation8], %s858
        %p860 = pneg %p276
        %p861 = pneg %p273
        %s862 = sand.u32 %s40, 1
        %s863 = scalar_lea.sflag [#allocation10], %s862
        %s864 = sand.u32 %s289, 1
        %s865 = smul.addr %s864, 16
        %s866 = scalar_lea.vmem [#allocation9], %s865
        %p867 = pneg %p302
        %p868 = pneg %p299
        %s869 = sand.u32 %s40, 1
        %s870 = scalar_lea.sflag [#allocation10], %s869
        %s871 = sand.u32 %s315, 1
        %s872 = scalar_lea.vmem [#allocation11], %s871
        %p873 = pneg %p328
        %p874 = pneg %p325
        %s875 = sand.u32 %s40, 1
        %s876 = scalar_lea.sflag [#allocation13], %s875
        %s877 = sand.u32 %s341, 1
        %s878 = smul.addr %s877, 16
        %s879 = scalar_lea.vmem [#allocation12], %s878
        %p880 = pneg %p354
        %p881 = pneg %p351
        %s882 = sand.u32 %s40, 1
        %s883 = scalar_lea.sflag [#allocation13], %s882
        %s884 = sand.u32 %s367, 1
        %s885 = scalar_lea.vmem [#allocation14], %s884
        %p886 = pneg %p380
        %p887 = pneg %p377
        %p888 = scmp.lt.s32.totalorder %s45, 1
        %s889 = scalar_select %p888, %s45, 1
        %s890 = smul.addr %s889, 16
        %s891 = smul.addr %s890, 4
        %s892 = scalar_lea.vmem %s13, %s891
        %p893 = pneg %p406
        %p894 = pneg %p403
        %p895 = scmp.lt.s32.totalorder %s45, 1
        %s896 = scalar_select %p895, %s45, 1
        %s897 = smul.addr %s896, 2
        %s898 = smul.addr %s897, 8
        %s899 = scalar_lea.vmem %s14, %s898
        %p900 = pneg %p432
        %p901 = pneg %p429
        %p902 = pneg %p453
        %p903 = pneg %p450
        %p904 = pneg %p474
        %p905 = pneg %p471
        %p906 = pneg %p500
        %p907 = pneg %p497
        %s908 = smul.u32 2, %s44
        %p909 = scmp.lt.s32.totalorder %s908, 1
        %s910 = scalar_select %p909, %s908, 1
        %s911 = smul.addr %s910, 8
        %s912 = scalar_lea.vmem %s1, %s911
        %s913 = smul.u32 2, %s44
        %s914 = smul.u32 2, %s44
        %p915 = scmp.lt.s32.totalorder %s914, 1
        %s916 = scalar_select %p915, %s914, 1
        %s917 = smul.addr %s916, 2
        %s918 = smul.addr %s917, 8
        %s919 = scalar_lea.vmem %s2, %s918
        %s920 = smul.u32 2, %s44
        %p921 = scmp.lt.s32.totalorder %s45, 1
        %s922 = scalar_select %p921, %s45, 1
        %s923 = smul.addr %s922, 4
        %s924 = smul.addr %s923, 4
        %s925 = scalar_lea.vmem %s3, %s924
        %p926 = scmp.lt.s32.totalorder %s45, 1
        %s927 = scalar_select %p926, %s45, 1
        %s928 = smul.addr %s927, 4
        %s929 = smul.addr %s928, 4
        %s930 = scalar_lea.vmem %s4, %s929
        %p931 = scmp.lt.s32.totalorder %s45, 1
        %s932 = scalar_select %p931, %s45, 1
        %s933 = smul.addr %s932, 4
        %s934 = smul.addr %s933, 4
        %s935 = scalar_lea.vmem %s5, %s934
        %p936 = scmp.lt.s32.totalorder %s45, 1
        %s937 = scalar_select %p936, %s45, 1
        %s938 = smul.addr %s937, 4
        %s939 = smul.addr %s938, 4
        %s940 = scalar_lea.vmem %s7, %s939
        %p941 = scmp.lt.s32.totalorder %s45, 1
        %s942 = scalar_select %p941, %s45, 1
        %s943 = smul.addr %s942, 16
        %s944 = smul.addr %s943, 4
        %s945 = scalar_lea.vmem %s13, %s944
        %p946 = scmp.lt.s32.totalorder %s45, 1
        %s947 = scalar_select %p946, %s45, 1
        %s948 = smul.addr %s947, 2
        %s949 = smul.addr %s948, 8
        %s950 = scalar_lea.vmem %s14, %s949
        %s951 = smul.u32 2, %s44
        %p953 = scmp.eq.s32.totalorder %s45, 0
        // Predicated region
        $region121: #{tpu_custom_call.1} parent=87 // pred_check
          %p954 = pneg %p953
        $region122: #{tpu_custom_call.1} parent=87 // pred_check_branch
          %956 = sbr.rel (%p954) target = $region124
        $region123: #{tpu_custom_call.1} parent=87 // pred_region
          %v957 = vld [vmem:[#allocation3] sm:$0xff]
          %vm958 = vcmask 261120
          %959 = vst.msk [vmem:[#allocation2] sm:$0xff] %vm958, %v957
          %960 = vst.msk [vmem:[#allocation2 + $0x10] sm:$0xff] %vm958, %v957
          %v961 = vld [vmem:[%s912] sm:$0xff]
          %v962 = vld [vmem:[%s912 + $0x8] sm:$0xff]
          %963 = vst.msk [vmem:[#allocation2 + $0x8] sm:$0xff] %vm958, %v961
          %964 = vst.msk [vmem:[#allocation2 + $0x18] sm:$0xff] %vm958, %v962
        $region124: #{tpu_custom_call.1} parent=87 // pred_fallthru
          _
        %v965 = vld [vmem:[%s950] sm:$0xff]
        %v966 = vld [vmem:[%s950 + $0x8] sm:$0x1]
        %v967 = vld [vmem:[#allocation2] sm:$0xff]
        %v968 = vld [vmem:[#allocation2 + $0x8] sm:$0xff]
        %v969 = vld [vmem:[#allocation2 + $0x10] sm:$0xff]
        %v970 = vld [vmem:[#allocation2 + $0x18] sm:$0xff]
        %v971 = vld [vmem:[%s925] sm:$0xf]
        %v972 = vld [vmem:[%s925 + $0x4] sm:$0xf]
        %v973 = vld [vmem:[%s925 + $0x8] sm:$0xf]
        %v974 = vld [vmem:[%s925 + $0xc] sm:$0xf]
        %v975 = vld [vmem:[%s930] sm:$0xf]
        %v976 = vld [vmem:[%s930 + $0x4] sm:$0xf]
        %v977 = vld [vmem:[%s930 + $0x8] sm:$0xf]
        %v978 = vld [vmem:[%s930 + $0xc] sm:$0xf]
        %v979 = vld [vmem:[%s745] sm:$0x1]
        %v980 = vld [vmem:[%s935] sm:$0xf]
        %v981 = vld [vmem:[%s935 + $0x4] sm:$0xf]
        %v982 = vld [vmem:[%s935 + $0x8] sm:$0xf]
        %v983 = vld [vmem:[%s935 + $0xc] sm:$0xf]
        %v984 = vpack.c.bf16 %v969, %v967
        %v985 = vperm.slane %v965, 0
        %v990 = vunpack.c.l.b16 %v971
        %v991 = vunpack.c.l.b16 %v972
        %v992 = vunpack.c.l.b16 %v973
        %v993 = vunpack.c.l.b16 %v974
        %v994 = vpack.c.b16 %v991, %v990
        %v995 = vpack.c.b16 %v993, %v992
        %vm998 = vcmask 261120
        %v1000 = vsel %vm998, %v984, 0
        %1002 = vmatpush.bf16.msra.mxu0 0
        %1003 = vmatpush.bf16.msra.mxu0 0
        %1004 = vmatpush.bf16.msra.mxu0 0
        %1005 = vmatpush.bf16.msra.mxu0 0
        %1006 = vmatpush.bf16.msra.mxu0 0
        %1007 = vmatpush.bf16.msra.mxu0 0
        %1008 = vmatpush.bf16.msra.mxu0 %v995
        %1009 = vmatpush.bf16.msra.mxu0 %v994
        %1010 = vmatmul.bf16.gmra.mxu0 %v1000
        %v1011 = vpop.f32.mrf.mxu0
        %v1012 = vadd.f32 %v985, %v1011
        %v1013 = vpop.f32.mrf.mxu0
        %v1014 = vadd.f32 %v985, %v1013
        %1015 = vdwg.mxu0
        %v1016 = vmul.f32 %v1012, 0.35355338
        %v1017 = vmul.f32 %v1014, 0.35355338
        %v1018 = vpack.c.bf16 %v968, %v967
        %v1019 = vpack.c.bf16 %v970, %v969
        %v1021 = vperm.slane %v979, 0
        %v1027 = vunpack.c.l.b16 %v975
        %v1028 = vunpack.c.l.b16 %v976
        %v1029 = vunpack.c.l.b16 %v977
        %v1030 = vunpack.c.l.b16 %v978
        %v1031 = vpack.c.b16 %v1028, %v1027
        %v1032 = vpack.c.b16 %v1030, %v1029
        %v1036 = vsel %vm998, %v1018, 0
        %v1039 = vsel %vm998, %v1019, 0
        %1041 = vmatpush.bf16.msra.mxu0 0
        %1042 = vmatpush.bf16.msra.mxu0 0
        %1043 = vmatpush.bf16.msra.mxu0 0
        %1044 = vmatpush.bf16.msra.mxu0 0
        %1045 = vmatpush.bf16.msra.mxu0 0
        %1046 = vmatpush.bf16.msra.mxu0 0
        %1047 = vmatpush.bf16.msra.mxu0 %v1032
        %1048 = vmatpush.bf16.msra.mxu0 %v1031
        %1049 = vmatmul.bf16.gmra.mxu0 %v1036
        %v1050 = vpop.f32.mrf.mxu0
        %v1051 = vadd.f32 %v1021, %v1050
        %v1052 = vpop.f32.mrf.mxu0
        %v1053 = vadd.f32 %v1021, %v1052
        %1054 = vmatmul.bf16.gmra.mxu0 %v1039
        %v1055 = vpop.f32.mrf.mxu0
        %v1056 = vadd.f32 %v1021, %v1055
        %v1057 = vpop.f32.mrf.mxu0
        %v1058 = vadd.f32 %v1021, %v1057
        %1059 = vdwg.mxu0
        %v1060 = vpack.c.bf16 %v1016, %v1016
        %v1061 = vpack.c.bf16 %v1017, %v1017
        %v1062 = vpack.c.bf16 %v1051, %v1051
        %v1063 = vpack.c.bf16 %v1053, %v1053
        %v1064 = vpack.c.bf16 %v1056, %v1056
        %v1065 = vpack.c.bf16 %v1058, %v1058
        %v1068 = vunpack.c.l.b16 %v1062
        %v1069 = vunpack.c.l.b16 %v1063
        %v1070 = vpack.c.b16 %v1069, %v1068
        %vm1071 = vcmask 64512
        %v1073 = vsel %vm1071, %v1060, 0
        %v1076 = vsel %vm1071, %v1070, 0
        %1078 = vmatpush.bf16.xpose.msra.mxu0 0
        %1079 = vmatpush.bf16.xpose.msra.mxu0 0
        %1080 = vmatpush.bf16.xpose.msra.mxu0 0
        %1081 = vmatpush.bf16.xpose.msra.mxu0 0
        %1082 = vmatpush.bf16.xpose.msra.mxu0 0
        %1083 = vmatpush.bf16.xpose.msra.mxu0 0
        %1084 = vmatpush.bf16.xpose.msra.mxu0 0
        %1085 = vmatpush.bf16.xpose.msra.mxu0 %v1076
        %1086 = vmatmul.bf16.gmra.mxu0 %v1073
        %v1087 = vpop.f32.mrf.mxu0
        %v1088 = vadd.f32 0.0, %v1087
        %v1089 = vpop.f32.mrf.mxu0
        %1090 = vdwg.mxu0
        %v1093 = vunpack.c.l.b16 %v1064
        %v1094 = vunpack.c.l.b16 %v1065
        %v1095 = vpack.c.b16 %v1094, %v1093
        %v1097 = vsel %vm1071, %v1061, 0
        %v1100 = vsel %vm1071, %v1095, 0
        %1102 = vmatpush.bf16.xpose.msra.mxu0 0
        %1103 = vmatpush.bf16.xpose.msra.mxu0 0
        %1104 = vmatpush.bf16.xpose.msra.mxu0 0
        %1105 = vmatpush.bf16.xpose.msra.mxu0 0
        %1106 = vmatpush.bf16.xpose.msra.mxu0 0
        %1107 = vmatpush.bf16.xpose.msra.mxu0 0
        %1108 = vmatpush.bf16.xpose.msra.mxu0 0
        %1109 = vmatpush.bf16.xpose.msra.mxu0 %v1100
        %1110 = vmatmul.bf16.gmra.mxu0 %v1097
        %v1111 = vpop.f32.mrf.mxu0
        %v1112 = vadd.f32 0.0, %v1111
        %v1113 = vpop.f32.mrf.mxu0
        %1114 = vdwg.mxu0
        %vm1115 = vcmask 130048
        %v1116 = vsel %vm1115, %v1088, -inf
        %1117 = vmax.xlane.f32.xlu0 %v1116
        %v1118 = vpop.xlane.xlu0 %1117
        %v1119 = vsel %vm1115, %v1112, -inf
        %1120 = vmax.xlane.f32.xlu0 %v1119
        %v1121 = vpop.xlane.xlu0 %1120
        %v1122 = vsub.f32 %v1088, %v1118
        %v1123 = vsub.f32 %v1112, %v1121
        %v1124 = vmul.f32 %v1122, 1.442695
        %v1125 = vpow.pop %v1124
        %v1126 = vmul.f32 %v1123, 1.442695
        %v1127 = vpow.pop %v1126
        %v1128 = vsel %vm1115, %v1125, 0.0
        %1129 = vadd.xlane.f32.xlu0 %v1128
        %v1130 = vpop.xlane.xlu0 %1129
        %v1131 = vsel %vm1115, %v1127, 0.0
        %1132 = vadd.xlane.f32.xlu0 %v1131
        %v1133 = vpop.xlane.xlu0 %1132
        %v1134 = vrcp.pop %v1130
        %v1135 = vrcp.pop %v1133
        %v1136 = vmul.f32 %v1125, %v1134
        %v1137 = vmul.f32 %v1127, %v1135
        %v1138 = vpack.c.bf16 %v1136, %v1136
        %v1139 = vpack.c.bf16 %v1137, %v1137
        %1140 = vrot.lane.b32.xlu0 %v1070, 96
        %v1141 = vpop.permute.xlu0 %1140
        %v1144 = vsel %vm1115, %v1138, 0
        %1146 = vmatpush.bf16.msra.mxu0 0
        %1147 = vmatpush.bf16.msra.mxu0 0
        %1148 = vmatpush.bf16.msra.mxu0 0
        %1149 = vmatpush.bf16.msra.mxu0 0
        %1150 = vmatpush.bf16.msra.mxu0 0
        %1151 = vmatpush.bf16.msra.mxu0 0
        %1152 = vmatpush.bf16.msra.mxu0 0
        %1153 = vmatpush.bf16.msra.mxu0 %v1141
        %1154 = vmatmul.bf16.gmra.mxu0 %v1144
        %v1155 = vpop.f32.mrf.mxu0
        %v1156 = vadd.f32 0.0, %v1155
        %v1157 = vpop.f32.mrf.mxu0
        %1158 = vdwg.mxu0
        %1159 = vrot.lane.b32.xlu0 %v1095, 96
        %v1160 = vpop.permute.xlu0 %1159
        %v1163 = vsel %vm1115, %v1139, 0
        %1165 = vmatpush.bf16.msra.mxu0 0
        %1166 = vmatpush.bf16.msra.mxu0 0
        %1167 = vmatpush.bf16.msra.mxu0 0
        %1168 = vmatpush.bf16.msra.mxu0 0
        %1169 = vmatpush.bf16.msra.mxu0 0
        %1170 = vmatpush.bf16.msra.mxu0 0
        %1171 = vmatpush.bf16.msra.mxu0 0
        %1172 = vmatpush.bf16.msra.mxu0 %v1160
        %1173 = vmatmul.bf16.gmra.mxu0 %v1163
        %v1174 = vpop.f32.mrf.mxu0
        %v1175 = vadd.f32 0.0, %v1174
        %v1176 = vpop.f32.mrf.mxu0
        %1177 = vdwg.mxu0
        %v1179 = vunpack.c.l.b16 %v1060
        %v1180 = vpack.c.b16 %v1179, %v1179
        %1181 = vrot.lane.b32.xlu0 %v1180, 120
        %v1182 = vpop.permute.xlu0 %1181
        %1183 = vrot.lane.b32.xlu0 %v1070, 120
        %v1184 = vpop.permute.xlu0 %1183
        %v1186 = vsel %vm1071, %v1182, 0
        %v1189 = vsel %vm1071, %v1184, 0
        %1191 = vmatpush.bf16.xpose.msra.mxu0 0
        %1192 = vmatpush.bf16.xpose.msra.mxu0 0
        %1193 = vmatpush.bf16.xpose.msra.mxu0 0
        %1194 = vmatpush.bf16.xpose.msra.mxu0 0
        %1195 = vmatpush.bf16.xpose.msra.mxu0 0
        %1196 = vmatpush.bf16.xpose.msra.mxu0 0
        %1197 = vmatpush.bf16.xpose.msra.mxu0 0
        %1198 = vmatpush.bf16.xpose.msra.mxu0 %v1189
        %1199 = vmatmul.bf16.gmra.mxu0 %v1186
        %v1200 = vpop.f32.mrf.mxu0
        %v1201 = vadd.f32 0.0, %v1200
        %v1202 = vpop.f32.mrf.mxu0
        %1203 = vdwg.mxu0
        %v1205 = vunpack.c.l.b16 %v1061
        %v1206 = vpack.c.b16 %v1205, %v1205
        %1207 = vrot.lane.b32.xlu0 %v1206, 120
        %v1208 = vpop.permute.xlu0 %1207
        %1209 = vrot.lane.b32.xlu0 %v1095, 120
        %v1210 = vpop.permute.xlu0 %1209
        %v1212 = vsel %vm1071, %v1208, 0
        %v1215 = vsel %vm1071, %v1210, 0
        %1217 = vmatpush.bf16.xpose.msra.mxu0 0
        %1218 = vmatpush.bf16.xpose.msra.mxu0 0
        %1219 = vmatpush.bf16.xpose.msra.mxu0 0
        %1220 = vmatpush.bf16.xpose.msra.mxu0 0
        %1221 = vmatpush.bf16.xpose.msra.mxu0 0
        %1222 = vmatpush.bf16.xpose.msra.mxu0 0
        %1223 = vmatpush.bf16.xpose.msra.mxu0 0
        %1224 = vmatpush.bf16.xpose.msra.mxu0 %v1215
        %1225 = vmatmul.bf16.gmra.mxu0 %v1212
        %v1226 = vpop.f32.mrf.mxu0
        %v1227 = vadd.f32 0.0, %v1226
        %v1228 = vpop.f32.mrf.mxu0
        %1229 = vdwg.mxu0
        %v1230 = vsel %vm1115, %v1201, -inf
        %1231 = vmax.xlane.f32.xlu0 %v1230
        %v1232 = vpop.xlane.xlu0 %1231
        %v1233 = vsel %vm1115, %v1227, -inf
        %1234 = vmax.xlane.f32.xlu0 %v1233
        %v1235 = vpop.xlane.xlu0 %1234
        %v1236 = vsub.f32 %v1201, %v1232
        %v1237 = vsub.f32 %v1227, %v1235
        %v1238 = vmul.f32 %v1236, 1.442695
        %v1239 = vpow.pop %v1238
        %v1240 = vmul.f32 %v1237, 1.442695
        %v1241 = vpow.pop %v1240
        %v1242 = vsel %vm1115, %v1239, 0.0
        %1243 = vadd.xlane.f32.xlu0 %v1242
        %v1244 = vpop.xlane.xlu0 %1243
        %v1245 = vsel %vm1115, %v1241, 0.0
        %1246 = vadd.xlane.f32.xlu0 %v1245
        %v1247 = vpop.xlane.xlu0 %1246
        %v1248 = vrcp.pop %v1244
        %v1249 = vrcp.pop %v1247
        %v1250 = vmul.f32 %v1239, %v1248
        %v1251 = vmul.f32 %v1241, %v1249
        %v1252 = vpack.c.bf16 %v1250, %v1250
        %v1253 = vpack.c.bf16 %v1251, %v1251
        %1254 = vrot.lane.b32.xlu0 %v1070, 88
        %v1255 = vpop.permute.xlu0 %1254
        %v1258 = vsel %vm1115, %v1252, 0
        %1260 = vmatpush.bf16.msra.mxu0 0
        %1261 = vmatpush.bf16.msra.mxu0 0
        %1262 = vmatpush.bf16.msra.mxu0 0
        %1263 = vmatpush.bf16.msra.mxu0 0
        %1264 = vmatpush.bf16.msra.mxu0 0
        %1265 = vmatpush.bf16.msra.mxu0 0
        %1266 = vmatpush.bf16.msra.mxu0 0
        %1267 = vmatpush.bf16.msra.mxu0 %v1255
        %1268 = vmatmul.bf16.gmra.mxu0 %v1258
        %v1269 = vpop.f32.mrf.mxu0
        %v1270 = vadd.f32 0.0, %v1269
        %v1271 = vpop.f32.mrf.mxu0
        %1272 = vdwg.mxu0
        %1273 = vrot.lane.b32.xlu0 %v1095, 88
        %v1274 = vpop.permute.xlu0 %1273
        %v1277 = vsel %vm1115, %v1253, 0
        %1279 = vmatpush.bf16.msra.mxu0 0
        %1280 = vmatpush.bf16.msra.mxu0 0
        %1281 = vmatpush.bf16.msra.mxu0 0
        %1282 = vmatpush.bf16.msra.mxu0 0
        %1283 = vmatpush.bf16.msra.mxu0 0
        %1284 = vmatpush.bf16.msra.mxu0 0
        %1285 = vmatpush.bf16.msra.mxu0 0
        %1286 = vmatpush.bf16.msra.mxu0 %v1274
        %1287 = vmatmul.bf16.gmra.mxu0 %v1277
        %v1288 = vpop.f32.mrf.mxu0
        %v1289 = vadd.f32 0.0, %v1288
        %v1290 = vpop.f32.mrf.mxu0
        %1291 = vdwg.mxu0
        %1292 = vrot.lane.b32.xlu0 %v1180, 112
        %v1293 = vpop.permute.xlu0 %1292
        %1294 = vrot.lane.b32.xlu0 %v1070, 112
        %v1295 = vpop.permute.xlu0 %1294
        %v1297 = vsel %vm1071, %v1293, 0
        %v1300 = vsel %vm1071, %v1295, 0
        %1302 = vmatpush.bf16.xpose.msra.mxu0 0
        %1303 = vmatpush.bf16.xpose.msra.mxu0 0
        %1304 = vmatpush.bf16.xpose.msra.mxu0 0
        %1305 = vmatpush.bf16.xpose.msra.mxu0 0
        %1306 = vmatpush.bf16.xpose.msra.mxu0 0
        %1307 = vmatpush.bf16.xpose.msra.mxu0 0
        %1308 = vmatpush.bf16.xpose.msra.mxu0 0
        %1309 = vmatpush.bf16.xpose.msra.mxu0 %v1300
        %1310 = vmatmul.bf16.gmra.mxu0 %v1297
        %v1311 = vpop.f32.mrf.mxu0
        %v1312 = vadd.f32 0.0, %v1311
        %v1313 = vpop.f32.mrf.mxu0
        %1314 = vdwg.mxu0
        %1315 = vrot.lane.b32.xlu0 %v1206, 112
        %v1316 = vpop.permute.xlu0 %1315
        %1317 = vrot.lane.b32.xlu0 %v1095, 112
        %v1318 = vpop.permute.xlu0 %1317
        %v1320 = vsel %vm1071, %v1316, 0
        %v1323 = vsel %vm1071, %v1318, 0
        %1325 = vmatpush.bf16.xpose.msra.mxu0 0
        %1326 = vmatpush.bf16.xpose.msra.mxu0 0
        %1327 = vmatpush.bf16.xpose.msra.mxu0 0
        %1328 = vmatpush.bf16.xpose.msra.mxu0 0
        %1329 = vmatpush.bf16.xpose.msra.mxu0 0
        %1330 = vmatpush.bf16.xpose.msra.mxu0 0
        %1331 = vmatpush.bf16.xpose.msra.mxu0 0
        %1332 = vmatpush.bf16.xpose.msra.mxu0 %v1323
        %1333 = vmatmul.bf16.gmra.mxu0 %v1320
        %v1334 = vpop.f32.mrf.mxu0
        %v1335 = vadd.f32 0.0, %v1334
        %v1336 = vpop.f32.mrf.mxu0
        %1337 = vdwg.mxu0
        %v1338 = vsel %vm1115, %v1312, -inf
        %1339 = vmax.xlane.f32.xlu0 %v1338
        %v1340 = vpop.xlane.xlu0 %1339
        %v1341 = vsel %vm1115, %v1335, -inf
        %1342 = vmax.xlane.f32.xlu0 %v1341
        %v1343 = vpop.xlane.xlu0 %1342
        %v1344 = vsub.f32 %v1312, %v1340
        %v1345 = vsub.f32 %v1335, %v1343
        %v1346 = vmul.f32 %v1344, 1.442695
        %v1347 = vpow.pop %v1346
        %v1348 = vmul.f32 %v1345, 1.442695
        %v1349 = vpow.pop %v1348
        %v1350 = vsel %vm1115, %v1347, 0.0
        %1351 = vadd.xlane.f32.xlu0 %v1350
        %v1352 = vpop.xlane.xlu0 %1351
        %v1353 = vsel %vm1115, %v1349, 0.0
        %1354 = vadd.xlane.f32.xlu0 %v1353
        %v1355 = vpop.xlane.xlu0 %1354
        %v1356 = vrcp.pop %v1352
        %v1357 = vrcp.pop %v1355
        %v1358 = vmul.f32 %v1347, %v1356
        %v1359 = vmul.f32 %v1349, %v1357
        %v1360 = vpack.c.bf16 %v1358, %v1358
        %v1361 = vpack.c.bf16 %v1359, %v1359
        %1362 = vrot.lane.b32.xlu0 %v1070, 80
        %v1363 = vpop.permute.xlu0 %1362
        %v1366 = vsel %vm1115, %v1360, 0
        %1368 = vmatpush.bf16.msra.mxu0 0
        %1369 = vmatpush.bf16.msra.mxu0 0
        %1370 = vmatpush.bf16.msra.mxu0 0
        %1371 = vmatpush.bf16.msra.mxu0 0
        %1372 = vmatpush.bf16.msra.mxu0 0
        %1373 = vmatpush.bf16.msra.mxu0 0
        %1374 = vmatpush.bf16.msra.mxu0 0
        %1375 = vmatpush.bf16.msra.mxu0 %v1363
        %1376 = vmatmul.bf16.gmra.mxu0 %v1366
        %v1377 = vpop.f32.mrf.mxu0
        %v1378 = vadd.f32 0.0, %v1377
        %v1379 = vpop.f32.mrf.mxu0
        %1380 = vdwg.mxu0
        %1381 = vrot.lane.b32.xlu0 %v1095, 80
        %v1382 = vpop.permute.xlu0 %1381
        %v1385 = vsel %vm1115, %v1361, 0
        %1387 = vmatpush.bf16.msra.mxu0 0
        %1388 = vmatpush.bf16.msra.mxu0 0
        %1389 = vmatpush.bf16.msra.mxu0 0
        %1390 = vmatpush.bf16.msra.mxu0 0
        %1391 = vmatpush.bf16.msra.mxu0 0
        %1392 = vmatpush.bf16.msra.mxu0 0
        %1393 = vmatpush.bf16.msra.mxu0 0
        %1394 = vmatpush.bf16.msra.mxu0 %v1382
        %1395 = vmatmul.bf16.gmra.mxu0 %v1385
        %v1396 = vpop.f32.mrf.mxu0
        %v1397 = vadd.f32 0.0, %v1396
        %v1398 = vpop.f32.mrf.mxu0
        %1399 = vdwg.mxu0
        %1400 = vrot.lane.b32.xlu0 %v1180, 104
        %v1401 = vpop.permute.xlu0 %1400
        %1402 = vrot.lane.b32.xlu0 %v1070, 104
        %v1403 = vpop.permute.xlu0 %1402
        %v1405 = vsel %vm1071, %v1401, 0
        %v1408 = vsel %vm1071, %v1403, 0
        %1410 = vmatpush.bf16.xpose.msra.mxu0 0
        %1411 = vmatpush.bf16.xpose.msra.mxu0 0
        %1412 = vmatpush.bf16.xpose.msra.mxu0 0
        %1413 = vmatpush.bf16.xpose.msra.mxu0 0
        %1414 = vmatpush.bf16.xpose.msra.mxu0 0
        %1415 = vmatpush.bf16.xpose.msra.mxu0 0
        %1416 = vmatpush.bf16.xpose.msra.mxu0 0
        %1417 = vmatpush.bf16.xpose.msra.mxu0 %v1408
        %1418 = vmatmul.bf16.gmra.mxu0 %v1405
        %v1419 = vpop.f32.mrf.mxu0
        %v1420 = vadd.f32 0.0, %v1419
        %v1421 = vpop.f32.mrf.mxu0
        %1422 = vdwg.mxu0
        %1423 = vrot.lane.b32.xlu0 %v1206, 104
        %v1424 = vpop.permute.xlu0 %1423
        %1425 = vrot.lane.b32.xlu0 %v1095, 104
        %v1426 = vpop.permute.xlu0 %1425
        %v1428 = vsel %vm1071, %v1424, 0
        %v1431 = vsel %vm1071, %v1426, 0
        %1433 = vmatpush.bf16.xpose.msra.mxu0 0
        %1434 = vmatpush.bf16.xpose.msra.mxu0 0
        %1435 = vmatpush.bf16.xpose.msra.mxu0 0
        %1436 = vmatpush.bf16.xpose.msra.mxu0 0
        %1437 = vmatpush.bf16.xpose.msra.mxu0 0
        %1438 = vmatpush.bf16.xpose.msra.mxu0 0
        %1439 = vmatpush.bf16.xpose.msra.mxu0 0
        %1440 = vmatpush.bf16.xpose.msra.mxu0 %v1431
        %1441 = vmatmul.bf16.gmra.mxu0 %v1428
        %v1442 = vpop.f32.mrf.mxu0
        %v1443 = vadd.f32 0.0, %v1442
        %v1444 = vpop.f32.mrf.mxu0
        %1445 = vdwg.mxu0
        %v1446 = vsel %vm1115, %v1420, -inf
        %1447 = vmax.xlane.f32.xlu0 %v1446
        %v1448 = vpop.xlane.xlu0 %1447
        %v1449 = vsel %vm1115, %v1443, -inf
        %1450 = vmax.xlane.f32.xlu0 %v1449
        %v1451 = vpop.xlane.xlu0 %1450
        %v1452 = vsub.f32 %v1420, %v1448
        %v1453 = vsub.f32 %v1443, %v1451
        %v1454 = vmul.f32 %v1452, 1.442695
        %v1455 = vpow.pop %v1454
        %v1456 = vmul.f32 %v1453, 1.442695
        %v1457 = vpow.pop %v1456
        %v1458 = vsel %vm1115, %v1455, 0.0
        %1459 = vadd.xlane.f32.xlu0 %v1458
        %v1460 = vpop.xlane.xlu0 %1459
        %v1461 = vsel %vm1115, %v1457, 0.0
        %1462 = vadd.xlane.f32.xlu0 %v1461
        %v1463 = vpop.xlane.xlu0 %1462
        %v1464 = vrcp.pop %v1460
        %v1465 = vrcp.pop %v1463
        %v1466 = vmul.f32 %v1455, %v1464
        %v1467 = vmul.f32 %v1457, %v1465
        %v1468 = vpack.c.bf16 %v1466, %v1466
        %v1469 = vpack.c.bf16 %v1467, %v1467
        %1470 = vrot.lane.b32.xlu0 %v1070, 72
        %v1471 = vpop.permute.xlu0 %1470
        %v1474 = vsel %vm1115, %v1468, 0
        %1476 = vmatpush.bf16.msra.mxu0 0
        %1477 = vmatpush.bf16.msra.mxu0 0
        %1478 = vmatpush.bf16.msra.mxu0 0
        %1479 = vmatpush.bf16.msra.mxu0 0
        %1480 = vmatpush.bf16.msra.mxu0 0
        %1481 = vmatpush.bf16.msra.mxu0 0
        %1482 = vmatpush.bf16.msra.mxu0 0
        %1483 = vmatpush.bf16.msra.mxu0 %v1471
        %1484 = vmatmul.bf16.gmra.mxu0 %v1474
        %v1485 = vpop.f32.mrf.mxu0
        %v1486 = vadd.f32 0.0, %v1485
        %v1487 = vpop.f32.mrf.mxu0
        %1488 = vdwg.mxu0
        %1489 = vrot.lane.b32.xlu0 %v1095, 72
        %v1490 = vpop.permute.xlu0 %1489
        %v1493 = vsel %vm1115, %v1469, 0
        %1495 = vmatpush.bf16.msra.mxu0 0
        %1496 = vmatpush.bf16.msra.mxu0 0
        %1497 = vmatpush.bf16.msra.mxu0 0
        %1498 = vmatpush.bf16.msra.mxu0 0
        %1499 = vmatpush.bf16.msra.mxu0 0
        %1500 = vmatpush.bf16.msra.mxu0 0
        %1501 = vmatpush.bf16.msra.mxu0 0
        %1502 = vmatpush.bf16.msra.mxu0 %v1490
        %1503 = vmatmul.bf16.gmra.mxu0 %v1493
        %v1504 = vpop.f32.mrf.mxu0
        %v1505 = vadd.f32 0.0, %v1504
        %v1506 = vpop.f32.mrf.mxu0
        %1507 = vdwg.mxu0
        %1510 = vrot.lane.b32.xlu0 %v1270, 8
        %v1511 = vpop.permute.xlu0 %1510
        %1512 = vrot.lane.b32.xlu0 %v1289, 8
        %v1513 = vpop.permute.xlu0 %1512
        %1518 = vrot.lane.b32.xlu0 %v1378, 16
        %v1519 = vpop.permute.xlu0 %1518
        %1520 = vrot.lane.b32.xlu0 %v1397, 16
        %v1521 = vpop.permute.xlu0 %1520
        %1526 = vrot.lane.b32.xlu0 %v1486, 24
        %v1527 = vpop.permute.xlu0 %1526
        %1528 = vrot.lane.b32.xlu0 %v1505, 24
        %v1529 = vpop.permute.xlu0 %1528
        %v1532 = vsel %vm1071, %v1156, %v1511
        %v1533 = vsel %vm1071, %v1175, %v1513
        %v1534 = vsel %vm1115, %v1532, %v1519
        %v1535 = vsel %vm1115, %v1533, %v1521
        %vm1536 = vcmask 195584
        %v1537 = vsel %vm1536, %v1534, %v1527
        %v1538 = vsel %vm1536, %v1535, %v1529
        %v1539 = vpack.c.bf16 %v1538, %v1537
        %v1540 = vperm.slane %v965, 1
        %v1545 = vunpack.c.l.b16 %v980
        %v1546 = vunpack.c.l.b16 %v981
        %v1547 = vunpack.c.l.b16 %v982
        %v1548 = vunpack.c.l.b16 %v983
        %v1549 = vpack.c.b16 %v1546, %v1545
        %v1550 = vpack.c.b16 %v1548, %v1547
        %v1554 = vsel %vm998, %v1539, 0
        %1556 = vmatpush.bf16.msra.mxu0 0
        %1557 = vmatpush.bf16.msra.mxu0 0
        %1558 = vmatpush.bf16.msra.mxu0 0
        %1559 = vmatpush.bf16.msra.mxu0 0
        %1560 = vmatpush.bf16.msra.mxu0 0
        %1561 = vmatpush.bf16.msra.mxu0 0
        %1562 = vmatpush.bf16.msra.mxu0 %v1550
        %1563 = vmatpush.bf16.msra.mxu0 %v1549
        %1564 = vmatmul.bf16.gmra.mxu0 %v1554
        %v1565 = vpop.f32.mrf.mxu0
        %v1566 = vadd.f32 %v1540, %v1565
        %v1567 = vpop.f32.mrf.mxu0
        %v1568 = vadd.f32 %v1540, %v1567
        %1569 = vdwg.mxu0
        %v1570 = vld [vmem:[%s919] sm:$0xff]
        %v1571 = vld [vmem:[%s919 + $0x8] sm:$0xff]
        %v1572 = vld [vmem:[%s919 + $0x10] sm:$0xff]
        %v1573 = vld [vmem:[%s919 + $0x18] sm:$0xff]
        %v1574 = vld [vmem:[%s940] sm:$0xf]
        %v1575 = vld [vmem:[%s940 + $0x4] sm:$0xf]
        %v1576 = vld [vmem:[%s940 + $0x8] sm:$0xf]
        %v1577 = vld [vmem:[%s940 + $0xc] sm:$0xf]
        %v1578 = vld [vmem:[%s755] sm:$0xf]
        %v1579 = vld [vmem:[%s755 + $0x4] sm:$0xf]
        %v1580 = vld [vmem:[%s755 + $0x8] sm:$0xf]
        %v1581 = vld [vmem:[%s755 + $0xc] sm:$0xf]
        %v1582 = vld [vmem:[%s774] sm:$0x1]
        %v1583 = vld [vmem:[%s765] sm:$0xf]
        %v1584 = vld [vmem:[%s765 + $0x4] sm:$0xf]
        %v1585 = vld [vmem:[%s765 + $0x8] sm:$0xf]
        %v1586 = vld [vmem:[%s765 + $0xc] sm:$0xf]
        %v1587 = vpack.c.bf16 %v1568, %v1566
        %v1588 = vperm.slane %v965, 2
        %v1593 = vunpack.c.l.b16 %v1574
        %v1594 = vunpack.c.l.b16 %v1575
        %v1595 = vunpack.c.l.b16 %v1576
        %v1596 = vunpack.c.l.b16 %v1577
        %v1597 = vpack.c.b16 %v1594, %v1593
        %v1598 = vpack.c.b16 %v1596, %v1595
        %v1602 = vsel %vm998, %v1587, 0
        %1604 = vmatpush.bf16.msra.mxu0 0
        %1605 = vmatpush.bf16.msra.mxu0 0
        %1606 = vmatpush.bf16.msra.mxu0 0
        %1607 = vmatpush.bf16.msra.mxu0 0
        %1608 = vmatpush.bf16.msra.mxu0 0
        %1609 = vmatpush.bf16.msra.mxu0 0
        %1610 = vmatpush.bf16.msra.mxu0 %v1598
        %1611 = vmatpush.bf16.msra.mxu0 %v1597
        %1612 = vmatmul.bf16.gmra.mxu0 %v1602
        %v1613 = vpop.f32.mrf.mxu0
        %v1614 = vadd.f32 %v1588, %v1613
        %v1615 = vpop.f32.mrf.mxu0
        %v1616 = vadd.f32 %v1588, %v1615
        %1617 = vdwg.mxu0
        %v1618 = vmul.f32 %v1614, 0.35355338
        %v1619 = vmul.f32 %v1616, 0.35355338
        %v1620 = vpack.c.bf16 %v1571, %v1570
        %v1621 = vpack.c.bf16 %v1573, %v1572
        %v1623 = vperm.slane %v1582, 0
        %v1629 = vunpack.c.l.b16 %v1578
        %v1630 = vunpack.c.l.b16 %v1579
        %v1631 = vunpack.c.l.b16 %v1580
        %v1632 = vunpack.c.l.b16 %v1581
        %v1633 = vpack.c.b16 %v1630, %v1629
        %v1634 = vpack.c.b16 %v1632, %v1631
        %v1638 = vsel %vm998, %v1620, 0
        %v1641 = vsel %vm998, %v1621, 0
        %1643 = vmatpush.bf16.msra.mxu0 0
        %1644 = vmatpush.bf16.msra.mxu0 0
        %1645 = vmatpush.bf16.msra.mxu0 0
        %1646 = vmatpush.bf16.msra.mxu0 0
        %1647 = vmatpush.bf16.msra.mxu0 0
        %1648 = vmatpush.bf16.msra.mxu0 0
        %1649 = vmatpush.bf16.msra.mxu0 %v1634
        %1650 = vmatpush.bf16.msra.mxu0 %v1633
        %1651 = vmatmul.bf16.gmra.mxu0 %v1638
        %v1652 = vpop.f32.mrf.mxu0
        %v1653 = vadd.f32 %v1623, %v1652
        %v1654 = vpop.f32.mrf.mxu0
        %v1655 = vadd.f32 %v1623, %v1654
        %1656 = vmatmul.bf16.gmra.mxu0 %v1641
        %v1657 = vpop.f32.mrf.mxu0
        %v1658 = vadd.f32 %v1623, %v1657
        %v1659 = vpop.f32.mrf.mxu0
        %v1660 = vadd.f32 %v1623, %v1659
        %1661 = vdwg.mxu0
        %v1662 = vpack.c.bf16 %v1618, %v1618
        %v1663 = vpack.c.bf16 %v1619, %v1619
        %v1664 = vpack.c.bf16 %v1653, %v1653
        %v1665 = vpack.c.bf16 %v1655, %v1655
        %v1666 = vpack.c.bf16 %v1658, %v1658
        %v1667 = vpack.c.bf16 %v1660, %v1660
        %v1670 = vunpack.c.l.b16 %v1664
        %v1671 = vunpack.c.l.b16 %v1665
        %v1672 = vpack.c.b16 %v1671, %v1670
        %v1674 = vsel %vm1071, %v1662, 0
        %v1677 = vsel %vm1071, %v1672, 0
        %1679 = vmatpush.bf16.xpose.msra.mxu0 0
        %1680 = vmatpush.bf16.xpose.msra.mxu0 0
        %1681 = vmatpush.bf16.xpose.msra.mxu0 0
        %1682 = vmatpush.bf16.xpose.msra.mxu0 0
        %1683 = vmatpush.bf16.xpose.msra.mxu0 0
        %1684 = vmatpush.bf16.xpose.msra.mxu0 0
        %1685 = vmatpush.bf16.xpose.msra.mxu0 0
        %1686 = vmatpush.bf16.xpose.msra.mxu0 %v1677
        %1687 = vmatmul.bf16.gmra.mxu0 %v1674
        %v1688 = vpop.f32.mrf.mxu0
        %v1689 = vadd.f32 0.0, %v1688
        %v1690 = vpop.f32.mrf.mxu0
        %1691 = vdwg.mxu0
        %v1694 = vunpack.c.l.b16 %v1666
        %v1695 = vunpack.c.l.b16 %v1667
        %v1696 = vpack.c.b16 %v1695, %v1694
        %v1698 = vsel %vm1071, %v1663, 0
        %v1701 = vsel %vm1071, %v1696, 0
        %1703 = vmatpush.bf16.xpose.msra.mxu0 0
        %1704 = vmatpush.bf16.xpose.msra.mxu0 0
        %1705 = vmatpush.bf16.xpose.msra.mxu0 0
        %1706 = vmatpush.bf16.xpose.msra.mxu0 0
        %1707 = vmatpush.bf16.xpose.msra.mxu0 0
        %1708 = vmatpush.bf16.xpose.msra.mxu0 0
        %1709 = vmatpush.bf16.xpose.msra.mxu0 0
        %1710 = vmatpush.bf16.xpose.msra.mxu0 %v1701
        %1711 = vmatmul.bf16.gmra.mxu0 %v1698
        %v1712 = vpop.f32.mrf.mxu0
        %v1713 = vadd.f32 0.0, %v1712
        %v1714 = vpop.f32.mrf.mxu0
        %1715 = vdwg.mxu0
        %v1716 = vsel %vm1115, %v1689, -inf
        %1717 = vmax.xlane.f32.xlu0 %v1716
        %v1718 = vpop.xlane.xlu0 %1717
        %v1719 = vsel %vm1115, %v1713, -inf
        %1720 = vmax.xlane.f32.xlu0 %v1719
        %v1721 = vpop.xlane.xlu0 %1720
        %v1722 = vsub.f32 %v1689, %v1718
        %v1723 = vsub.f32 %v1713, %v1721
        %v1724 = vmul.f32 %v1722, 1.442695
        %v1725 = vpow.pop %v1724
        %v1726 = vmul.f32 %v1723, 1.442695
        %v1727 = vpow.pop %v1726
        %v1728 = vsel %vm1115, %v1725, 0.0
        %1729 = vadd.xlane.f32.xlu0 %v1728
        %v1730 = vpop.xlane.xlu0 %1729
        %v1731 = vsel %vm1115, %v1727, 0.0
        %1732 = vadd.xlane.f32.xlu0 %v1731
        %v1733 = vpop.xlane.xlu0 %1732
        %v1734 = vrcp.pop %v1730
        %v1735 = vrcp.pop %v1733
        %v1736 = vmul.f32 %v1725, %v1734
        %v1737 = vmul.f32 %v1727, %v1735
        %v1738 = vpack.c.bf16 %v1736, %v1736
        %v1739 = vpack.c.bf16 %v1737, %v1737
        %1740 = vrot.lane.b32.xlu0 %v1672, 96
        %v1741 = vpop.permute.xlu0 %1740
        %v1744 = vsel %vm1115, %v1738, 0
        %1746 = vmatpush.bf16.msra.mxu0 0
        %1747 = vmatpush.bf16.msra.mxu0 0
        %1748 = vmatpush.bf16.msra.mxu0 0
        %1749 = vmatpush.bf16.msra.mxu0 0
        %1750 = vmatpush.bf16.msra.mxu0 0
        %1751 = vmatpush.bf16.msra.mxu0 0
        %1752 = vmatpush.bf16.msra.mxu0 0
        %1753 = vmatpush.bf16.msra.mxu0 %v1741
        %1754 = vmatmul.bf16.gmra.mxu0 %v1744
        %v1755 = vpop.f32.mrf.mxu0
        %v1756 = vadd.f32 0.0, %v1755
        %v1757 = vpop.f32.mrf.mxu0
        %1758 = vdwg.mxu0
        %1759 = vrot.lane.b32.xlu0 %v1696, 96
        %v1760 = vpop.permute.xlu0 %1759
        %v1763 = vsel %vm1115, %v1739, 0
        %1765 = vmatpush.bf16.msra.mxu0 0
        %1766 = vmatpush.bf16.msra.mxu0 0
        %1767 = vmatpush.bf16.msra.mxu0 0
        %1768 = vmatpush.bf16.msra.mxu0 0
        %1769 = vmatpush.bf16.msra.mxu0 0
        %1770 = vmatpush.bf16.msra.mxu0 0
        %1771 = vmatpush.bf16.msra.mxu0 0
        %1772 = vmatpush.bf16.msra.mxu0 %v1760
        %1773 = vmatmul.bf16.gmra.mxu0 %v1763
        %v1774 = vpop.f32.mrf.mxu0
        %v1775 = vadd.f32 0.0, %v1774
        %v1776 = vpop.f32.mrf.mxu0
        %1777 = vdwg.mxu0
        %v1779 = vunpack.c.l.b16 %v1662
        %v1780 = vpack.c.b16 %v1779, %v1779
        %1781 = vrot.lane.b32.xlu0 %v1780, 120
        %v1782 = vpop.permute.xlu0 %1781
        %1783 = vrot.lane.b32.xlu0 %v1672, 120
        %v1784 = vpop.permute.xlu0 %1783
        %v1786 = vsel %vm1071, %v1782, 0
        %v1789 = vsel %vm1071, %v1784, 0
        %1791 = vmatpush.bf16.xpose.msra.mxu0 0
        %1792 = vmatpush.bf16.xpose.msra.mxu0 0
        %1793 = vmatpush.bf16.xpose.msra.mxu0 0
        %1794 = vmatpush.bf16.xpose.msra.mxu0 0
        %1795 = vmatpush.bf16.xpose.msra.mxu0 0
        %1796 = vmatpush.bf16.xpose.msra.mxu0 0
        %1797 = vmatpush.bf16.xpose.msra.mxu0 0
        %1798 = vmatpush.bf16.xpose.msra.mxu0 %v1789
        %1799 = vmatmul.bf16.gmra.mxu0 %v1786
        %v1800 = vpop.f32.mrf.mxu0
        %v1801 = vadd.f32 0.0, %v1800
        %v1802 = vpop.f32.mrf.mxu0
        %1803 = vdwg.mxu0
        %v1805 = vunpack.c.l.b16 %v1663
        %v1806 = vpack.c.b16 %v1805, %v1805
        %1807 = vrot.lane.b32.xlu0 %v1806, 120
        %v1808 = vpop.permute.xlu0 %1807
        %1809 = vrot.lane.b32.xlu0 %v1696, 120
        %v1810 = vpop.permute.xlu0 %1809
        %v1812 = vsel %vm1071, %v1808, 0
        %v1815 = vsel %vm1071, %v1810, 0
        %1817 = vmatpush.bf16.xpose.msra.mxu0 0
        %1818 = vmatpush.bf16.xpose.msra.mxu0 0
        %1819 = vmatpush.bf16.xpose.msra.mxu0 0
        %1820 = vmatpush.bf16.xpose.msra.mxu0 0
        %1821 = vmatpush.bf16.xpose.msra.mxu0 0
        %1822 = vmatpush.bf16.xpose.msra.mxu0 0
        %1823 = vmatpush.bf16.xpose.msra.mxu0 0
        %1824 = vmatpush.bf16.xpose.msra.mxu0 %v1815
        %1825 = vmatmul.bf16.gmra.mxu0 %v1812
        %v1826 = vpop.f32.mrf.mxu0
        %v1827 = vadd.f32 0.0, %v1826
        %v1828 = vpop.f32.mrf.mxu0
        %1829 = vdwg.mxu0
        %v1830 = vsel %vm1115, %v1801, -inf
        %1831 = vmax.xlane.f32.xlu0 %v1830
        %v1832 = vpop.xlane.xlu0 %1831
        %v1833 = vsel %vm1115, %v1827, -inf
        %1834 = vmax.xlane.f32.xlu0 %v1833
        %v1835 = vpop.xlane.xlu0 %1834
        %v1836 = vsub.f32 %v1801, %v1832
        %v1837 = vsub.f32 %v1827, %v1835
        %v1838 = vmul.f32 %v1836, 1.442695
        %v1839 = vpow.pop %v1838
        %v1840 = vmul.f32 %v1837, 1.442695
        %v1841 = vpow.pop %v1840
        %v1842 = vsel %vm1115, %v1839, 0.0
        %1843 = vadd.xlane.f32.xlu0 %v1842
        %v1844 = vpop.xlane.xlu0 %1843
        %v1845 = vsel %vm1115, %v1841, 0.0
        %1846 = vadd.xlane.f32.xlu0 %v1845
        %v1847 = vpop.xlane.xlu0 %1846
        %v1848 = vrcp.pop %v1844
        %v1849 = vrcp.pop %v1847
        %v1850 = vmul.f32 %v1839, %v1848
        %v1851 = vmul.f32 %v1841, %v1849
        %v1852 = vpack.c.bf16 %v1850, %v1850
        %v1853 = vpack.c.bf16 %v1851, %v1851
        %1854 = vrot.lane.b32.xlu0 %v1672, 88
        %v1855 = vpop.permute.xlu0 %1854
        %v1858 = vsel %vm1115, %v1852, 0
        %1860 = vmatpush.bf16.msra.mxu0 0
        %1861 = vmatpush.bf16.msra.mxu0 0
        %1862 = vmatpush.bf16.msra.mxu0 0
        %1863 = vmatpush.bf16.msra.mxu0 0
        %1864 = vmatpush.bf16.msra.mxu0 0
        %1865 = vmatpush.bf16.msra.mxu0 0
        %1866 = vmatpush.bf16.msra.mxu0 0
        %1867 = vmatpush.bf16.msra.mxu0 %v1855
        %1868 = vmatmul.bf16.gmra.mxu0 %v1858
        %v1869 = vpop.f32.mrf.mxu0
        %v1870 = vadd.f32 0.0, %v1869
        %v1871 = vpop.f32.mrf.mxu0
        %1872 = vdwg.mxu0
        %1873 = vrot.lane.b32.xlu0 %v1696, 88
        %v1874 = vpop.permute.xlu0 %1873
        %v1877 = vsel %vm1115, %v1853, 0
        %1879 = vmatpush.bf16.msra.mxu0 0
        %1880 = vmatpush.bf16.msra.mxu0 0
        %1881 = vmatpush.bf16.msra.mxu0 0
        %1882 = vmatpush.bf16.msra.mxu0 0
        %1883 = vmatpush.bf16.msra.mxu0 0
        %1884 = vmatpush.bf16.msra.mxu0 0
        %1885 = vmatpush.bf16.msra.mxu0 0
        %1886 = vmatpush.bf16.msra.mxu0 %v1874
        %1887 = vmatmul.bf16.gmra.mxu0 %v1877
        %v1888 = vpop.f32.mrf.mxu0
        %v1889 = vadd.f32 0.0, %v1888
        %v1890 = vpop.f32.mrf.mxu0
        %1891 = vdwg.mxu0
        %1892 = vrot.lane.b32.xlu0 %v1780, 112
        %v1893 = vpop.permute.xlu0 %1892
        %1894 = vrot.lane.b32.xlu0 %v1672, 112
        %v1895 = vpop.permute.xlu0 %1894
        %v1897 = vsel %vm1071, %v1893, 0
        %v1900 = vsel %vm1071, %v1895, 0
        %1902 = vmatpush.bf16.xpose.msra.mxu0 0
        %1903 = vmatpush.bf16.xpose.msra.mxu0 0
        %1904 = vmatpush.bf16.xpose.msra.mxu0 0
        %1905 = vmatpush.bf16.xpose.msra.mxu0 0
        %1906 = vmatpush.bf16.xpose.msra.mxu0 0
        %1907 = vmatpush.bf16.xpose.msra.mxu0 0
        %1908 = vmatpush.bf16.xpose.msra.mxu0 0
        %1909 = vmatpush.bf16.xpose.msra.mxu0 %v1900
        %1910 = vmatmul.bf16.gmra.mxu0 %v1897
        %v1911 = vpop.f32.mrf.mxu0
        %v1912 = vadd.f32 0.0, %v1911
        %v1913 = vpop.f32.mrf.mxu0
        %1914 = vdwg.mxu0
        %1915 = vrot.lane.b32.xlu0 %v1806, 112
        %v1916 = vpop.permute.xlu0 %1915
        %1917 = vrot.lane.b32.xlu0 %v1696, 112
        %v1918 = vpop.permute.xlu0 %1917
        %v1920 = vsel %vm1071, %v1916, 0
        %v1923 = vsel %vm1071, %v1918, 0
        %1925 = vmatpush.bf16.xpose.msra.mxu0 0
        %1926 = vmatpush.bf16.xpose.msra.mxu0 0
        %1927 = vmatpush.bf16.xpose.msra.mxu0 0
        %1928 = vmatpush.bf16.xpose.msra.mxu0 0
        %1929 = vmatpush.bf16.xpose.msra.mxu0 0
        %1930 = vmatpush.bf16.xpose.msra.mxu0 0
        %1931 = vmatpush.bf16.xpose.msra.mxu0 0
        %1932 = vmatpush.bf16.xpose.msra.mxu0 %v1923
        %1933 = vmatmul.bf16.gmra.mxu0 %v1920
        %v1934 = vpop.f32.mrf.mxu0
        %v1935 = vadd.f32 0.0, %v1934
        %v1936 = vpop.f32.mrf.mxu0
        %1937 = vdwg.mxu0
        %v1938 = vsel %vm1115, %v1912, -inf
        %1939 = vmax.xlane.f32.xlu0 %v1938
        %v1940 = vpop.xlane.xlu0 %1939
        %v1941 = vsel %vm1115, %v1935, -inf
        %1942 = vmax.xlane.f32.xlu0 %v1941
        %v1943 = vpop.xlane.xlu0 %1942
        %v1944 = vsub.f32 %v1912, %v1940
        %v1945 = vsub.f32 %v1935, %v1943
        %v1946 = vmul.f32 %v1944, 1.442695
        %v1947 = vpow.pop %v1946
        %v1948 = vmul.f32 %v1945, 1.442695
        %v1949 = vpow.pop %v1948
        %v1950 = vsel %vm1115, %v1947, 0.0
        %1951 = vadd.xlane.f32.xlu0 %v1950
        %v1952 = vpop.xlane.xlu0 %1951
        %v1953 = vsel %vm1115, %v1949, 0.0
        %1954 = vadd.xlane.f32.xlu0 %v1953
        %v1955 = vpop.xlane.xlu0 %1954
        %v1956 = vrcp.pop %v1952
        %v1957 = vrcp.pop %v1955
        %v1958 = vmul.f32 %v1947, %v1956
        %v1959 = vmul.f32 %v1949, %v1957
        %v1960 = vpack.c.bf16 %v1958, %v1958
        %v1961 = vpack.c.bf16 %v1959, %v1959
        %1962 = vrot.lane.b32.xlu0 %v1672, 80
        %v1963 = vpop.permute.xlu0 %1962
        %v1966 = vsel %vm1115, %v1960, 0
        %1968 = vmatpush.bf16.msra.mxu0 0
        %1969 = vmatpush.bf16.msra.mxu0 0
        %1970 = vmatpush.bf16.msra.mxu0 0
        %1971 = vmatpush.bf16.msra.mxu0 0
        %1972 = vmatpush.bf16.msra.mxu0 0
        %1973 = vmatpush.bf16.msra.mxu0 0
        %1974 = vmatpush.bf16.msra.mxu0 0
        %1975 = vmatpush.bf16.msra.mxu0 %v1963
        %1976 = vmatmul.bf16.gmra.mxu0 %v1966
        %v1977 = vpop.f32.mrf.mxu0
        %v1978 = vadd.f32 0.0, %v1977
        %v1979 = vpop.f32.mrf.mxu0
        %1980 = vdwg.mxu0
        %1981 = vrot.lane.b32.xlu0 %v1696, 80
        %v1982 = vpop.permute.xlu0 %1981
        %v1985 = vsel %vm1115, %v1961, 0
        %1987 = vmatpush.bf16.msra.mxu0 0
        %1988 = vmatpush.bf16.msra.mxu0 0
        %1989 = vmatpush.bf16.msra.mxu0 0
        %1990 = vmatpush.bf16.msra.mxu0 0
        %1991 = vmatpush.bf16.msra.mxu0 0
        %1992 = vmatpush.bf16.msra.mxu0 0
        %1993 = vmatpush.bf16.msra.mxu0 0
        %1994 = vmatpush.bf16.msra.mxu0 %v1982
        %1995 = vmatmul.bf16.gmra.mxu0 %v1985
        %v1996 = vpop.f32.mrf.mxu0
        %v1997 = vadd.f32 0.0, %v1996
        %v1998 = vpop.f32.mrf.mxu0
        %1999 = vdwg.mxu0
        %2000 = vrot.lane.b32.xlu0 %v1780, 104
        %v2001 = vpop.permute.xlu0 %2000
        %2002 = vrot.lane.b32.xlu0 %v1672, 104
        %v2003 = vpop.permute.xlu0 %2002
        %v2005 = vsel %vm1071, %v2001, 0
        %v2008 = vsel %vm1071, %v2003, 0
        %2010 = vmatpush.bf16.xpose.msra.mxu0 0
        %2011 = vmatpush.bf16.xpose.msra.mxu0 0
        %2012 = vmatpush.bf16.xpose.msra.mxu0 0
        %2013 = vmatpush.bf16.xpose.msra.mxu0 0
        %2014 = vmatpush.bf16.xpose.msra.mxu0 0
        %2015 = vmatpush.bf16.xpose.msra.mxu0 0
        %2016 = vmatpush.bf16.xpose.msra.mxu0 0
        %2017 = vmatpush.bf16.xpose.msra.mxu0 %v2008
        %2018 = vmatmul.bf16.gmra.mxu0 %v2005
        %v2019 = vpop.f32.mrf.mxu0
        %v2020 = vadd.f32 0.0, %v2019
        %v2021 = vpop.f32.mrf.mxu0
        %2022 = vdwg.mxu0
        %2023 = vrot.lane.b32.xlu0 %v1806, 104
        %v2024 = vpop.permute.xlu0 %2023
        %2025 = vrot.lane.b32.xlu0 %v1696, 104
        %v2026 = vpop.permute.xlu0 %2025
        %v2028 = vsel %vm1071, %v2024, 0
        %v2031 = vsel %vm1071, %v2026, 0
        %2033 = vmatpush.bf16.xpose.msra.mxu0 0
        %2034 = vmatpush.bf16.xpose.msra.mxu0 0
        %2035 = vmatpush.bf16.xpose.msra.mxu0 0
        %2036 = vmatpush.bf16.xpose.msra.mxu0 0
        %2037 = vmatpush.bf16.xpose.msra.mxu0 0
        %2038 = vmatpush.bf16.xpose.msra.mxu0 0
        %2039 = vmatpush.bf16.xpose.msra.mxu0 0
        %2040 = vmatpush.bf16.xpose.msra.mxu0 %v2031
        %2041 = vmatmul.bf16.gmra.mxu0 %v2028
        %v2042 = vpop.f32.mrf.mxu0
        %v2043 = vadd.f32 0.0, %v2042
        %v2044 = vpop.f32.mrf.mxu0
        %2045 = vdwg.mxu0
        %v2046 = vsel %vm1115, %v2020, -inf
        %2047 = vmax.xlane.f32.xlu0 %v2046
        %v2048 = vpop.xlane.xlu0 %2047
        %v2049 = vsel %vm1115, %v2043, -inf
        %2050 = vmax.xlane.f32.xlu0 %v2049
        %v2051 = vpop.xlane.xlu0 %2050
        %v2052 = vsub.f32 %v2020, %v2048
        %v2053 = vsub.f32 %v2043, %v2051
        %v2054 = vmul.f32 %v2052, 1.442695
        %v2055 = vpow.pop %v2054
        %v2056 = vmul.f32 %v2053, 1.442695
        %v2057 = vpow.pop %v2056
        %v2058 = vsel %vm1115, %v2055, 0.0
        %2059 = vadd.xlane.f32.xlu0 %v2058
        %v2060 = vpop.xlane.xlu0 %2059
        %v2061 = vsel %vm1115, %v2057, 0.0
        %2062 = vadd.xlane.f32.xlu0 %v2061
        %v2063 = vpop.xlane.xlu0 %2062
        %v2064 = vrcp.pop %v2060
        %v2065 = vrcp.pop %v2063
        %v2066 = vmul.f32 %v2055, %v2064
        %v2067 = vmul.f32 %v2057, %v2065
        %v2068 = vpack.c.bf16 %v2066, %v2066
        %v2069 = vpack.c.bf16 %v2067, %v2067
        %2070 = vrot.lane.b32.xlu0 %v1672, 72
        %v2071 = vpop.permute.xlu0 %2070
        %v2074 = vsel %vm1115, %v2068, 0
        %2076 = vmatpush.bf16.msra.mxu0 0
        %2077 = vmatpush.bf16.msra.mxu0 0
        %2078 = vmatpush.bf16.msra.mxu0 0
        %2079 = vmatpush.bf16.msra.mxu0 0
        %2080 = vmatpush.bf16.msra.mxu0 0
        %2081 = vmatpush.bf16.msra.mxu0 0
        %2082 = vmatpush.bf16.msra.mxu0 0
        %2083 = vmatpush.bf16.msra.mxu0 %v2071
        %2084 = vmatmul.bf16.gmra.mxu0 %v2074
        %v2085 = vpop.f32.mrf.mxu0
        %v2086 = vadd.f32 0.0, %v2085
        %v2087 = vpop.f32.mrf.mxu0
        %2088 = vdwg.mxu0
        %2089 = vrot.lane.b32.xlu0 %v1696, 72
        %v2090 = vpop.permute.xlu0 %2089
        %v2093 = vsel %vm1115, %v2069, 0
        %2095 = vmatpush.bf16.msra.mxu0 0
        %2096 = vmatpush.bf16.msra.mxu0 0
        %2097 = vmatpush.bf16.msra.mxu0 0
        %2098 = vmatpush.bf16.msra.mxu0 0
        %2099 = vmatpush.bf16.msra.mxu0 0
        %2100 = vmatpush.bf16.msra.mxu0 0
        %2101 = vmatpush.bf16.msra.mxu0 0
        %2102 = vmatpush.bf16.msra.mxu0 %v2090
        %2103 = vmatmul.bf16.gmra.mxu0 %v2093
        %v2104 = vpop.f32.mrf.mxu0
        %v2105 = vadd.f32 0.0, %v2104
        %v2106 = vpop.f32.mrf.mxu0
        %2107 = vdwg.mxu0
        %2110 = vrot.lane.b32.xlu0 %v1870, 8
        %v2111 = vpop.permute.xlu0 %2110
        %2112 = vrot.lane.b32.xlu0 %v1889, 8
        %v2113 = vpop.permute.xlu0 %2112
        %2118 = vrot.lane.b32.xlu0 %v1978, 16
        %v2119 = vpop.permute.xlu0 %2118
        %2120 = vrot.lane.b32.xlu0 %v1997, 16
        %v2121 = vpop.permute.xlu0 %2120
        %2126 = vrot.lane.b32.xlu0 %v2086, 24
        %v2127 = vpop.permute.xlu0 %2126
        %2128 = vrot.lane.b32.xlu0 %v2105, 24
        %v2129 = vpop.permute.xlu0 %2128
        %v2132 = vsel %vm1071, %v1756, %v2111
        %v2133 = vsel %vm1071, %v1775, %v2113
        %v2134 = vsel %vm1115, %v2132, %v2119
        %v2135 = vsel %vm1115, %v2133, %v2121
        %v2136 = vsel %vm1536, %v2134, %v2127
        %v2137 = vsel %vm1536, %v2135, %v2129
        %v2138 = vpack.c.bf16 %v2137, %v2136
        %v2139 = vperm.slane %v965, 3
        %v2144 = vunpack.c.l.b16 %v1583
        %v2145 = vunpack.c.l.b16 %v1584
        %v2146 = vunpack.c.l.b16 %v1585
        %v2147 = vunpack.c.l.b16 %v1586
        %v2148 = vpack.c.b16 %v2145, %v2144
        %v2149 = vpack.c.b16 %v2147, %v2146
        %v2153 = vsel %vm998, %v2138, 0
        %2155 = vmatpush.bf16.msra.mxu0 0
        %2156 = vmatpush.bf16.msra.mxu0 0
        %2157 = vmatpush.bf16.msra.mxu0 0
        %2158 = vmatpush.bf16.msra.mxu0 0
        %2159 = vmatpush.bf16.msra.mxu0 0
        %2160 = vmatpush.bf16.msra.mxu0 0
        %2161 = vmatpush.bf16.msra.mxu0 %v2149
        %2162 = vmatpush.bf16.msra.mxu0 %v2148
        %2163 = vmatmul.bf16.gmra.mxu0 %v2153
        %v2164 = vpop.f32.mrf.mxu0
        %v2165 = vadd.f32 %v2139, %v2164
        %v2166 = vpop.f32.mrf.mxu0
        %v2167 = vadd.f32 %v2139, %v2166
        %2168 = vdwg.mxu0
        %v2169 = vsel %vm998, %v2165, 0.0
        %2170 = vadd.xlane.f32.xlu0 %v2169
        %v2171 = vpop.xlane.xlu0 %2170
        %v2172 = vsel %vm998, %v2167, 0.0
        %2173 = vadd.xlane.f32.xlu0 %v2172
        %v2174 = vpop.xlane.xlu0 %2173
        %v2175 = vrcp.pop 32.0
        %v2176 = vmul.f32 32.0, %v2175
        %v2177 = vsub.f32 1.0, %v2176
        %v2178 = vmul.f32 %v2175, %v2177
        %v2179 = vadd.f32 %v2175, %v2178
        %vm2180 = vweird.f32 %v2175
        %v2181 = vsel %vm2180, %v2175, %v2179
        %v2182 = vmul.f32 %v2171, %v2181
        %v2183 = vmul.f32 %v2174, %v2181
        %v2184 = vsub.f32 %v2165, %v2182
        %v2185 = vsub.f32 %v2167, %v2183
        %v2186 = vmul.f32 %v2184, %v2184
        %v2187 = vmul.f32 %v2185, %v2185
        %v2188 = vsel %vm998, %v2186, 0.0
        %2189 = vadd.xlane.f32.xlu0 %v2188
        %v2190 = vpop.xlane.xlu0 %2189
        %v2191 = vsel %vm998, %v2187, 0.0
        %2192 = vadd.xlane.f32.xlu0 %v2191
        %v2193 = vpop.xlane.xlu0 %2192
        %v2194 = vmul.f32 %v2190, %v2181
        %v2195 = vmul.f32 %v2193, %v2181
        %v2196 = vadd.f32 %v2194, 1e-05
        %v2197 = vadd.f32 %v2195, 1e-05
        %v2198 = vrsqrt.pop %v2196
        %v2199 = vmul.f32 %v2198, %v2196
        %v2200 = vmul.f32 %v2199, %v2198
        %v2201 = vmul.f32 0.5, %v2200
        %v2202 = vsub.f32 1.5, %v2201
        %v2203 = vmul.f32 %v2198, %v2202
        %vm2204 = vweird.f32 %v2196
        %vm2205 = vweird.f32 %v2198
        %vm2206 = vmor %vm2204, %vm2205
        %v2207 = vsel %vm2206, %v2198, %v2203
        %v2208 = vrsqrt.pop %v2197
        %v2209 = vmul.f32 %v2208, %v2197
        %v2210 = vmul.f32 %v2209, %v2208
        %v2211 = vmul.f32 0.5, %v2210
        %v2212 = vsub.f32 1.5, %v2211
        %v2213 = vmul.f32 %v2208, %v2212
        %vm2214 = vweird.f32 %v2197
        %vm2215 = vweird.f32 %v2208
        %vm2216 = vmor %vm2214, %vm2215
        %v2217 = vsel %vm2216, %v2208, %v2213
        %v2218 = vmul.f32 %v2184, %v2207
        %v2219 = vmul.f32 %v2185, %v2217
        %v2220 = vperm.slane %v965, 4
        %v2221 = vmul.f32 %v2218, %v2220
        %v2222 = vmul.f32 %v2219, %v2220
        %v2223 = vperm.slane %v965, 5
        %v2224 = vadd.f32 %v2221, %v2223
        %v2225 = vadd.f32 %v2222, %v2223
        %v2226 = vpack.c.bf16 %v2225, %v2224
        %v2227 = vld [vmem:[%s784] sm:$0xf]
        %v2228 = vld [vmem:[%s784 + $0x4] sm:$0xf]
        %v2229 = vld [vmem:[%s784 + $0x8] sm:$0xf]
        %v2230 = vld [vmem:[%s784 + $0xc] sm:$0xf]
        %v2231 = vld [vmem:[%s793] sm:$0x1]
        %v2233 = vperm.slane %v2231, 0
        %v2239 = vunpack.c.l.b16 %v2227
        %v2240 = vunpack.c.l.b16 %v2228
        %v2241 = vunpack.c.l.b16 %v2229
        %v2242 = vunpack.c.l.b16 %v2230
        %v2243 = vpack.c.b16 %v2240, %v2239
        %v2244 = vpack.c.b16 %v2242, %v2241
        %v2248 = vsel %vm998, %v2226, 0
        %2250 = vmatpush.bf16.msra.mxu0 0
        %2251 = vmatpush.bf16.msra.mxu0 0
        %2252 = vmatpush.bf16.msra.mxu0 0
        %2253 = vmatpush.bf16.msra.mxu0 0
        %2254 = vmatpush.bf16.msra.mxu0 0
        %2255 = vmatpush.bf16.msra.mxu0 0
        %2256 = vmatpush.bf16.msra.mxu0 %v2244
        %2257 = vmatpush.bf16.msra.mxu0 %v2243
        %2258 = vmatmul.bf16.gmra.mxu0 %v2248
        %v2259 = vpop.f32.mrf.mxu0
        %v2260 = vadd.f32 %v2233, %v2259
        %v2261 = vpop.f32.mrf.mxu0
        %v2262 = vadd.f32 %v2233, %v2261
        %2263 = vdwg.mxu0
        %v2264 = vmul.f32 %v2260, 0.5
        %v2265 = vmul.f32 %v2262, 0.5
        %v2266 = vmul.f32 %v2260, 0.044715
        %v2267 = vmul.f32 %v2262, 0.044715
        %v2268 = vmul.f32 %v2266, %v2260
        %v2269 = vmul.f32 %v2267, %v2262
        %v2270 = vmul.f32 %v2268, %v2260
        %v2271 = vmul.f32 %v2269, %v2262
        %v2272 = vadd.f32 %v2260, %v2270
        %v2273 = vadd.f32 %v2262, %v2271
        %v2274 = vmul.f32 %v2272, 0.7978846
        %v2275 = vmul.f32 %v2273, 0.7978846
        %v2276 = vtanh.pop %v2274
        %v2277 = vtanh.pop %v2275
        %v2278 = vadd.f32 %v2276, 1.0
        %v2279 = vadd.f32 %v2277, 1.0
        %v2280 = vmul.f32 %v2264, %v2278
        %v2281 = vmul.f32 %v2265, %v2279
        %v2282 = vpack.c.bf16 %v2281, %v2280
        %v2283 = vld [vmem:[%s945] sm:$0xf]
        %v2284 = vld [vmem:[%s945 + $0x4] sm:$0xf]
        %v2285 = vld [vmem:[%s945 + $0x8] sm:$0xf]
        %v2286 = vld [vmem:[%s945 + $0xc] sm:$0xf]
        %v2287 = vld [vmem:[%s945 + $0x10] sm:$0xf]
        %v2288 = vld [vmem:[%s945 + $0x14] sm:$0xf]
        %v2289 = vld [vmem:[%s945 + $0x18] sm:$0xf]
        %v2290 = vld [vmem:[%s945 + $0x1c] sm:$0xf]
        %v2291 = vld [vmem:[%s945 + $0x20] sm:$0xf]
        %v2292 = vld [vmem:[%s945 + $0x24] sm:$0xf]
        %v2293 = vld [vmem:[%s945 + $0x28] sm:$0xf]
        %v2294 = vld [vmem:[%s945 + $0x2c] sm:$0xf]
        %v2295 = vld [vmem:[%s945 + $0x30] sm:$0xf]
        %v2296 = vld [vmem:[%s945 + $0x34] sm:$0xf]
        %v2297 = vld [vmem:[%s945 + $0x38] sm:$0xf]
        %v2298 = vld [vmem:[%s945 + $0x3c] sm:$0xf]
        %v2299 = vperm.slane %v965, 6
        %v2316 = vunpack.c.l.b16 %v2283
        %v2317 = vunpack.c.l.b16 %v2284
        %v2318 = vunpack.c.l.b16 %v2285
        %v2319 = vunpack.c.l.b16 %v2286
        %v2320 = vunpack.c.l.b16 %v2287
        %v2321 = vunpack.c.l.b16 %v2288
        %v2322 = vunpack.c.l.b16 %v2289
        %v2323 = vunpack.c.l.b16 %v2290
        %v2324 = vunpack.c.l.b16 %v2291
        %v2325 = vunpack.c.l.b16 %v2292
        %v2326 = vunpack.c.l.b16 %v2293
        %v2327 = vunpack.c.l.b16 %v2294
        %v2328 = vunpack.c.l.b16 %v2295
        %v2329 = vunpack.c.l.b16 %v2296
        %v2330 = vunpack.c.l.b16 %v2297
        %v2331 = vunpack.c.l.b16 %v2298
        %v2332 = vpack.c.b16 %v2317, %v2316
        %v2333 = vpack.c.b16 %v2319, %v2318
        %v2334 = vpack.c.b16 %v2321, %v2320
        %v2335 = vpack.c.b16 %v2323, %v2322
        %v2336 = vpack.c.b16 %v2325, %v2324
        %v2337 = vpack.c.b16 %v2327, %v2326
        %v2338 = vpack.c.b16 %v2329, %v2328
        %v2339 = vpack.c.b16 %v2331, %v2330
        %2348 = vmatpush.bf16.msra.mxu0 %v2339
        %2349 = vmatpush.bf16.msra.mxu0 %v2338
        %2350 = vmatpush.bf16.msra.mxu0 %v2337
        %2351 = vmatpush.bf16.msra.mxu0 %v2336
        %2352 = vmatpush.bf16.msra.mxu0 %v2335
        %2353 = vmatpush.bf16.msra.mxu0 %v2334
        %2354 = vmatpush.bf16.msra.mxu0 %v2333
        %2355 = vmatpush.bf16.msra.mxu0 %v2332
        %2356 = vmatmul.bf16.gmra.mxu0 %v2282
        %v2357 = vpop.f32.mrf.mxu0
        %v2358 = vadd.f32 %v2299, %v2357
        %v2359 = vpop.f32.mrf.mxu0
        %v2360 = vadd.f32 %v2299, %v2359
        %2361 = vdwg.mxu0
        %v2362 = vsel %vm998, %v2358, 0.0
        %2363 = vadd.xlane.f32.xlu0 %v2362
        %v2364 = vpop.xlane.xlu0 %2363
        %v2365 = vsel %vm998, %v2360, 0.0
        %2366 = vadd.xlane.f32.xlu0 %v2365
        %v2367 = vpop.xlane.xlu0 %2366
        %v2368 = vmul.f32 %v2364, %v2181
        %v2369 = vmul.f32 %v2367, %v2181
        %v2370 = vsub.f32 %v2358, %v2368
        %v2371 = vsub.f32 %v2360, %v2369
        %v2372 = vmul.f32 %v2370, %v2370
        %v2373 = vmul.f32 %v2371, %v2371
        %v2374 = vsel %vm998, %v2372, 0.0
        %2375 = vadd.xlane.f32.xlu0 %v2374
        %v2376 = vpop.xlane.xlu0 %2375
        %v2377 = vsel %vm998, %v2373, 0.0
        %2378 = vadd.xlane.f32.xlu0 %v2377
        %v2379 = vpop.xlane.xlu0 %2378
        %v2380 = vmul.f32 %v2376, %v2181
        %v2381 = vmul.f32 %v2379, %v2181
        %v2382 = vadd.f32 %v2380, 1e-05
        %v2383 = vadd.f32 %v2381, 1e-05
        %v2384 = vrsqrt.pop %v2382
        %v2385 = vmul.f32 %v2384, %v2382
        %v2386 = vmul.f32 %v2385, %v2384
        %v2387 = vmul.f32 0.5, %v2386
        %v2388 = vsub.f32 1.5, %v2387
        %v2389 = vmul.f32 %v2384, %v2388
        %vm2390 = vweird.f32 %v2382
        %vm2391 = vweird.f32 %v2384
        %vm2392 = vmor %vm2390, %vm2391
        %v2393 = vsel %vm2392, %v2384, %v2389
        %v2394 = vrsqrt.pop %v2383
        %v2395 = vmul.f32 %v2394, %v2383
        %v2396 = vmul.f32 %v2395, %v2394
        %v2397 = vmul.f32 0.5, %v2396
        %v2398 = vsub.f32 1.5, %v2397
        %v2399 = vmul.f32 %v2394, %v2398
        %vm2400 = vweird.f32 %v2383
        %vm2401 = vweird.f32 %v2394
        %vm2402 = vmor %vm2400, %vm2401
        %v2403 = vsel %vm2402, %v2394, %v2399
        %v2404 = vmul.f32 %v2370, %v2393
        %v2405 = vmul.f32 %v2371, %v2403
        %v2406 = vperm.slane %v965, 7
        %v2407 = vmul.f32 %v2404, %v2406
        %v2408 = vmul.f32 %v2405, %v2406
        %v2409 = vperm.slane %v966, 0
        %v2410 = vadd.f32 %v2407, %v2409
        %v2411 = vadd.f32 %v2408, %v2409
        %2412 = vst.msk [vmem:[#allocation2] sm:$0xff] %vm998, %v2410
        %2413 = vst.msk [vmem:[#allocation2 + $0x10] sm:$0xff] %vm998, %v2411
        %p2414 = scmp.eq.s32.totalorder %s45, 1
        // Predicated region
        $region125: #{tpu_custom_call.1} parent=87 // pred_check
          %p2415 = pneg %p2414
        $region126: #{tpu_custom_call.1} parent=87 // pred_check_branch
          %2417 = sbr.rel (%p2415) target = $region128
        $region127: #{tpu_custom_call.1} parent=87 // pred_region
          %v2418 = vpack.c.bf16 %v2411, %v2410
          %v2419 = vld [vmem:[%s15] sm:$0xf]
          %v2420 = vld [vmem:[%s15 + $0x4] sm:$0xf]
          %v2421 = vld [vmem:[%s15 + $0x8] sm:$0xf]
          %v2422 = vld [vmem:[%s15 + $0xc] sm:$0xf]
          %v2423 = vld [vmem:[#allocation15] sm:$0x1]
          %v2425 = vperm.slane %v2423, 0
          %v2431 = vunpack.c.l.b16 %v2419
          %v2432 = vunpack.c.l.b16 %v2420
          %v2433 = vunpack.c.l.b16 %v2421
          %v2434 = vunpack.c.l.b16 %v2422
          %v2435 = vpack.c.b16 %v2432, %v2431
          %v2436 = vpack.c.b16 %v2434, %v2433
          %v2440 = vsel %vm998, %v2418, 0
          %2442 = vmatpush.bf16.msra.mxu0 0
          %2443 = vmatpush.bf16.msra.mxu0 0
          %2444 = vmatpush.bf16.msra.mxu0 0
          %2445 = vmatpush.bf16.msra.mxu0 0
          %2446 = vmatpush.bf16.msra.mxu0 0
          %2447 = vmatpush.bf16.msra.mxu0 0
          %2448 = vmatpush.bf16.msra.mxu0 %v2436
          %2449 = vmatpush.bf16.msra.mxu0 %v2435
          %2450 = vmatmul.bf16.gmra.mxu0 %v2440
          %v2451 = vpop.f32.mrf.mxu0
          %v2452 = vadd.f32 %v2425, %v2451
          %v2453 = vpop.f32.mrf.mxu0
          %v2454 = vadd.f32 %v2425, %v2453
          %2455 = vdwg.mxu0
          %2456 = vst.msk [vmem:[#allocation17] sm:$0xff] %vm998, %v2452
          %2457 = vst.msk [vmem:[#allocation17 + $0x8] sm:$0xff] %vm998, %v2454
        $region128: #{tpu_custom_call.1} parent=87 // pred_fallthru
          _
        // Predicated region
        $region129: #{tpu_custom_call.1} parent=87 // pred_check
          %p2458 = pneg %p497
        $region130: #{tpu_custom_call.1} parent=87 // pred_check_branch
          %2460 = sbr.rel (%p2458) target = $region132
        $region131: #{tpu_custom_call.1} parent=87 // pred_region
          %s2461 = smul.u32 2, %s44
          %2463 = vsyncadd [#allocation5], 0
          %s2464 = smul.addr %s2461, 8
          %s2465 = scalar_lea.hbm %s17, %s2464
          %s2466 = sshll.u32 [#allocation17], 4
          %s2467 = int_to_ptr.vmem [resolvable:$true] %s2466
          %s2468 = sshll.u32 %s2465, 4
          %s2469 = int_to_ptr.hbm [resolvable:$true] %s2468
          %2474 = dma.vmem_to_hbm [thread:$0]  %s2467, 256, %s2469, [#allocation5], 128, 128, 8
        $region132: #{tpu_custom_call.1} parent=87 // pred_fallthru
          _
        // Predicated region
        $region133: #{tpu_custom_call.1} parent=87 // pred_check
          %p2475 = pneg %p497
        $region134: #{tpu_custom_call.1} parent=87 // pred_check_branch
          %2477 = sbr.rel (%p2475) target = $region136
        $region135: #{tpu_custom_call.1} parent=87 // pred_region
          %2479 = dma.done [#allocation5], 256
        $region136: #{tpu_custom_call.1} parent=87 // pred_fallthru
          _
      $region88: #{tpu_custom_call.1} parent=5 // pred_fallthru
        _
      %p2480 = scmp.le.s32.totalorder 2, %s35
      // Predicated region
      $region137: #{tpu_custom_call.1} parent=5 // pred_check
        %p2481 = pneg %p2480
      $region138: #{tpu_custom_call.1} parent=5 // pred_check_branch
        %2483 = sbr.rel (%p2481) target = $region140
      $region139: #{tpu_custom_call.1} parent=5 // pred_region
        %s2484 = ssub.s32 %s35, 2
      $region140: #{tpu_custom_call.1} parent=5 // pred_fallthru
        _
    $region6: #{tpu_custom_call.1} parent=1 // loop_footer
      %s39 = sadd.s32 1, %s35
    $region7: #{tpu_custom_call.1} parent=1 // loop_footer_branch
      %34 = sbr.rel target = $region3
    $region8: #{tpu_custom_call.1} parent=1 // loop_exit
      _
    %2485 = vsyncpa [#allocation4], 1
    %s2486 = scalar_lea.sflag [#allocation4], 1
    %2487 = vsyncpa %s2486, 1
    %2488 = vsyncpa [#allocation7], 1
    %s2489 = scalar_lea.sflag [#allocation7], 1
    %2490 = vsyncpa %s2489, 1
    %2491 = vsyncpa [#allocation10], 1
    %s2492 = scalar_lea.sflag [#allocation10], 1
    %2493 = vsyncpa %s2492, 1
    %2494 = vsyncpa [#allocation13], 1
    %s2495 = scalar_lea.sflag [#allocation13], 1
    %2496 = vsyncpa %s2495, 1
    %2497 = vsyncpa [#allocation16], 1
    %2498 = vsyncpa [#allocation5], 1
    %s2499 = scalar_lea.sflag [#allocation5], 1
    %2500 = vsyncpa %s2499, 1

</llo_original>
